<compile_context>
chip_gen: v7x
topology: tpu7x:2x2x1
jax: 0.10.0
libtpu: 0.0.40
codegen_flags: <defaults>
</compile_context>

<pallas_src>
import functools

import jax
import jax.numpy as jnp
import numpy as np
from jax.experimental import pallas as pl
from jax.experimental.pallas import tpu as pltpu

# ---- constants from the PyTorch module -------------------------------------
LB = 1e-6
UB = 60.0
INTER_MIN = -30.0
INTER_MAX = 30.0
R_KCAL = 0.0019872036
LL_DU = -1e5
UL_DU = 1e5


def _crnn_block_kernel(u_ref, bias_ref, w_inT_ref, w_out_ref, du_ref, *, Ts):
    """One grid step = Ts folded time steps over a lane-dense batch B.

    u_ref    : VMEM (Ts, ns, B)  -- species states, batch on the lane axis
    bias_ref : VMEM (Ts, nr, 1)  -- w_b + w_ea*(-1/(R*T_s)) + w_lt*log(T_s)
    w_inT_ref: VMEM (nr, ns)     -- species columns of w_in, pre-transposed (resident)
    w_out_ref: VMEM (ns, nr)     -- resident
    du_ref   : VMEM (Ts, ns, B)  -- output
    """
    w_inT = w_inT_ref[...]                               # (nr, ns)
    w_out = w_out_ref[...]                               # (ns, nr)
    # Static unroll over the folded time steps: each step is a pair of 2-D,
    # lane-dense MXU matmuls plus a VPU/EUP tail.  Ts is kept small enough
    # (<= 32 by default) that the unroll stays cheap to compile.
    for t in range(Ts):
        logY = jnp.log(jnp.clip(u_ref[t], LB, UB))       # (ns, B)
        x = jnp.dot(w_inT, logY,
                    preferred_element_type=jnp.float32)  # (nr, B)
        inter = jnp.clip(x + bias_ref[t], INTER_MIN, INTER_MAX)
        expi = jnp.exp(inter)
        du = jnp.dot(w_out, expi,
                     preferred_element_type=jnp.float32)  # (ns, B)
        du_ref[t] = jnp.clip(du, LL_DU, UL_DU)


def prepare_crnn_params(w_in, w_b, w_out):
    """One-time hoist of transposes / casts / reshapes / padding out of the hot path."""
    w_in = jnp.asarray(w_in, jnp.float32)                # (ns+2, nr)
    ns = w_in.shape[0] - 2
    nr = w_in.shape[1]
    ns_pad = ((ns + 7) // 8) * 8                         # f32 sublane tile = 8

    w_inT_main = w_in[:ns, :].T                          # (nr, ns)
    w_out_f = jnp.asarray(w_out, jnp.float32)            # (ns, nr)
    if ns_pad != ns:
        # Zero-weight dummy species: padded state rows contribute nothing.
        w_inT_main = jnp.pad(w_inT_main, ((0, 0), (0, ns_pad - ns)))
        w_out_f = jnp.pad(w_out_f, ((0, ns_pad - ns), (0, 0)))

    w_ea = w_in[ns, :].reshape(nr, 1)                    # coeff of -1/(R*T)
    w_lt = w_in[ns + 1, :].reshape(nr, 1)                # coeff of log(T)
    w_b_col = jnp.asarray(w_b, jnp.float32).reshape(nr, 1)
    return w_inT_main, w_ea, w_lt, w_b_col, w_out_f


def crnn_rhs_batch(t_points, U, w_inT_main, w_ea, w_lt, w_b_col, w_out,
                   t_grid, T_profile, P_profile, *, Ts=None):
    """Evaluate the CRNN RHS for S time points x B states in one kernel launch.

    t_points: (S,)            times
    U       : (S, ns, B) f32  states (batch on the last/lane axis, B multiple of 128;
                              use a multiple of 256 on v6e/v7x)
    returns : (S, ns, B) f32  du/dt
    """
    S, ns_in, B = U.shape
    nr, ns_pad = w_inT_main.shape

    if Ts is None:
        # Target ~2 MiB per state block, bound the static unroll, and keep the
        # (folded) grid length >= 2 so the step axis shards across v7x's 2 TCs.
        Ts = max(1, min(S, (2 * 1024 * 1024) // max(1, ns_pad * B * 4)))
        Ts = min(Ts, 32)
        if S >= 2:
            Ts = min(Ts, S // 2)
        while S % Ts:
            Ts -= 1
    assert S % Ts == 0, "S must be divisible by Ts"

    # itpT / itpP: linear interpolation of the profiles, once per batched call
    # (amortized over S*B RHS evaluations).
    t32 = t_points.astype(jnp.float32)
    T_all = jnp.interp(t32, t_grid.astype(jnp.float32),
                       T_profile.astype(jnp.float32)).astype(jnp.float32)
    _P_all = jnp.interp(t32, t_grid.astype(jnp.float32),
                        P_profile.astype(jnp.float32))
    del _P_all  # computed but unused, exactly as in the PyTorch forward

    # Per-step bias folding the two temperature entries of w_v and w_b.
    # NOTE: like the PyTorch forward, this assumes T(t) > 0 (log / 1/(R*T)).
    neg_inv_RT = (-1.0 / (R_KCAL * T_all))[:, None, None]          # (S,1,1)
    logT = jnp.log(T_all)[:, None, None]                           # (S,1,1)
    bias_all = (w_b_col[None] + w_ea[None] * neg_inv_RT
                + w_lt[None] * logT)                                # (S, nr, 1)

    if ns_pad != ns_in:
        # Dummy species rows: value 1.0 -> log(clip(1)) = 0, weights are zero anyway.
        U = jnp.pad(U, ((0, 0), (0, ns_pad - ns_in), (0, 0)), constant_values=1.0)

    kernel = functools.partial(_crnn_block_kernel, Ts=Ts)
    dU = pl.pallas_call(
        kernel,
        grid=(S // Ts,),
        in_specs=[
            pl.BlockSpec((Ts, ns_pad, B), lambda s: (s, 0, 0)),   # U     (pipelined)
            pl.BlockSpec((Ts, nr, 1), lambda s: (s, 0, 0)),       # bias  (pipelined)
            pl.BlockSpec((nr, ns_pad), lambda s: (0, 0)),         # w_inT (resident)
            pl.BlockSpec((ns_pad, nr), lambda s: (0, 0)),         # w_out (resident)
        ],
        out_specs=pl.BlockSpec((Ts, ns_pad, B), lambda s: (s, 0, 0)),
        out_shape=jax.ShapeDtypeStruct((S, ns_pad, B), jnp.float32),
        compiler_params=pltpu.CompilerParams(
            dimension_semantics=("parallel",),       # folded steps are independent
            vmem_limit_bytes=32 * 1024 * 1024),      # raise v5e's 16 MiB default
    )(U, bias_all, w_inT_main, w_out)

    if ns_pad != ns_in:
        dU = dU[:, :ns_in, :]
    return dU


def crnn_forward(t, u, w_in, w_b, w_out, t_grid, T_profile, P_profile):
    """Original single (t, u) forward signature, routed through the batched
    kernel (state placed in lane 0 of a 128-wide batch)."""
    ns = u.shape[0]
    params = prepare_crnn_params(w_in, w_b, w_out)
    B = 128
    U = jnp.ones((1, ns, B), jnp.float32).at[0, :, 0].set(u.astype(jnp.float32))
    t_pts = jnp.reshape(jnp.asarray(t, jnp.float32), (1,))
    dU = crnn_rhs_batch(t_pts, U, *params, t_grid, T_profile, P_profile, Ts=1)
    return dU[0, :, 0]


def crnn_reference(t, u, w_in, w_b, w_out, t_grid, T_profile, P_profile):
    """Pure-JAX reference mirroring the PyTorch forward, for validation."""
    T = jnp.interp(t, t_grid, T_profile)
    Y = jnp.clip(u, LB, UB)
    logX = jnp.log(Y)
    w_v = jnp.concatenate(
        [logX, jnp.stack([-1.0 / (R_KCAL * T), jnp.log(T)])]).astype(jnp.float32)
    inter = jnp.clip(w_in.T @ w_v + w_b, INTER_MIN, INTER_MAX)
    du = w_out @ jnp.exp(inter)
    return jnp.clip(du, LL_DU, UL_DU)


if __name__ == "__main__":
    # Small deterministic problem: ns species, nr reactions, S time steps,
    # B batched states (lane axis, multiple of 256), Ts steps folded per block.
    ns, nr, S, B, Ts, tsteps = 8, 16, 64, 256, 16, 8

    key = jax.random.PRNGKey(0)
    k1, k2, k3, k4, k5 = jax.random.split(key, 5)

    # Parameters (shapes implied by the forward: w_in (ns+2, nr), w_b (nr,),
    # w_out (ns, nr)). yscale is a wrapper arg unused in forward -> omitted.
    w_in = 0.1 * jax.random.normal(k1, (ns + 2, nr), jnp.float32)
    w_b = 0.1 * jax.random.normal(k2, (nr,), jnp.float32)
    w_out = 0.1 * jax.random.normal(k3, (ns, nr), jnp.float32)

    # Batched states and time points (e.g. many trajectories / solver stages).
    U_batch = jax.random.uniform(k4, (S, ns, B), jnp.float32,
                                 minval=0.01, maxval=1.0)
    t_points = jnp.linspace(0.0, 1.0, S).astype(jnp.float32)

    # Deterministic T(t) / P(t) profiles backing itpT / itpP.
    t_grid = jnp.linspace(0.0, 1.0, tsteps).astype(jnp.float32)
    T_profile = (1000.0 + 500.0 * t_grid).astype(jnp.float32)
    P_profile = (1.0 + t_grid).astype(jnp.float32)

    # One-time parameter prep (hoisted out of the hot path).
    params = prepare_crnn_params(w_in, w_b, w_out)

    rhs_batch = jax.jit(functools.partial(crnn_rhs_batch, Ts=Ts))
    dU = rhs_batch(t_points, U_batch, *params, t_grid, T_profile, P_profile)
    jax.block_until_ready(dU)

    # Reference: vmap the per-sample PyTorch-equivalent forward over batch & steps.
    per_batch = jax.vmap(crnn_reference,
                         in_axes=(None, 1, None, None, None, None, None, None),
                         out_axes=1)
    per_step = jax.vmap(per_batch,
                        in_axes=(0, 0, None, None, None, None, None, None),
                        out_axes=0)
    dU_ref = per_step(t_points, U_batch, w_in, w_b, w_out,
                      t_grid, T_profile, P_profile)
    np.testing.assert_allclose(np.asarray(dU), np.asarray(dU_ref),
                               rtol=1e-4, atol=1e-5)

    # Also check the original single (t, u) forward interface.
    t0 = jnp.float32(0.37)
    u0 = jax.random.uniform(k5, (ns,), jnp.float32, minval=0.01, maxval=1.0)
    du0 = crnn_forward(t0, u0, w_in, w_b, w_out, t_grid, T_profile, P_profile)
    jax.block_until_ready(du0)
    du0_ref = crnn_reference(t0, u0, w_in, w_b, w_out,
                             t_grid, T_profile, P_profile)
    np.testing.assert_allclose(np.asarray(du0), np.asarray(du0_ref),
                               rtol=1e-4, atol=1e-5)

    print("KERNEL_OK")
</pallas_src>

<mosaic_0001>
module attributes {stable_mosaic.version = 11 : i64} {
  func.func @_crnn_block_kernel(%arg0: i32, %arg1: memref<16x8x256xf32, #tpu.memory_space<vmem>>, %arg2: memref<16x16x1xf32, #tpu.memory_space<vmem>>, %arg3: memref<16x8xf32, #tpu.memory_space<vmem>>, %arg4: memref<8x16xf32, #tpu.memory_space<vmem>>, %arg5: memref<16x8x256xf32, #tpu.memory_space<vmem>>) attributes {dimension_semantics = [#tpu.dimension_semantics<parallel>], iteration_bounds = array<i64: 4>, scalar_prefetch = 0 : i64, scratch_operands = 0 : i64, tpu.core_type = #tpu.core_type<tc>, window_params = [{transform_indices = @transform_0, window_bounds = array<i64: 16, 8, 256>}, {transform_indices = @transform_1, window_bounds = array<i64: 16, 16, 1>}, {pipeline_mode = #tpu.pipeline_mode<synchronous>, transform_indices = @transform_2, window_bounds = array<i64: 16, 8>}, {pipeline_mode = #tpu.pipeline_mode<synchronous>, transform_indices = @transform_3, window_bounds = array<i64: 8, 16>}, {transform_indices = @transform_4, window_bounds = array<i64: 16, 8, 256>}]} {
    %c0 = arith.constant 0 : index
    %c0_0 = arith.constant 0 : index
    %0 = vector.load %arg3[%c0, %c0_0] : memref<16x8xf32, #tpu.memory_space<vmem>>, vector<16x8xf32>
    %c0_1 = arith.constant 0 : index
    %c0_2 = arith.constant 0 : index
    %1 = vector.load %arg4[%c0_1, %c0_2] : memref<8x16xf32, #tpu.memory_space<vmem>>, vector<8x16xf32>
    %c0_3 = arith.constant 0 : index
    %c0_4 = arith.constant 0 : index
    %c0_5 = arith.constant 0 : index
    %2 = vector.load %arg1[%c0_3, %c0_4, %c0_5] : memref<16x8x256xf32, #tpu.memory_space<vmem>>, vector<1x8x256xf32>
    %3 = vector.shape_cast %2 : vector<1x8x256xf32> to vector<8x256xf32>
    %cst = arith.constant 9.99999997E-7 : f32
    %cst_6 = arith.constant 6.000000e+01 : f32
    %4 = vector.broadcast %cst : f32 to vector<8x256xf32>
    %5 = arith.maximumf %4, %3 : vector<8x256xf32>
    %6 = vector.broadcast %cst_6 : f32 to vector<8x256xf32>
    %7 = arith.minimumf %6, %5 : vector<8x256xf32>
    %8 = math.log %7 : vector<8x256xf32>
    %cst_7 = arith.constant dense<0.000000e+00> : vector<16x256xf32>
    %9 = tpu.matmul %0, %8, %cst_7 {dimension_numbers = #tpu.dot_dimension_numbers<[1], [0], [0], [1], [0, 0, 1, 1], [], []>} : vector<16x8xf32>, vector<8x256xf32>, vector<16x256xf32> -> vector<16x256xf32>
    %c0_8 = arith.constant 0 : index
    %c0_9 = arith.constant 0 : index
    %c0_10 = arith.constant 0 : index
    %10 = vector.load %arg2[%c0_8, %c0_9, %c0_10] : memref<16x16x1xf32, #tpu.memory_space<vmem>>, vector<1x16x1xf32>
    %11 = vector.shape_cast %10 : vector<1x16x1xf32> to vector<16x1xf32>
    %12 = vector.broadcast %11 : vector<16x1xf32> to vector<16x256xf32>
    %13 = arith.addf %9, %12 : vector<16x256xf32>
    %cst_11 = arith.constant -3.000000e+01 : f32
    %cst_12 = arith.constant 3.000000e+01 : f32
    %14 = vector.broadcast %cst_11 : f32 to vector<16x256xf32>
    %15 = arith.maximumf %14, %13 : vector<16x256xf32>
    %16 = vector.broadcast %cst_12 : f32 to vector<16x256xf32>
    %17 = arith.minimumf %16, %15 : vector<16x256xf32>
    %18 = math.exp %17 : vector<16x256xf32>
    %cst_13 = arith.constant dense<0.000000e+00> : vector<8x256xf32>
    %19 = tpu.matmul %1, %18, %cst_13 {dimension_numbers = #tpu.dot_dimension_numbers<[1], [0], [0], [1], [0, 0, 1, 1], [], []>} : vector<8x16xf32>, vector<16x256xf32>, vector<8x256xf32> -> vector<8x256xf32>
    %cst_14 = arith.constant -1.000000e+05 : f32
    %cst_15 = arith.constant 1.000000e+05 : f32
    %20 = vector.broadcast %cst_14 : f32 to vector<8x256xf32>
    %21 = arith.maximumf %20, %19 : vector<8x256xf32>
    %22 = vector.broadcast %cst_15 : f32 to vector<8x256xf32>
    %23 = arith.minimumf %22, %21 : vector<8x256xf32>
    %c0_16 = arith.constant 0 : index
    %c0_17 = arith.constant 0 : index
    %c0_18 = arith.constant 0 : index
    %24 = vector.load %arg5[%c0_16, %c0_17, %c0_18] : memref<16x8x256xf32, #tpu.memory_space<vmem>>, vector<1x8x256xf32>
    %25 = vector.shape_cast %24 : vector<1x8x256xf32> to vector<8x256xf32>
    %26 = vector.shape_cast %23 : vector<8x256xf32> to vector<1x8x256xf32>
    tpu.vector_store %arg5[%c0_16, %c0_17, %c0_18], %26 {strides = array<i32>} : memref<16x8x256xf32, #tpu.memory_space<vmem>>, vector<1x8x256xf32>,
    %c1 = arith.constant 1 : index
    %c0_19 = arith.constant 0 : index
    %c0_20 = arith.constant 0 : index
    %27 = vector.load %arg1[%c1, %c0_19, %c0_20] : memref<16x8x256xf32, #tpu.memory_space<vmem>>, vector<1x8x256xf32>
    %28 = vector.shape_cast %27 : vector<1x8x256xf32> to vector<8x256xf32>
    %cst_21 = arith.constant 9.99999997E-7 : f32
    %cst_22 = arith.constant 6.000000e+01 : f32
    %29 = vector.broadcast %cst_21 : f32 to vector<8x256xf32>
    %30 = arith.maximumf %29, %28 : vector<8x256xf32>
    %31 = vector.broadcast %cst_22 : f32 to vector<8x256xf32>
    %32 = arith.minimumf %31, %30 : vector<8x256xf32>
    %33 = math.log %32 : vector<8x256xf32>
    %cst_23 = arith.constant dense<0.000000e+00> : vector<16x256xf32>
    %34 = tpu.matmul %0, %33, %cst_23 {dimension_numbers = #tpu.dot_dimension_numbers<[1], [0], [0], [1], [0, 0, 1, 1], [], []>} : vector<16x8xf32>, vector<8x256xf32>, vector<16x256xf32> -> vector<16x256xf32>
    %c1_24 = arith.constant 1 : index
    %c0_25 = arith.constant 0 : index
    %c0_26 = arith.constant 0 : index
    %35 = vector.load %arg2[%c1_24, %c0_25, %c0_26] : memref<16x16x1xf32, #tpu.memory_space<vmem>>, vector<1x16x1xf32>
    %36 = vector.shape_cast %35 : vector<1x16x1xf32> to vector<16x1xf32>
    %37 = vector.broadcast %36 : vector<16x1xf32> to vector<16x256xf32>
    %38 = arith.addf %34, %37 : vector<16x256xf32>
    %cst_27 = arith.constant -3.000000e+01 : f32
    %cst_28 = arith.constant 3.000000e+01 : f32
    %39 = vector.broadcast %cst_27 : f32 to vector<16x256xf32>
    %40 = arith.maximumf %39, %38 : vector<16x256xf32>
    %41 = vector.broadcast %cst_28 : f32 to vector<16x256xf32>
    %42 = arith.minimumf %41, %40 : vector<16x256xf32>
    %43 = math.exp %42 : vector<16x256xf32>
    %cst_29 = arith.constant dense<0.000000e+00> : vector<8x256xf32>
    %44 = tpu.matmul %1, %43, %cst_29 {dimension_numbers = #tpu.dot_dimension_numbers<[1], [0], [0], [1], [0, 0, 1, 1], [], []>} : vector<8x16xf32>, vector<16x256xf32>, vector<8x256xf32> -> vector<8x256xf32>
    %cst_30 = arith.constant -1.000000e+05 : f32
    %cst_31 = arith.constant 1.000000e+05 : f32
    %45 = vector.broadcast %cst_30 : f32 to vector<8x256xf32>
    %46 = arith.maximumf %45, %44 : vector<8x256xf32>
    %47 = vector.broadcast %cst_31 : f32 to vector<8x256xf32>
    %48 = arith.minimumf %47, %46 : vector<8x256xf32>
    %c1_32 = arith.constant 1 : index
    %c0_33 = arith.constant 0 : index
    %c0_34 = arith.constant 0 : index
    %49 = vector.load %arg5[%c1_32, %c0_33, %c0_34] : memref<16x8x256xf32, #tpu.memory_space<vmem>>, vector<1x8x256xf32>
    %50 = vector.shape_cast %49 : vector<1x8x256xf32> to vector<8x256xf32>
    %51 = vector.shape_cast %48 : vector<8x256xf32> to vector<1x8x256xf32>
    tpu.vector_store %arg5[%c1_32, %c0_33, %c0_34], %51 {strides = array<i32>} : memref<16x8x256xf32, #tpu.memory_space<vmem>>, vector<1x8x256xf32>,
    %c2 = arith.constant 2 : index
    %c0_35 = arith.constant 0 : index
    %c0_36 = arith.constant 0 : index
    %52 = vector.load %arg1[%c2, %c0_35, %c0_36] : memref<16x8x256xf32, #tpu.memory_space<vmem>>, vector<1x8x256xf32>
    %53 = vector.shape_cast %52 : vector<1x8x256xf32> to vector<8x256xf32>
    %cst_37 = arith.constant 9.99999997E-7 : f32
    %cst_38 = arith.constant 6.000000e+01 : f32
    %54 = vector.broadcast %cst_37 : f32 to vector<8x256xf32>
    %55 = arith.maximumf %54, %53 : vector<8x256xf32>
    %56 = vector.broadcast %cst_38 : f32 to vector<8x256xf32>
    %57 = arith.minimumf %56, %55 : vector<8x256xf32>
    %58 = math.log %57 : vector<8x256xf32>
    %cst_39 = arith.constant dense<0.000000e+00> : vector<16x256xf32>
    %59 = tpu.matmul %0, %58, %cst_39 {dimension_numbers = #tpu.dot_dimension_numbers<[1], [0], [0], [1], [0, 0, 1, 1], [], []>} : vector<16x8xf32>, vector<8x256xf32>, vector<16x256xf32> -> vector<16x256xf32>
    %c2_40 = arith.constant 2 : index
    %c0_41 = arith.constant 0 : index
    %c0_42 = arith.constant 0 : index
    %60 = vector.load %arg2[%c2_40, %c0_41, %c0_42] : memref<16x16x1xf32, #tpu.memory_space<vmem>>, vector<1x16x1xf32>
    %61 = vector.shape_cast %60 : vector<1x16x1xf32> to vector<16x1xf32>
    %62 = vector.broadcast %61 : vector<16x1xf32> to vector<16x256xf32>
    %63 = arith.addf %59, %62 : vector<16x256xf32>
    %cst_43 = arith.constant -3.000000e+01 : f32
    %cst_44 = arith.constant 3.000000e+01 : f32
    %64 = vector.broadcast %cst_43 : f32 to vector<16x256xf32>
    %65 = arith.maximumf %64, %63 : vector<16x256xf32>
    %66 = vector.broadcast %cst_44 : f32 to vector<16x256xf32>
    %67 = arith.minimumf %66, %65 : vector<16x256xf32>
    %68 = math.exp %67 : vector<16x256xf32>
    %cst_45 = arith.constant dense<0.000000e+00> : vector<8x256xf32>
    %69 = tpu.matmul %1, %68, %cst_45 {dimension_numbers = #tpu.dot_dimension_numbers<[1], [0], [0], [1], [0, 0, 1, 1], [], []>} : vector<8x16xf32>, vector<16x256xf32>, vector<8x256xf32> -> vector<8x256xf32>
    %cst_46 = arith.constant -1.000000e+05 : f32
    %cst_47 = arith.constant 1.000000e+05 : f32
    %70 = vector.broadcast %cst_46 : f32 to vector<8x256xf32>
    %71 = arith.maximumf %70, %69 : vector<8x256xf32>
    %72 = vector.broadcast %cst_47 : f32 to vector<8x256xf32>
    %73 = arith.minimumf %72, %71 : vector<8x256xf32>
    %c2_48 = arith.constant 2 : index
    %c0_49 = arith.constant 0 : index
    %c0_50 = arith.constant 0 : index
    %74 = vector.load %arg5[%c2_48, %c0_49, %c0_50] : memref<16x8x256xf32, #tpu.memory_space<vmem>>, vector<1x8x256xf32>
    %75 = vector.shape_cast %74 : vector<1x8x256xf32> to vector<8x256xf32>
    %76 = vector.shape_cast %73 : vector<8x256xf32> to vector<1x8x256xf32>
    tpu.vector_store %arg5[%c2_48, %c0_49, %c0_50], %76 {strides = array<i32>} : memref<16x8x256xf32, #tpu.memory_space<vmem>>, vector<1x8x256xf32>,
    %c3 = arith.constant 3 : index
    %c0_51 = arith.constant 0 : index
    %c0_52 = arith.constant 0 : index
    %77 = vector.load %arg1[%c3, %c0_51, %c0_52] : memref<16x8x256xf32, #tpu.memory_space<vmem>>, vector<1x8x256xf32>
    %78 = vector.shape_cast %77 : vector<1x8x256xf32> to vector<8x256xf32>
    %cst_53 = arith.constant 9.99999997E-7 : f32
    %cst_54 = arith.constant 6.000000e+01 : f32
    %79 = vector.broadcast %cst_53 : f32 to vector<8x256xf32>
    %80 = arith.maximumf %79, %78 : vector<8x256xf32>
    %81 = vector.broadcast %cst_54 : f32 to vector<8x256xf32>
    %82 = arith.minimumf %81, %80 : vector<8x256xf32>
    %83 = math.log %82 : vector<8x256xf32>
    %cst_55 = arith.constant dense<0.000000e+00> : vector<16x256xf32>
    %84 = tpu.matmul %0, %83, %cst_55 {dimension_numbers = #tpu.dot_dimension_numbers<[1], [0], [0], [1], [0, 0, 1, 1], [], []>} : vector<16x8xf32>, vector<8x256xf32>, vector<16x256xf32> -> vector<16x256xf32>
    %c3_56 = arith.constant 3 : index
    %c0_57 = arith.constant 0 : index
    %c0_58 = arith.constant 0 : index
    %85 = vector.load %arg2[%c3_56, %c0_57, %c0_58] : memref<16x16x1xf32, #tpu.memory_space<vmem>>, vector<1x16x1xf32>
    %86 = vector.shape_cast %85 : vector<1x16x1xf32> to vector<16x1xf32>
    %87 = vector.broadcast %86 : vector<16x1xf32> to vector<16x256xf32>
    %88 = arith.addf %84, %87 : vector<16x256xf32>
    %cst_59 = arith.constant -3.000000e+01 : f32
    %cst_60 = arith.constant 3.000000e+01 : f32
    %89 = vector.broadcast %cst_59 : f32 to vector<16x256xf32>
    %90 = arith.maximumf %89, %88 : vector<16x256xf32>
    %91 = vector.broadcast %cst_60 : f32 to vector<16x256xf32>
    %92 = arith.minimumf %91, %90 : vector<16x256xf32>
    %93 = math.exp %92 : vector<16x256xf32>
    %cst_61 = arith.constant dense<0.000000e+00> : vector<8x256xf32>
    %94 = tpu.matmul %1, %93, %cst_61 {dimension_numbers = #tpu.dot_dimension_numbers<[1], [0], [0], [1], [0, 0, 1, 1], [], []>} : vector<8x16xf32>, vector<16x256xf32>, vector<8x256xf32> -> vector<8x256xf32>
    %cst_62 = arith.constant -1.000000e+05 : f32
    %cst_63 = arith.constant 1.000000e+05 : f32
    %95 = vector.broadcast %cst_62 : f32 to vector<8x256xf32>
    %96 = arith.maximumf %95, %94 : vector<8x256xf32>
    %97 = vector.broadcast %cst_63 : f32 to vector<8x256xf32>
    %98 = arith.minimumf %97, %96 : vector<8x256xf32>
    %c3_64 = arith.constant 3 : index
    %c0_65 = arith.constant 0 : index
    %c0_66 = arith.constant 0 : index
    %99 = vector.load %arg5[%c3_64, %c0_65, %c0_66] : memref<16x8x256xf32, #tpu.memory_space<vmem>>, vector<1x8x256xf32>
    %100 = vector.shape_cast %99 : vector<1x8x256xf32> to vector<8x256xf32>
    %101 = vector.shape_cast %98 : vector<8x256xf32> to vector<1x8x256xf32>
    tpu.vector_store %arg5[%c3_64, %c0_65, %c0_66], %101 {strides = array<i32>} : memref<16x8x256xf32, #tpu.memory_space<vmem>>, vector<1x8x256xf32>,
    %c4 = arith.constant 4 : index
    %c0_67 = arith.constant 0 : index
    %c0_68 = arith.constant 0 : index
    %102 = vector.load %arg1[%c4, %c0_67, %c0_68] : memref<16x8x256xf32, #tpu.memory_space<vmem>>, vector<1x8x256xf32>
    %103 = vector.shape_cast %102 : vector<1x8x256xf32> to vector<8x256xf32>
    %cst_69 = arith.constant 9.99999997E-7 : f32
    %cst_70 = arith.constant 6.000000e+01 : f32
    %104 = vector.broadcast %cst_69 : f32 to vector<8x256xf32>
    %105 = arith.maximumf %104, %103 : vector<8x256xf32>
    %106 = vector.broadcast %cst_70 : f32 to vector<8x256xf32>
    %107 = arith.minimumf %106, %105 : vector<8x256xf32>
    %108 = math.log %107 : vector<8x256xf32>
    %cst_71 = arith.constant dense<0.000000e+00> : vector<16x256xf32>
    %109 = tpu.matmul %0, %108, %cst_71 {dimension_numbers = #tpu.dot_dimension_numbers<[1], [0], [0], [1], [0, 0, 1, 1], [], []>} : vector<16x8xf32>, vector<8x256xf32>, vector<16x256xf32> -> vector<16x256xf32>
    %c4_72 = arith.constant 4 : index
    %c0_73 = arith.constant 0 : index
    %c0_74 = arith.constant 0 : index
    %110 = vector.load %arg2[%c4_72, %c0_73, %c0_74] : memref<16x16x1xf32, #tpu.memory_space<vmem>>, vector<1x16x1xf32>
    %111 = vector.shape_cast %110 : vector<1x16x1xf32> to vector<16x1xf32>
    %112 = vector.broadcast %111 : vector<16x1xf32> to vector<16x256xf32>
    %113 = arith.addf %109, %112 : vector<16x256xf32>
    %cst_75 = arith.constant -3.000000e+01 : f32
    %cst_76 = arith.constant 3.000000e+01 : f32
    %114 = vector.broadcast %cst_75 : f32 to vector<16x256xf32>
    %115 = arith.maximumf %114, %113 : vector<16x256xf32>
    %116 = vector.broadcast %cst_76 : f32 to vector<16x256xf32>
    %117 = arith.minimumf %116, %115 : vector<16x256xf32>
    %118 = math.exp %117 : vector<16x256xf32>
    %cst_77 = arith.constant dense<0.000000e+00> : vector<8x256xf32>
    %119 = tpu.matmul %1, %118, %cst_77 {dimension_numbers = #tpu.dot_dimension_numbers<[1], [0], [0], [1], [0, 0, 1, 1], [], []>} : vector<8x16xf32>, vector<16x256xf32>, vector<8x256xf32> -> vector<8x256xf32>
    %cst_78 = arith.constant -1.000000e+05 : f32
    %cst_79 = arith.constant 1.000000e+05 : f32
    %120 = vector.broadcast %cst_78 : f32 to vector<8x256xf32>
    %121 = arith.maximumf %120, %119 : vector<8x256xf32>
    %122 = vector.broadcast %cst_79 : f32 to vector<8x256xf32>
    %123 = arith.minimumf %122, %121 : vector<8x256xf32>
    %c4_80 = arith.constant 4 : index
    %c0_81 = arith.constant 0 : index
    %c0_82 = arith.constant 0 : index
    %124 = vector.load %arg5[%c4_80, %c0_81, %c0_82] : memref<16x8x256xf32, #tpu.memory_space<vmem>>, vector<1x8x256xf32>
    %125 = vector.shape_cast %124 : vector<1x8x256xf32> to vector<8x256xf32>
    %126 = vector.shape_cast %123 : vector<8x256xf32> to vector<1x8x256xf32>
    tpu.vector_store %arg5[%c4_80, %c0_81, %c0_82], %126 {strides = array<i32>} : memref<16x8x256xf32, #tpu.memory_space<vmem>>, vector<1x8x256xf32>,
    %c5 = arith.constant 5 : index
    %c0_83 = arith.constant 0 : index
    %c0_84 = arith.constant 0 : index
    %127 = vector.load %arg1[%c5, %c0_83, %c0_84] : memref<16x8x256xf32, #tpu.memory_space<vmem>>, vector<1x8x256xf32>
    %128 = vector.shape_cast %127 : vector<1x8x256xf32> to vector<8x256xf32>
    %cst_85 = arith.constant 9.99999997E-7 : f32
    %cst_86 = arith.constant 6.000000e+01 : f32
    %129 = vector.broadcast %cst_85 : f32 to vector<8x256xf32>
    %130 = arith.maximumf %129, %128 : vector<8x256xf32>
    %131 = vector.broadcast %cst_86 : f32 to vector<8x256xf32>
    %132 = arith.minimumf %131, %130 : vector<8x256xf32>
    %133 = math.log %132 : vector<8x256xf32>
    %cst_87 = arith.constant dense<0.000000e+00> : vector<16x256xf32>
    %134 = tpu.matmul %0, %133, %cst_87 {dimension_numbers = #tpu.dot_dimension_numbers<[1], [0], [0], [1], [0, 0, 1, 1], [], []>} : vector<16x8xf32>, vector<8x256xf32>, vector<16x256xf32> -> vector<16x256xf32>
    %c5_88 = arith.constant 5 : index
    %c0_89 = arith.constant 0 : index
    %c0_90 = arith.constant 0 : index
    %135 = vector.load %arg2[%c5_88, %c0_89, %c0_90] : memref<16x16x1xf32, #tpu.memory_space<vmem>>, vector<1x16x1xf32>
    %136 = vector.shape_cast %135 : vector<1x16x1xf32> to vector<16x1xf32>
    %137 = vector.broadcast %136 : vector<16x1xf32> to vector<16x256xf32>
    %138 = arith.addf %134, %137 : vector<16x256xf32>
    %cst_91 = arith.constant -3.000000e+01 : f32
    %cst_92 = arith.constant 3.000000e+01 : f32
    %139 = vector.broadcast %cst_91 : f32 to vector<16x256xf32>
    %140 = arith.maximumf %139, %138 : vector<16x256xf32>
    %141 = vector.broadcast %cst_92 : f32 to vector<16x256xf32>
    %142 = arith.minimumf %141, %140 : vector<16x256xf32>
    %143 = math.exp %142 : vector<16x256xf32>
    %cst_93 = arith.constant dense<0.000000e+00> : vector<8x256xf32>
    %144 = tpu.matmul %1, %143, %cst_93 {dimension_numbers = #tpu.dot_dimension_numbers<[1], [0], [0], [1], [0, 0, 1, 1], [], []>} : vector<8x16xf32>, vector<16x256xf32>, vector<8x256xf32> -> vector<8x256xf32>
    %cst_94 = arith.constant -1.000000e+05 : f32
    %cst_95 = arith.constant 1.000000e+05 : f32
    %145 = vector.broadcast %cst_94 : f32 to vector<8x256xf32>
    %146 = arith.maximumf %145, %144 : vector<8x256xf32>
    %147 = vector.broadcast %cst_95 : f32 to vector<8x256xf32>
    %148 = arith.minimumf %147, %146 : vector<8x256xf32>
    %c5_96 = arith.constant 5 : index
    %c0_97 = arith.constant 0 : index
    %c0_98 = arith.constant 0 : index
    %149 = vector.load %arg5[%c5_96, %c0_97, %c0_98] : memref<16x8x256xf32, #tpu.memory_space<vmem>>, vector<1x8x256xf32>
    %150 = vector.shape_cast %149 : vector<1x8x256xf32> to vector<8x256xf32>
    %151 = vector.shape_cast %148 : vector<8x256xf32> to vector<1x8x256xf32>
    tpu.vector_store %arg5[%c5_96, %c0_97, %c0_98], %151 {strides = array<i32>} : memref<16x8x256xf32, #tpu.memory_space<vmem>>, vector<1x8x256xf32>,
    %c6 = arith.constant 6 : index
    %c0_99 = arith.constant 0 : index
    %c0_100 = arith.constant 0 : index
    %152 = vector.load %arg1[%c6, %c0_99, %c0_100] : memref<16x8x256xf32, #tpu.memory_space<vmem>>, vector<1x8x256xf32>
    %153 = vector.shape_cast %152 : vector<1x8x256xf32> to vector<8x256xf32>
    %cst_101 = arith.constant 9.99999997E-7 : f32
    %cst_102 = arith.constant 6.000000e+01 : f32
    %154 = vector.broadcast %cst_101 : f32 to vector<8x256xf32>
    %155 = arith.maximumf %154, %153 : vector<8x256xf32>
    %156 = vector.broadcast %cst_102 : f32 to vector<8x256xf32>
    %157 = arith.minimumf %156, %155 : vector<8x256xf32>
    %158 = math.log %157 : vector<8x256xf32>
    %cst_103 = arith.constant dense<0.000000e+00> : vector<16x256xf32>
    %159 = tpu.matmul %0, %158, %cst_103 {dimension_numbers = #tpu.dot_dimension_numbers<[1], [0], [0], [1], [0, 0, 1, 1], [], []>} : vector<16x8xf32>, vector<8x256xf32>, vector<16x256xf32> -> vector<16x256xf32>
    %c6_104 = arith.constant 6 : index
    %c0_105 = arith.constant 0 : index
    %c0_106 = arith.constant 0 : index
    %160 = vector.load %arg2[%c6_104, %c0_105, %c0_106] : memref<16x16x1xf32, #tpu.memory_space<vmem>>, vector<1x16x1xf32>
    %161 = vector.shape_cast %160 : vector<1x16x1xf32> to vector<16x1xf32>
    %162 = vector.broadcast %161 : vector<16x1xf32> to vector<16x256xf32>
    %163 = arith.addf %159, %162 : vector<16x256xf32>
    %cst_107 = arith.constant -3.000000e+01 : f32
    %cst_108 = arith.constant 3.000000e+01 : f32
    %164 = vector.broadcast %cst_107 : f32 to vector<16x256xf32>
    %165 = arith.maximumf %164, %163 : vector<16x256xf32>
    %166 = vector.broadcast %cst_108 : f32 to vector<16x256xf32>
    %167 = arith.minimumf %166, %165 : vector<16x256xf32>
    %168 = math.exp %167 : vector<16x256xf32>
    %cst_109 = arith.constant dense<0.000000e+00> : vector<8x256xf32>
    %169 = tpu.matmul %1, %168, %cst_109 {dimension_numbers = #tpu.dot_dimension_numbers<[1], [0], [0], [1], [0, 0, 1, 1], [], []>} : vector<8x16xf32>, vector<16x256xf32>, vector<8x256xf32> -> vector<8x256xf32>
    %cst_110 = arith.constant -1.000000e+05 : f32
    %cst_111 = arith.constant 1.000000e+05 : f32
    %170 = vector.broadcast %cst_110 : f32 to vector<8x256xf32>
    %171 = arith.maximumf %170, %169 : vector<8x256xf32>
    %172 = vector.broadcast %cst_111 : f32 to vector<8x256xf32>
    %173 = arith.minimumf %172, %171 : vector<8x256xf32>
    %c6_112 = arith.constant 6 : index
    %c0_113 = arith.constant 0 : index
    %c0_114 = arith.constant 0 : index
    %174 = vector.load %arg5[%c6_112, %c0_113, %c0_114] : memref<16x8x256xf32, #tpu.memory_space<vmem>>, vector<1x8x256xf32>
    %175 = vector.shape_cast %174 : vector<1x8x256xf32> to vector<8x256xf32>
    %176 = vector.shape_cast %173 : vector<8x256xf32> to vector<1x8x256xf32>
    tpu.vector_store %arg5[%c6_112, %c0_113, %c0_114], %176 {strides = array<i32>} : memref<16x8x256xf32, #tpu.memory_space<vmem>>, vector<1x8x256xf32>,
    %c7 = arith.constant 7 : index
    %c0_115 = arith.constant 0 : index
    %c0_116 = arith.constant 0 : index
    %177 = vector.load %arg1[%c7, %c0_115, %c0_116] : memref<16x8x256xf32, #tpu.memory_space<vmem>>, vector<1x8x256xf32>
    %178 = vector.shape_cast %177 : vector<1x8x256xf32> to vector<8x256xf32>
    %cst_117 = arith.constant 9.99999997E-7 : f32
    %cst_118 = arith.constant 6.000000e+01 : f32
    %179 = vector.broadcast %cst_117 : f32 to vector<8x256xf32>
    %180 = arith.maximumf %179, %178 : vector<8x256xf32>
    %181 = vector.broadcast %cst_118 : f32 to vector<8x256xf32>
    %182 = arith.minimumf %181, %180 : vector<8x256xf32>
    %183 = math.log %182 : vector<8x256xf32>
    %cst_119 = arith.constant dense<0.000000e+00> : vector<16x256xf32>
    %184 = tpu.matmul %0, %183, %cst_119 {dimension_numbers = #tpu.dot_dimension_numbers<[1], [0], [0], [1], [0, 0, 1, 1], [], []>} : vector<16x8xf32>, vector<8x256xf32>, vector<16x256xf32> -> vector<16x256xf32>
    %c7_120 = arith.constant 7 : index
    %c0_121 = arith.constant 0 : index
    %c0_122 = arith.constant 0 : index
    %185 = vector.load %arg2[%c7_120, %c0_121, %c0_122] : memref<16x16x1xf32, #tpu.memory_space<vmem>>, vector<1x16x1xf32>
    %186 = vector.shape_cast %185 : vector<1x16x1xf32> to vector<16x1xf32>
    %187 = vector.broadcast %186 : vector<16x1xf32> to vector<16x256xf32>
    %188 = arith.addf %184, %187 : vector<16x256xf32>
    %cst_123 = arith.constant -3.000000e+01 : f32
    %cst_124 = arith.constant 3.000000e+01 : f32
    %189 = vector.broadcast %cst_123 : f32 to vector<16x256xf32>
    %190 = arith.maximumf %189, %188 : vector<16x256xf32>
    %191 = vector.broadcast %cst_124 : f32 to vector<16x256xf32>
    %192 = arith.minimumf %191, %190 : vector<16x256xf32>
    %193 = math.exp %192 : vector<16x256xf32>
    %cst_125 = arith.constant dense<0.000000e+00> : vector<8x256xf32>
    %194 = tpu.matmul %1, %193, %cst_125 {dimension_numbers = #tpu.dot_dimension_numbers<[1], [0], [0], [1], [0, 0, 1, 1], [], []>} : vector<8x16xf32>, vector<16x256xf32>, vector<8x256xf32> -> vector<8x256xf32>
    %cst_126 = arith.constant -1.000000e+05 : f32
    %cst_127 = arith.constant 1.000000e+05 : f32
    %195 = vector.broadcast %cst_126 : f32 to vector<8x256xf32>
    %196 = arith.maximumf %195, %194 : vector<8x256xf32>
    %197 = vector.broadcast %cst_127 : f32 to vector<8x256xf32>
    %198 = arith.minimumf %197, %196 : vector<8x256xf32>
    %c7_128 = arith.constant 7 : index
    %c0_129 = arith.constant 0 : index
    %c0_130 = arith.constant 0 : index
    %199 = vector.load %arg5[%c7_128, %c0_129, %c0_130] : memref<16x8x256xf32, #tpu.memory_space<vmem>>, vector<1x8x256xf32>
    %200 = vector.shape_cast %199 : vector<1x8x256xf32> to vector<8x256xf32>
    %201 = vector.shape_cast %198 : vector<8x256xf32> to vector<1x8x256xf32>
    tpu.vector_store %arg5[%c7_128, %c0_129, %c0_130], %201 {strides = array<i32>} : memref<16x8x256xf32, #tpu.memory_space<vmem>>, vector<1x8x256xf32>,
    %c8 = arith.constant 8 : index
    %c0_131 = arith.constant 0 : index
    %c0_132 = arith.constant 0 : index
    %202 = vector.load %arg1[%c8, %c0_131, %c0_132] : memref<16x8x256xf32, #tpu.memory_space<vmem>>, vector<1x8x256xf32>
    %203 = vector.shape_cast %202 : vector<1x8x256xf32> to vector<8x256xf32>
    %cst_133 = arith.constant 9.99999997E-7 : f32
    %cst_134 = arith.constant 6.000000e+01 : f32
    %204 = vector.broadcast %cst_133 : f32 to vector<8x256xf32>
    %205 = arith.maximumf %204, %203 : vector<8x256xf32>
    %206 = vector.broadcast %cst_134 : f32 to vector<8x256xf32>
    %207 = arith.minimumf %206, %205 : vector<8x256xf32>
    %208 = math.log %207 : vector<8x256xf32>
    %cst_135 = arith.constant dense<0.000000e+00> : vector<16x256xf32>
    %209 = tpu.matmul %0, %208, %cst_135 {dimension_numbers = #tpu.dot_dimension_numbers<[1], [0], [0], [1], [0, 0, 1, 1], [], []>} : vector<16x8xf32>, vector<8x256xf32>, vector<16x256xf32> -> vector<16x256xf32>
    %c8_136 = arith.constant 8 : index
    %c0_137 = arith.constant 0 : index
    %c0_138 = arith.constant 0 : index
    %210 = vector.load %arg2[%c8_136, %c0_137, %c0_138] : memref<16x16x1xf32, #tpu.memory_space<vmem>>, vector<1x16x1xf32>
    %211 = vector.shape_cast %210 : vector<1x16x1xf32> to vector<16x1xf32>
    %212 = vector.broadcast %211 : vector<16x1xf32> to vector<16x256xf32>
    %213 = arith.addf %209, %212 : vector<16x256xf32>
    %cst_139 = arith.constant -3.000000e+01 : f32
    %cst_140 = arith.constant 3.000000e+01 : f32
    %214 = vector.broadcast %cst_139 : f32 to vector<16x256xf32>
    %215 = arith.maximumf %214, %213 : vector<16x256xf32>
    %216 = vector.broadcast %cst_140 : f32 to vector<16x256xf32>
    %217 = arith.minimumf %216, %215 : vector<16x256xf32>
    %218 = math.exp %217 : vector<16x256xf32>
    %cst_141 = arith.constant dense<0.000000e+00> : vector<8x256xf32>
    %219 = tpu.matmul %1, %218, %cst_141 {dimension_numbers = #tpu.dot_dimension_numbers<[1], [0], [0], [1], [0, 0, 1, 1], [], []>} : vector<8x16xf32>, vector<16x256xf32>, vector<8x256xf32> -> vector<8x256xf32>
    %cst_142 = arith.constant -1.000000e+05 : f32
    %cst_143 = arith.constant 1.000000e+05 : f32
    %220 = vector.broadcast %cst_142 : f32 to vector<8x256xf32>
    %221 = arith.maximumf %220, %219 : vector<8x256xf32>
    %222 = vector.broadcast %cst_143 : f32 to vector<8x256xf32>
    %223 = arith.minimumf %222, %221 : vector<8x256xf32>
    %c8_144 = arith.constant 8 : index
    %c0_145 = arith.constant 0 : index
    %c0_146 = arith.constant 0 : index
    %224 = vector.load %arg5[%c8_144, %c0_145, %c0_146] : memref<16x8x256xf32, #tpu.memory_space<vmem>>, vector<1x8x256xf32>
    %225 = vector.shape_cast %224 : vector<1x8x256xf32> to vector<8x256xf32>
    %226 = vector.shape_cast %223 : vector<8x256xf32> to vector<1x8x256xf32>
    tpu.vector_store %arg5[%c8_144, %c0_145, %c0_146], %226 {strides = array<i32>} : memref<16x8x256xf32, #tpu.memory_space<vmem>>, vector<1x8x256xf32>,
    %c9 = arith.constant 9 : index
    %c0_147 = arith.constant 0 : index
    %c0_148 = arith.constant 0 : index
    %227 = vector.load %arg1[%c9, %c0_147, %c0_148] : memref<16x8x256xf32, #tpu.memory_space<vmem>>, vector<1x8x256xf32>
    %228 = vector.shape_cast %227 : vector<1x8x256xf32> to vector<8x256xf32>
    %cst_149 = arith.constant 9.99999997E-7 : f32
    %cst_150 = arith.constant 6.000000e+01 : f32
    %229 = vector.broadcast %cst_149 : f32 to vector<8x256xf32>
    %230 = arith.maximumf %229, %228 : vector<8x256xf32>
    %231 = vector.broadcast %cst_150 : f32 to vector<8x256xf32>
    %232 = arith.minimumf %231, %230 : vector<8x256xf32>
    %233 = math.log %232 : vector<8x256xf32>
    %cst_151 = arith.constant dense<0.000000e+00> : vector<16x256xf32>
    %234 = tpu.matmul %0, %233, %cst_151 {dimension_numbers = #tpu.dot_dimension_numbers<[1], [0], [0], [1], [0, 0, 1, 1], [], []>} : vector<16x8xf32>, vector<8x256xf32>, vector<16x256xf32> -> vector<16x256xf32>
    %c9_152 = arith.constant 9 : index
    %c0_153 = arith.constant 0 : index
    %c0_154 = arith.constant 0 : index
    %235 = vector.load %arg2[%c9_152, %c0_153, %c0_154] : memref<16x16x1xf32, #tpu.memory_space<vmem>>, vector<1x16x1xf32>
    %236 = vector.shape_cast %235 : vector<1x16x1xf32> to vector<16x1xf32>
    %237 = vector.broadcast %236 : vector<16x1xf32> to vector<16x256xf32>
    %238 = arith.addf %234, %237 : vector<16x256xf32>
    %cst_155 = arith.constant -3.000000e+01 : f32
    %cst_156 = arith.constant 3.000000e+01 : f32
    %239 = vector.broadcast %cst_155 : f32 to vector<16x256xf32>
    %240 = arith.maximumf %239, %238 : vector<16x256xf32>
    %241 = vector.broadcast %cst_156 : f32 to vector<16x256xf32>
    %242 = arith.minimumf %241, %240 : vector<16x256xf32>
    %243 = math.exp %242 : vector<16x256xf32>
    %cst_157 = arith.constant dense<0.000000e+00> : vector<8x256xf32>
    %244 = tpu.matmul %1, %243, %cst_157 {dimension_numbers = #tpu.dot_dimension_numbers<[1], [0], [0], [1], [0, 0, 1, 1], [], []>} : vector<8x16xf32>, vector<16x256xf32>, vector<8x256xf32> -> vector<8x256xf32>
    %cst_158 = arith.constant -1.000000e+05 : f32
    %cst_159 = arith.constant 1.000000e+05 : f32
    %245 = vector.broadcast %cst_158 : f32 to vector<8x256xf32>
    %246 = arith.maximumf %245, %244 : vector<8x256xf32>
    %247 = vector.broadcast %cst_159 : f32 to vector<8x256xf32>
    %248 = arith.minimumf %247, %246 : vector<8x256xf32>
    %c9_160 = arith.constant 9 : index
    %c0_161 = arith.constant 0 : index
    %c0_162 = arith.constant 0 : index
    %249 = vector.load %arg5[%c9_160, %c0_161, %c0_162] : memref<16x8x256xf32, #tpu.memory_space<vmem>>, vector<1x8x256xf32>
    %250 = vector.shape_cast %249 : vector<1x8x256xf32> to vector<8x256xf32>
    %251 = vector.shape_cast %248 : vector<8x256xf32> to vector<1x8x256xf32>
    tpu.vector_store %arg5[%c9_160, %c0_161, %c0_162], %251 {strides = array<i32>} : memref<16x8x256xf32, #tpu.memory_space<vmem>>, vector<1x8x256xf32>,
    %c10 = arith.constant 10 : index
    %c0_163 = arith.constant 0 : index
    %c0_164 = arith.constant 0 : index
    %252 = vector.load %arg1[%c10, %c0_163, %c0_164] : memref<16x8x256xf32, #tpu.memory_space<vmem>>, vector<1x8x256xf32>
    %253 = vector.shape_cast %252 : vector<1x8x256xf32> to vector<8x256xf32>
    %cst_165 = arith.constant 9.99999997E-7 : f32
    %cst_166 = arith.constant 6.000000e+01 : f32
    %254 = vector.broadcast %cst_165 : f32 to vector<8x256xf32>
    %255 = arith.maximumf %254, %253 : vector<8x256xf32>
    %256 = vector.broadcast %cst_166 : f32 to vector<8x256xf32>
    %257 = arith.minimumf %256, %255 : vector<8x256xf32>
    %258 = math.log %257 : vector<8x256xf32>
    %cst_167 = arith.constant dense<0.000000e+00> : vector<16x256xf32>
    %259 = tpu.matmul %0, %258, %cst_167 {dimension_numbers = #tpu.dot_dimension_numbers<[1], [0], [0], [1], [0, 0, 1, 1], [], []>} : vector<16x8xf32>, vector<8x256xf32>, vector<16x256xf32> -> vector<16x256xf32>
    %c10_168 = arith.constant 10 : index
    %c0_169 = arith.constant 0 : index
    %c0_170 = arith.constant 0 : index
    %260 = vector.load %arg2[%c10_168, %c0_169, %c0_170] : memref<16x16x1xf32, #tpu.memory_space<vmem>>, vector<1x16x1xf32>
    %261 = vector.shape_cast %260 : vector<1x16x1xf32> to vector<16x1xf32>
    %262 = vector.broadcast %261 : vector<16x1xf32> to vector<16x256xf32>
    %263 = arith.addf %259, %262 : vector<16x256xf32>
    %cst_171 = arith.constant -3.000000e+01 : f32
    %cst_172 = arith.constant 3.000000e+01 : f32
    %264 = vector.broadcast %cst_171 : f32 to vector<16x256xf32>
    %265 = arith.maximumf %264, %263 : vector<16x256xf32>
    %266 = vector.broadcast %cst_172 : f32 to vector<16x256xf32>
    %267 = arith.minimumf %266, %265 : vector<16x256xf32>
    %268 = math.exp %267 : vector<16x256xf32>
    %cst_173 = arith.constant dense<0.000000e+00> : vector<8x256xf32>
    %269 = tpu.matmul %1, %268, %cst_173 {dimension_numbers = #tpu.dot_dimension_numbers<[1], [0], [0], [1], [0, 0, 1, 1], [], []>} : vector<8x16xf32>, vector<16x256xf32>, vector<8x256xf32> -> vector<8x256xf32>
    %cst_174 = arith.constant -1.000000e+05 : f32
    %cst_175 = arith.constant 1.000000e+05 : f32
    %270 = vector.broadcast %cst_174 : f32 to vector<8x256xf32>
    %271 = arith.maximumf %270, %269 : vector<8x256xf32>
    %272 = vector.broadcast %cst_175 : f32 to vector<8x256xf32>
    %273 = arith.minimumf %272, %271 : vector<8x256xf32>
    %c10_176 = arith.constant 10 : index
    %c0_177 = arith.constant 0 : index
    %c0_178 = arith.constant 0 : index
    %274 = vector.load %arg5[%c10_176, %c0_177, %c0_178] : memref<16x8x256xf32, #tpu.memory_space<vmem>>, vector<1x8x256xf32>
    %275 = vector.shape_cast %274 : vector<1x8x256xf32> to vector<8x256xf32>
    %276 = vector.shape_cast %273 : vector<8x256xf32> to vector<1x8x256xf32>
    tpu.vector_store %arg5[%c10_176, %c0_177, %c0_178], %276 {strides = array<i32>} : memref<16x8x256xf32, #tpu.memory_space<vmem>>, vector<1x8x256xf32>,
    %c11 = arith.constant 11 : index
    %c0_179 = arith.constant 0 : index
    %c0_180 = arith.constant 0 : index
    %277 = vector.load %arg1[%c11, %c0_179, %c0_180] : memref<16x8x256xf32, #tpu.memory_space<vmem>>, vector<1x8x256xf32>
    %278 = vector.shape_cast %277 : vector<1x8x256xf32> to vector<8x256xf32>
    %cst_181 = arith.constant 9.99999997E-7 : f32
    %cst_182 = arith.constant 6.000000e+01 : f32
    %279 = vector.broadcast %cst_181 : f32 to vector<8x256xf32>
    %280 = arith.maximumf %279, %278 : vector<8x256xf32>
    %281 = vector.broadcast %cst_182 : f32 to vector<8x256xf32>
    %282 = arith.minimumf %281, %280 : vector<8x256xf32>
    %283 = math.log %282 : vector<8x256xf32>
    %cst_183 = arith.constant dense<0.000000e+00> : vector<16x256xf32>
    %284 = tpu.matmul %0, %283, %cst_183 {dimension_numbers = #tpu.dot_dimension_numbers<[1], [0], [0], [1], [0, 0, 1, 1], [], []>} : vector<16x8xf32>, vector<8x256xf32>, vector<16x256xf32> -> vector<16x256xf32>
    %c11_184 = arith.constant 11 : index
    %c0_185 = arith.constant 0 : index
    %c0_186 = arith.constant 0 : index
    %285 = vector.load %arg2[%c11_184, %c0_185, %c0_186] : memref<16x16x1xf32, #tpu.memory_space<vmem>>, vector<1x16x1xf32>
    %286 = vector.shape_cast %285 : vector<1x16x1xf32> to vector<16x1xf32>
    %287 = vector.broadcast %286 : vector<16x1xf32> to vector<16x256xf32>
    %288 = arith.addf %284, %287 : vector<16x256xf32>
    %cst_187 = arith.constant -3.000000e+01 : f32
    %cst_188 = arith.constant 3.000000e+01 : f32
    %289 = vector.broadcast %cst_187 : f32 to vector<16x256xf32>
    %290 = arith.maximumf %289, %288 : vector<16x256xf32>
    %291 = vector.broadcast %cst_188 : f32 to vector<16x256xf32>
    %292 = arith.minimumf %291, %290 : vector<16x256xf32>
    %293 = math.exp %292 : vector<16x256xf32>
    %cst_189 = arith.constant dense<0.000000e+00> : vector<8x256xf32>
    %294 = tpu.matmul %1, %293, %cst_189 {dimension_numbers = #tpu.dot_dimension_numbers<[1], [0], [0], [1], [0, 0, 1, 1], [], []>} : vector<8x16xf32>, vector<16x256xf32>, vector<8x256xf32> -> vector<8x256xf32>
    %cst_190 = arith.constant -1.000000e+05 : f32
    %cst_191 = arith.constant 1.000000e+05 : f32
    %295 = vector.broadcast %cst_190 : f32 to vector<8x256xf32>
    %296 = arith.maximumf %295, %294 : vector<8x256xf32>
    %297 = vector.broadcast %cst_191 : f32 to vector<8x256xf32>
    %298 = arith.minimumf %297, %296 : vector<8x256xf32>
    %c11_192 = arith.constant 11 : index
    %c0_193 = arith.constant 0 : index
    %c0_194 = arith.constant 0 : index
    %299 = vector.load %arg5[%c11_192, %c0_193, %c0_194] : memref<16x8x256xf32, #tpu.memory_space<vmem>>, vector<1x8x256xf32>
    %300 = vector.shape_cast %299 : vector<1x8x256xf32> to vector<8x256xf32>
    %301 = vector.shape_cast %298 : vector<8x256xf32> to vector<1x8x256xf32>
    tpu.vector_store %arg5[%c11_192, %c0_193, %c0_194], %301 {strides = array<i32>} : memref<16x8x256xf32, #tpu.memory_space<vmem>>, vector<1x8x256xf32>,
    %c12 = arith.constant 12 : index
    %c0_195 = arith.constant 0 : index
    %c0_196 = arith.constant 0 : index
    %302 = vector.load %arg1[%c12, %c0_195, %c0_196] : memref<16x8x256xf32, #tpu.memory_space<vmem>>, vector<1x8x256xf32>
    %303 = vector.shape_cast %302 : vector<1x8x256xf32> to vector<8x256xf32>
    %cst_197 = arith.constant 9.99999997E-7 : f32
    %cst_198 = arith.constant 6.000000e+01 : f32
    %304 = vector.broadcast %cst_197 : f32 to vector<8x256xf32>
    %305 = arith.maximumf %304, %303 : vector<8x256xf32>
    %306 = vector.broadcast %cst_198 : f32 to vector<8x256xf32>
    %307 = arith.minimumf %306, %305 : vector<8x256xf32>
    %308 = math.log %307 : vector<8x256xf32>
    %cst_199 = arith.constant dense<0.000000e+00> : vector<16x256xf32>
    %309 = tpu.matmul %0, %308, %cst_199 {dimension_numbers = #tpu.dot_dimension_numbers<[1], [0], [0], [1], [0, 0, 1, 1], [], []>} : vector<16x8xf32>, vector<8x256xf32>, vector<16x256xf32> -> vector<16x256xf32>
    %c12_200 = arith.constant 12 : index
    %c0_201 = arith.constant 0 : index
    %c0_202 = arith.constant 0 : index
    %310 = vector.load %arg2[%c12_200, %c0_201, %c0_202] : memref<16x16x1xf32, #tpu.memory_space<vmem>>, vector<1x16x1xf32>
    %311 = vector.shape_cast %310 : vector<1x16x1xf32> to vector<16x1xf32>
    %312 = vector.broadcast %311 : vector<16x1xf32> to vector<16x256xf32>
    %313 = arith.addf %309, %312 : vector<16x256xf32>
    %cst_203 = arith.constant -3.000000e+01 : f32
    %cst_204 = arith.constant 3.000000e+01 : f32
    %314 = vector.broadcast %cst_203 : f32 to vector<16x256xf32>
    %315 = arith.maximumf %314, %313 : vector<16x256xf32>
    %316 = vector.broadcast %cst_204 : f32 to vector<16x256xf32>
    %317 = arith.minimumf %316, %315 : vector<16x256xf32>
    %318 = math.exp %317 : vector<16x256xf32>
    %cst_205 = arith.constant dense<0.000000e+00> : vector<8x256xf32>
    %319 = tpu.matmul %1, %318, %cst_205 {dimension_numbers = #tpu.dot_dimension_numbers<[1], [0], [0], [1], [0, 0, 1, 1], [], []>} : vector<8x16xf32>, vector<16x256xf32>, vector<8x256xf32> -> vector<8x256xf32>
    %cst_206 = arith.constant -1.000000e+05 : f32
    %cst_207 = arith.constant 1.000000e+05 : f32
    %320 = vector.broadcast %cst_206 : f32 to vector<8x256xf32>
    %321 = arith.maximumf %320, %319 : vector<8x256xf32>
    %322 = vector.broadcast %cst_207 : f32 to vector<8x256xf32>
    %323 = arith.minimumf %322, %321 : vector<8x256xf32>
    %c12_208 = arith.constant 12 : index
    %c0_209 = arith.constant 0 : index
    %c0_210 = arith.constant 0 : index
    %324 = vector.load %arg5[%c12_208, %c0_209, %c0_210] : memref<16x8x256xf32, #tpu.memory_space<vmem>>, vector<1x8x256xf32>
    %325 = vector.shape_cast %324 : vector<1x8x256xf32> to vector<8x256xf32>
    %326 = vector.shape_cast %323 : vector<8x256xf32> to vector<1x8x256xf32>
    tpu.vector_store %arg5[%c12_208, %c0_209, %c0_210], %326 {strides = array<i32>} : memref<16x8x256xf32, #tpu.memory_space<vmem>>, vector<1x8x256xf32>,
    %c13 = arith.constant 13 : index
    %c0_211 = arith.constant 0 : index
    %c0_212 = arith.constant 0 : index
    %327 = vector.load %arg1[%c13, %c0_211, %c0_212] : memref<16x8x256xf32, #tpu.memory_space<vmem>>, vector<1x8x256xf32>
    %328 = vector.shape_cast %327 : vector<1x8x256xf32> to vector<8x256xf32>
    %cst_213 = arith.constant 9.99999997E-7 : f32
    %cst_214 = arith.constant 6.000000e+01 : f32
    %329 = vector.broadcast %cst_213 : f32 to vector<8x256xf32>
    %330 = arith.maximumf %329, %328 : vector<8x256xf32>
    %331 = vector.broadcast %cst_214 : f32 to vector<8x256xf32>
    %332 = arith.minimumf %331, %330 : vector<8x256xf32>
    %333 = math.log %332 : vector<8x256xf32>
    %cst_215 = arith.constant dense<0.000000e+00> : vector<16x256xf32>
    %334 = tpu.matmul %0, %333, %cst_215 {dimension_numbers = #tpu.dot_dimension_numbers<[1], [0], [0], [1], [0, 0, 1, 1], [], []>} : vector<16x8xf32>, vector<8x256xf32>, vector<16x256xf32> -> vector<16x256xf32>
    %c13_216 = arith.constant 13 : index
    %c0_217 = arith.constant 0 : index
    %c0_218 = arith.constant 0 : index
    %335 = vector.load %arg2[%c13_216, %c0_217, %c0_218] : memref<16x16x1xf32, #tpu.memory_space<vmem>>, vector<1x16x1xf32>
    %336 = vector.shape_cast %335 : vector<1x16x1xf32> to vector<16x1xf32>
    %337 = vector.broadcast %336 : vector<16x1xf32> to vector<16x256xf32>
    %338 = arith.addf %334, %337 : vector<16x256xf32>
    %cst_219 = arith.constant -3.000000e+01 : f32
    %cst_220 = arith.constant 3.000000e+01 : f32
    %339 = vector.broadcast %cst_219 : f32 to vector<16x256xf32>
    %340 = arith.maximumf %339, %338 : vector<16x256xf32>
    %341 = vector.broadcast %cst_220 : f32 to vector<16x256xf32>
    %342 = arith.minimumf %341, %340 : vector<16x256xf32>
    %343 = math.exp %342 : vector<16x256xf32>
    %cst_221 = arith.constant dense<0.000000e+00> : vector<8x256xf32>
    %344 = tpu.matmul %1, %343, %cst_221 {dimension_numbers = #tpu.dot_dimension_numbers<[1], [0], [0], [1], [0, 0, 1, 1], [], []>} : vector<8x16xf32>, vector<16x256xf32>, vector<8x256xf32> -> vector<8x256xf32>
    %cst_222 = arith.constant -1.000000e+05 : f32
    %cst_223 = arith.constant 1.000000e+05 : f32
    %345 = vector.broadcast %cst_222 : f32 to vector<8x256xf32>
    %346 = arith.maximumf %345, %344 : vector<8x256xf32>
    %347 = vector.broadcast %cst_223 : f32 to vector<8x256xf32>
    %348 = arith.minimumf %347, %346 : vector<8x256xf32>
    %c13_224 = arith.constant 13 : index
    %c0_225 = arith.constant 0 : index
    %c0_226 = arith.constant 0 : index
    %349 = vector.load %arg5[%c13_224, %c0_225, %c0_226] : memref<16x8x256xf32, #tpu.memory_space<vmem>>, vector<1x8x256xf32>
    %350 = vector.shape_cast %349 : vector<1x8x256xf32> to vector<8x256xf32>
    %351 = vector.shape_cast %348 : vector<8x256xf32> to vector<1x8x256xf32>
    tpu.vector_store %arg5[%c13_224, %c0_225, %c0_226], %351 {strides = array<i32>} : memref<16x8x256xf32, #tpu.memory_space<vmem>>, vector<1x8x256xf32>,
    %c14 = arith.constant 14 : index
    %c0_227 = arith.constant 0 : index
    %c0_228 = arith.constant 0 : index
    %352 = vector.load %arg1[%c14, %c0_227, %c0_228] : memref<16x8x256xf32, #tpu.memory_space<vmem>>, vector<1x8x256xf32>
    %353 = vector.shape_cast %352 : vector<1x8x256xf32> to vector<8x256xf32>
    %cst_229 = arith.constant 9.99999997E-7 : f32
    %cst_230 = arith.constant 6.000000e+01 : f32
    %354 = vector.broadcast %cst_229 : f32 to vector<8x256xf32>
    %355 = arith.maximumf %354, %353 : vector<8x256xf32>
    %356 = vector.broadcast %cst_230 : f32 to vector<8x256xf32>
    %357 = arith.minimumf %356, %355 : vector<8x256xf32>
    %358 = math.log %357 : vector<8x256xf32>
    %cst_231 = arith.constant dense<0.000000e+00> : vector<16x256xf32>
    %359 = tpu.matmul %0, %358, %cst_231 {dimension_numbers = #tpu.dot_dimension_numbers<[1], [0], [0], [1], [0, 0, 1, 1], [], []>} : vector<16x8xf32>, vector<8x256xf32>, vector<16x256xf32> -> vector<16x256xf32>
    %c14_232 = arith.constant 14 : index
    %c0_233 = arith.constant 0 : index
    %c0_234 = arith.constant 0 : index
    %360 = vector.load %arg2[%c14_232, %c0_233, %c0_234] : memref<16x16x1xf32, #tpu.memory_space<vmem>>, vector<1x16x1xf32>
    %361 = vector.shape_cast %360 : vector<1x16x1xf32> to vector<16x1xf32>
    %362 = vector.broadcast %361 : vector<16x1xf32> to vector<16x256xf32>
    %363 = arith.addf %359, %362 : vector<16x256xf32>
    %cst_235 = arith.constant -3.000000e+01 : f32
    %cst_236 = arith.constant 3.000000e+01 : f32
    %364 = vector.broadcast %cst_235 : f32 to vector<16x256xf32>
    %365 = arith.maximumf %364, %363 : vector<16x256xf32>
    %366 = vector.broadcast %cst_236 : f32 to vector<16x256xf32>
    %367 = arith.minimumf %366, %365 : vector<16x256xf32>
    %368 = math.exp %367 : vector<16x256xf32>
    %cst_237 = arith.constant dense<0.000000e+00> : vector<8x256xf32>
    %369 = tpu.matmul %1, %368, %cst_237 {dimension_numbers = #tpu.dot_dimension_numbers<[1], [0], [0], [1], [0, 0, 1, 1], [], []>} : vector<8x16xf32>, vector<16x256xf32>, vector<8x256xf32> -> vector<8x256xf32>
    %cst_238 = arith.constant -1.000000e+05 : f32
    %cst_239 = arith.constant 1.000000e+05 : f32
    %370 = vector.broadcast %cst_238 : f32 to vector<8x256xf32>
    %371 = arith.maximumf %370, %369 : vector<8x256xf32>
    %372 = vector.broadcast %cst_239 : f32 to vector<8x256xf32>
    %373 = arith.minimumf %372, %371 : vector<8x256xf32>
    %c14_240 = arith.constant 14 : index
    %c0_241 = arith.constant 0 : index
    %c0_242 = arith.constant 0 : index
    %374 = vector.load %arg5[%c14_240, %c0_241, %c0_242] : memref<16x8x256xf32, #tpu.memory_space<vmem>>, vector<1x8x256xf32>
    %375 = vector.shape_cast %374 : vector<1x8x256xf32> to vector<8x256xf32>
    %376 = vector.shape_cast %373 : vector<8x256xf32> to vector<1x8x256xf32>
    tpu.vector_store %arg5[%c14_240, %c0_241, %c0_242], %376 {strides = array<i32>} : memref<16x8x256xf32, #tpu.memory_space<vmem>>, vector<1x8x256xf32>,
    %c15 = arith.constant 15 : index
    %c0_243 = arith.constant 0 : index
    %c0_244 = arith.constant 0 : index
    %377 = vector.load %arg1[%c15, %c0_243, %c0_244] : memref<16x8x256xf32, #tpu.memory_space<vmem>>, vector<1x8x256xf32>
    %378 = vector.shape_cast %377 : vector<1x8x256xf32> to vector<8x256xf32>
    %cst_245 = arith.constant 9.99999997E-7 : f32
    %cst_246 = arith.constant 6.000000e+01 : f32
    %379 = vector.broadcast %cst_245 : f32 to vector<8x256xf32>
    %380 = arith.maximumf %379, %378 : vector<8x256xf32>
    %381 = vector.broadcast %cst_246 : f32 to vector<8x256xf32>
    %382 = arith.minimumf %381, %380 : vector<8x256xf32>
    %383 = math.log %382 : vector<8x256xf32>
    %cst_247 = arith.constant dense<0.000000e+00> : vector<16x256xf32>
    %384 = tpu.matmul %0, %383, %cst_247 {dimension_numbers = #tpu.dot_dimension_numbers<[1], [0], [0], [1], [0, 0, 1, 1], [], []>} : vector<16x8xf32>, vector<8x256xf32>, vector<16x256xf32> -> vector<16x256xf32>
    %c15_248 = arith.constant 15 : index
    %c0_249 = arith.constant 0 : index
    %c0_250 = arith.constant 0 : index
    %385 = vector.load %arg2[%c15_248, %c0_249, %c0_250] : memref<16x16x1xf32, #tpu.memory_space<vmem>>, vector<1x16x1xf32>
    %386 = vector.shape_cast %385 : vector<1x16x1xf32> to vector<16x1xf32>
    %387 = vector.broadcast %386 : vector<16x1xf32> to vector<16x256xf32>
    %388 = arith.addf %384, %387 : vector<16x256xf32>
    %cst_251 = arith.constant -3.000000e+01 : f32
    %cst_252 = arith.constant 3.000000e+01 : f32
    %389 = vector.broadcast %cst_251 : f32 to vector<16x256xf32>
    %390 = arith.maximumf %389, %388 : vector<16x256xf32>
    %391 = vector.broadcast %cst_252 : f32 to vector<16x256xf32>
    %392 = arith.minimumf %391, %390 : vector<16x256xf32>
    %393 = math.exp %392 : vector<16x256xf32>
    %cst_253 = arith.constant dense<0.000000e+00> : vector<8x256xf32>
    %394 = tpu.matmul %1, %393, %cst_253 {dimension_numbers = #tpu.dot_dimension_numbers<[1], [0], [0], [1], [0, 0, 1, 1], [], []>} : vector<8x16xf32>, vector<16x256xf32>, vector<8x256xf32> -> vector<8x256xf32>
    %cst_254 = arith.constant -1.000000e+05 : f32
    %cst_255 = arith.constant 1.000000e+05 : f32
    %395 = vector.broadcast %cst_254 : f32 to vector<8x256xf32>
    %396 = arith.maximumf %395, %394 : vector<8x256xf32>
    %397 = vector.broadcast %cst_255 : f32 to vector<8x256xf32>
    %398 = arith.minimumf %397, %396 : vector<8x256xf32>
    %c15_256 = arith.constant 15 : index
    %c0_257 = arith.constant 0 : index
    %c0_258 = arith.constant 0 : index
    %399 = vector.load %arg5[%c15_256, %c0_257, %c0_258] : memref<16x8x256xf32, #tpu.memory_space<vmem>>, vector<1x8x256xf32>
    %400 = vector.shape_cast %399 : vector<1x8x256xf32> to vector<8x256xf32>
    %401 = vector.shape_cast %398 : vector<8x256xf32> to vector<1x8x256xf32>
    tpu.vector_store %arg5[%c15_256, %c0_257, %c0_258], %401 {strides = array<i32>} : memref<16x8x256xf32, #tpu.memory_space<vmem>>, vector<1x8x256xf32>,
    return
  }
  func.func @transform_0(%arg0: i32) -> (i32, i32, i32) {
    %c0_i32 = arith.constant 0 : i32
    %c0_i32_0 = arith.constant 0 : i32
    %c0_i32_1 = arith.constant 0 : i32
    return %arg0, %c0_i32, %c0_i32_0 : i32, i32, i32
  }
  func.func @transform_1(%arg0: i32) -> (i32, i32, i32) {
    %c0_i32 = arith.constant 0 : i32
    %c0_i32_0 = arith.constant 0 : i32
    %c0_i32_1 = arith.constant 0 : i32
    return %arg0, %c0_i32, %c0_i32_0 : i32, i32, i32
  }
  func.func @transform_2(%arg0: i32) -> (i32, i32) {
    %c0_i32 = arith.constant 0 : i32
    %c0_i32_0 = arith.constant 0 : i32
    %c0_i32_1 = arith.constant 0 : i32
    return %c0_i32, %c0_i32_0 : i32, i32
  }
  func.func @transform_3(%arg0: i32) -> (i32, i32) {
    %c0_i32 = arith.constant 0 : i32
    %c0_i32_0 = arith.constant 0 : i32
    %c0_i32_1 = arith.constant 0 : i32
    return %c0_i32, %c0_i32_0 : i32, i32
  }
  func.func @transform_4(%arg0: i32) -> (i32, i32, i32) {
    %c0_i32 = arith.constant 0 : i32
    %c0_i32_0 = arith.constant 0 : i32
    %c0_i32_1 = arith.constant 0 : i32
    return %arg0, %c0_i32, %c0_i32_0 : i32, i32, i32
  }
}

</mosaic_0001>

<llo_original>
// kernel: custom-call.1
$region0: #{custom-call.1}
  %s0 = inlined_call_operand.vmem [shape: u32[64], index: 0, kind: output, shape index: {}]

// kernel: ne.4
$region0: #{ne.4}
  #allocation0 [shape = 's32[1]{0}', space=sflag, size = 0x4, scoped, tag = 'scoped memory for ne.4']
  %s0 = inlined_call_operand.vmem [shape: f32[64], index: 0, kind: input, shape index: {}, may-alias: {0,1}]
  %s1 = inlined_call_operand.vmem [shape: f32[64], index: 1, kind: input, shape index: {}, may-alias: {0,1}]
  %s2 = inlined_call_operand.vmem [shape: pred[64], index: 2, kind: output, shape index: {}]
  %v3 = vld [vmem:[%s0] sm:$0x1]
  %v4 = vld [vmem:[%s1] sm:$0x1]
  %5 = xla_tuple %v3, %v4
  %6 = xla_tuple %5
  %vm7 = vcmp.ne.f32.partialorder %v3, %v4
  %v8 = vsel %vm7, 1, 0
  %9 = xla_tuple %v8
  %v10 = vpack.c.b16 0, %v8
  %v11 = vpack.c.b8 0, %v10
  %13 = vst [vmem:[%s2] sm:$0x1] %v11

// kernel: crnn_rhs_batch.1
$region0: #{crnn_rhs_batch.1}
  #allocation0 [shape = 'u32[]', space=smem, size = 0x4, offset = 0x4, fixed_abs, tag = 'smem constant byte address 0x4 - core index']
  #allocation1 [shape = 'u32[144,128]{1,0:T(1,128)}', space=vmem, size = 0x12000, scoped, tag = 'internal scratch']
  %s0 = inlined_call_operand.vmem [shape: f32[64,8,256], index: 0, kind: input, shape index: {}]
  %s1 = inlined_call_operand.vmem [shape: f32[64,16,1], index: 1, kind: input, shape index: {}]
  %s2 = inlined_call_operand.vmem [shape: f32[16,8], index: 2, kind: input, shape index: {}]
  %s3 = inlined_call_operand.vmem [shape: f32[8,16], index: 3, kind: input, shape index: {}]
  %s4 = inlined_call_operand.hbm [shape: f32[64,8,256], index: 4, kind: output, shape index: {}]
  %s5 = sld [smem:[#allocation0]]
  $region49: #{crnn_rhs_batch.1} parent=0
    _
  %s7 = ssub.s32 1, %s5
  %s8 = scalar_select 0, %s7, %s5
  $region1: #{crnn_rhs_batch.1} parent=0
    #allocation2 [shape = 'u8[262144]{0}', space=vmem, size = 0x40000, scoped, tag = 'output window, operand 0']
    #allocation3 [shape = 's32[2]{0}', space=sflag, size = 0x8, scoped, tag = 'scoped memory for crnn_rhs_batch.1']
    %9 = vsyncpa [#allocation3], 0
    %s10 = scalar_lea.sflag [#allocation3], 1
    %11 = vsyncpa %s10, 0
    loop: start=0, step=1, limit=6
    $region2: #{crnn_rhs_batch.1} parent=1 // loop_pre_header
      _
    $region3: #{crnn_rhs_batch.1} parent=1 // loop_header
      %s13 = sphi 0, %s17
      %p14 = scmp.ge.s32.totalorder %s13, 6
      %s23 = sphi 0, %s25
      %s26 = sphi 0, %s23
      %s27 = sphi 0, %s26
      %s43 = sphi 0, %s27
      %s49 = sphi 0, %s51
      %s52 = sphi 0, %s49
      %s53 = sphi 0, %s52
      %s69 = sphi 0, %s53
      %s73 = sphi 0, %s73
      %s75 = sphi 0, %s73
      %s76 = sphi 0, %s75
      %s90 = sphi 0, %s76
      %s94 = sphi 0, %s94
      %s96 = sphi 0, %s94
      %s97 = sphi 0, %s96
      %s111 = sphi 0, %s97
      %s117 = sphi 0, %s119
      %s120 = sphi 0, %s117
      %s121 = sphi 0, %s120
      %s137 = sphi 0, %s121
    $region4: #{crnn_rhs_batch.1} parent=1 // loop_header_branch
      %16 = sbr.rel (%p14) target = $region8
    $region5: #{crnn_rhs_batch.1} parent=1 // loop_body
      %s18 = ssub.s32 %s13, 1
      %s19 = ssub.s32 %s13, 2
      %s20 = sadd.s32 %s13, 1
      %s21 = ssub.s32 %s13, %s20
      %p22 = scmp.eq.s32.totalorder %s21, 0
      %s24 = sadd.s32 %s23, 1
      %s25 = scalar_select %p22, %s23, %s24
      %p28 = pneg %p22
      %p29 = scmp.eq.s32.totalorder %s13, 3
      %p30 = por %p28, %p29
      %p31 = scmp.ne.s32.totalorder %s23, %s26
      %p32 = scmp.eq.s32.totalorder %s13, 0
      %p33 = por %p31, %p32
      %p34 = scmp.ne.s32.totalorder %s23, %s26
      %p35 = scmp.eq.s32.totalorder %s18, 3
      %p36 = por %p34, %p35
      %p37 = scmp.ne.s32.totalorder %s26, %s27
      %p38 = scmp.eq.s32.totalorder %s18, 0
      %p39 = por %p37, %p38
      %p40 = scmp.ne.s32.totalorder %s26, %s27
      %p41 = scmp.eq.s32.totalorder %s19, 3
      %p42 = por %p40, %p41
      %p44 = scmp.ne.s32.totalorder %s27, %s43
      %p45 = scmp.eq.s32.totalorder %s19, 0
      %p46 = por %p44, %p45
      %s47 = ssub.s32 %s13, %s20
      %p48 = scmp.eq.s32.totalorder %s47, 0
      %s50 = sadd.s32 %s49, 1
      %s51 = scalar_select %p48, %s49, %s50
      %p54 = pneg %p48
      %p55 = scmp.eq.s32.totalorder %s13, 3
      %p56 = por %p54, %p55
      %p57 = scmp.ne.s32.totalorder %s49, %s52
      %p58 = scmp.eq.s32.totalorder %s13, 0
      %p59 = por %p57, %p58
      %p60 = scmp.ne.s32.totalorder %s49, %s52
      %p61 = scmp.eq.s32.totalorder %s18, 3
      %p62 = por %p60, %p61
      %p63 = scmp.ne.s32.totalorder %s52, %s53
      %p64 = scmp.eq.s32.totalorder %s18, 0
      %p65 = por %p63, %p64
      %p66 = scmp.ne.s32.totalorder %s52, %s53
      %p67 = scmp.eq.s32.totalorder %s19, 3
      %p68 = por %p66, %p67
      %p70 = scmp.ne.s32.totalorder %s53, %s69
      %p71 = scmp.eq.s32.totalorder %s19, 0
      %p72 = por %p70, %p71
      %s74 = sadd.s32 %s73, 1
      %p77 = scmp.eq.s32.totalorder %s13, 3
      %p78 = scmp.ne.s32.totalorder %s73, %s75
      %p79 = scmp.eq.s32.totalorder %s13, 0
      %p80 = por %p78, %p79
      %p81 = scmp.ne.s32.totalorder %s73, %s75
      %p82 = scmp.eq.s32.totalorder %s18, 3
      %p83 = por %p81, %p82
      %p84 = scmp.ne.s32.totalorder %s75, %s76
      %p85 = scmp.eq.s32.totalorder %s18, 0
      %p86 = por %p84, %p85
      %p87 = scmp.ne.s32.totalorder %s75, %s76
      %p88 = scmp.eq.s32.totalorder %s19, 3
      %p89 = por %p87, %p88
      %p91 = scmp.ne.s32.totalorder %s76, %s90
      %p92 = scmp.eq.s32.totalorder %s19, 0
      %p93 = por %p91, %p92
      %s95 = sadd.s32 %s94, 1
      %p98 = scmp.eq.s32.totalorder %s13, 3
      %p99 = scmp.ne.s32.totalorder %s94, %s96
      %p100 = scmp.eq.s32.totalorder %s13, 0
      %p101 = por %p99, %p100
      %p102 = scmp.ne.s32.totalorder %s94, %s96
      %p103 = scmp.eq.s32.totalorder %s18, 3
      %p104 = por %p102, %p103
      %p105 = scmp.ne.s32.totalorder %s96, %s97
      %p106 = scmp.eq.s32.totalorder %s18, 0
      %p107 = por %p105, %p106
      %p108 = scmp.ne.s32.totalorder %s96, %s97
      %p109 = scmp.eq.s32.totalorder %s19, 3
      %p110 = por %p108, %p109
      %p112 = scmp.ne.s32.totalorder %s97, %s111
      %p113 = scmp.eq.s32.totalorder %s19, 0
      %p114 = por %p112, %p113
      %s115 = ssub.s32 %s13, %s20
      %p116 = scmp.eq.s32.totalorder %s115, 0
      %s118 = sadd.s32 %s117, 1
      %s119 = scalar_select %p116, %s117, %s118
      %p122 = pneg %p116
      %p123 = scmp.eq.s32.totalorder %s13, 3
      %p124 = por %p122, %p123
      %p125 = scmp.ne.s32.totalorder %s117, %s120
      %p126 = scmp.eq.s32.totalorder %s13, 0
      %p127 = por %p125, %p126
      %p128 = scmp.ne.s32.totalorder %s117, %s120
      %p129 = scmp.eq.s32.totalorder %s18, 3
      %p130 = por %p128, %p129
      %p131 = scmp.ne.s32.totalorder %s120, %s121
      %p132 = scmp.eq.s32.totalorder %s18, 0
      %p133 = por %p131, %p132
      %p134 = scmp.ne.s32.totalorder %s120, %s121
      %p135 = scmp.eq.s32.totalorder %s19, 3
      %p136 = por %p134, %p135
      %p138 = scmp.ne.s32.totalorder %s121, %s137
      %p139 = scmp.eq.s32.totalorder %s19, 0
      %p140 = por %p138, %p139
      %p141 = scmp.le.s32.totalorder 1, %s13
      %p142 = scmp.lt.s32.totalorder %s13, 5
      %p143 = pnand %p141, %p142
      %p144 = pneg %p143
      // Predicated region
      $region9: #{crnn_rhs_batch.1} parent=5 // pred_check
        _
      $region10: #{crnn_rhs_batch.1} parent=5 // pred_check_branch
        %146 = sbr.rel (%p143) target = $region12
      $region11: #{crnn_rhs_batch.1} parent=5 // pred_region
        %s147 = ssub.s32 %s13, 1
        // Predicated region
        $region13: #{crnn_rhs_batch.1} parent=11 // pred_check
          %p148 = pneg %p86
        $region14: #{crnn_rhs_batch.1} parent=11 // pred_check_branch
          %150 = sbr.rel (%p148) target = $region16
        $region15: #{crnn_rhs_batch.1} parent=11 // pred_region
          _
        $region16: #{crnn_rhs_batch.1} parent=11 // pred_fallthru
          _
        // Predicated region
        $region17: #{crnn_rhs_batch.1} parent=11 // pred_check
          %p151 = pneg %p107
        $region18: #{crnn_rhs_batch.1} parent=11 // pred_check_branch
          %153 = sbr.rel (%p151) target = $region20
        $region19: #{crnn_rhs_batch.1} parent=11 // pred_region
          _
        $region20: #{crnn_rhs_batch.1} parent=11 // pred_fallthru
          _
      $region12: #{crnn_rhs_batch.1} parent=5 // pred_fallthru
        _
      %p154 = scmp.lt.s32.totalorder %s13, 4
      // Predicated region
      $region21: #{crnn_rhs_batch.1} parent=5 // pred_check
        %p155 = pneg %p154
      $region22: #{crnn_rhs_batch.1} parent=5 // pred_check_branch
        %157 = sbr.rel (%p155) target = $region24
      $region23: #{crnn_rhs_batch.1} parent=5 // pred_region
        // Predicated region
        $region25: #{crnn_rhs_batch.1} parent=23 // pred_check
          %p158 = pneg %p33
        $region26: #{crnn_rhs_batch.1} parent=23 // pred_check_branch
          %160 = sbr.rel (%p158) target = $region28
        $region27: #{crnn_rhs_batch.1} parent=23 // pred_region
          %s161 = smul.u32 16, %s13
          %p162 = scmp.lt.s32.totalorder %s161, 63
          %s163 = scalar_select %p162, %s161, 63
          %s164 = smul.addr %s163, 2
          %s165 = smul.addr %s164, 8
          %s166 = scalar_lea.vmem %s0, %s165
          %s167 = smul.u32 16, %s13
        $region28: #{crnn_rhs_batch.1} parent=23 // pred_fallthru
          _
        // Predicated region
        $region29: #{crnn_rhs_batch.1} parent=23 // pred_check
          %p168 = pneg %p59
        $region30: #{crnn_rhs_batch.1} parent=23 // pred_check_branch
          %170 = sbr.rel (%p168) target = $region32
        $region31: #{crnn_rhs_batch.1} parent=23 // pred_region
          %s171 = smul.u32 16, %s13
          %p172 = scmp.lt.s32.totalorder %s171, 63
          %s173 = scalar_select %p172, %s171, 63
          %s174 = smul.addr %s173, 2
          %s175 = smul.addr %s174, 8
          %s176 = scalar_lea.vmem %s1, %s175
          %s177 = smul.u32 16, %s13
        $region32: #{crnn_rhs_batch.1} parent=23 // pred_fallthru
          _
      $region24: #{crnn_rhs_batch.1} parent=5 // pred_fallthru
        _
      %p178 = scmp.le.s32.totalorder 1, %s13
      %p179 = scmp.lt.s32.totalorder %s13, 5
      %p180 = pnand %p178, %p179
      %p181 = pneg %p180
      // Predicated region
      $region33: #{crnn_rhs_batch.1} parent=5 // pred_check
        _
      $region34: #{crnn_rhs_batch.1} parent=5 // pred_check_branch
        %183 = sbr.rel (%p180) target = $region36
      $region35: #{crnn_rhs_batch.1} parent=5 // pred_region
        %s184 = ssub.s32 %s13, 1
        %s185 = smul.u32 16, %s18
        %p186 = scmp.lt.s32.totalorder %s185, 63
        %s187 = scalar_select %p186, %s185, 63
        %s188 = smul.addr %s187, 2
        %s189 = smul.addr %s188, 8
        %s190 = scalar_lea.vmem %s0, %s189
        %p191 = pneg %p39
        %p192 = pneg %p36
        %s193 = smul.u32 16, %s18
        %p194 = scmp.lt.s32.totalorder %s193, 63
        %s195 = scalar_select %p194, %s193, 63
        %s196 = smul.addr %s195, 2
        %s197 = smul.addr %s196, 8
        %s198 = scalar_lea.vmem %s1, %s197
        %p199 = pneg %p65
        %p200 = pneg %p62
        %p201 = pneg %p86
        %p202 = pneg %p83
        %p203 = pneg %p107
        %p204 = pneg %p104
        %p205 = pneg %p133
        %p206 = pneg %p130
        %s207 = sand.u32 %s120, 1
        %s208 = scalar_lea.sflag [#allocation3], %s207
        %s209 = sand.u32 %s120, 1
        %s210 = smul.addr %s209, 256
        %s211 = scalar_lea.vmem [#allocation2], %s210
        %s212 = smul.u32 16, %s18
        %p213 = scmp.lt.s32.totalorder %s212, 63
        %s214 = scalar_select %p213, %s212, 63
        %s215 = smul.addr %s214, 2
        %s216 = smul.addr %s215, 8
        %s217 = scalar_lea.vmem %s0, %s216
        %s218 = smul.u32 16, %s18
        %s219 = smul.u32 16, %s18
        %p220 = scmp.lt.s32.totalorder %s219, 63
        %s221 = scalar_select %p220, %s219, 63
        %s222 = smul.addr %s221, 2
        %s223 = smul.addr %s222, 8
        %s224 = scalar_lea.vmem %s1, %s223
        %s225 = smul.u32 16, %s18
        %s226 = smul.u32 16, %s18
        %v227 = vld [vmem:[%s2] sm:$0xff]
        %v228 = vld [vmem:[%s2 + $0x8] sm:$0xff]
        %v229 = vld [vmem:[%s3] sm:$0xff]
        %v230 = vld [vmem:[%s217] sm:$0xff]
        %v231 = vld [vmem:[%s217 + $0x8] sm:$0xff]
        %v232 = vmax.f32 %v230, 1e-06
        %v233 = vmax.f32 %v231, 1e-06
        %v234 = vmin.f32 %v232, 60.0
        %v235 = vmin.f32 %v233, 60.0
        %v236 = vlog2.pop %v234
        %v237 = vmul.f32 %v236, 0.6931472
        %v238 = vlog2.pop %v235
        %v239 = vmul.f32 %v238, 0.6931472
        %v240 = vld [vmem:[%s224] sm:$0xff]
        %v241 = vld [vmem:[%s224 + $0x8] sm:$0xff]
        %243 = vset.pattern.permute.xlu0 0
        %244 = vperm.xlu0 %243, %v240
        %v245 = vpop.permute.xlu0 %244
        %248 = vset.pattern.permute.xlu0 0
        %249 = vperm.xlu0 %248, %v241
        %v250 = vpop.permute.xlu0 %249
        %vm252 = vcmask 64512
        %v254 = vsel %vm252, %v227, 0
        %v257 = vsel %vm252, %v228, 0
        %259 = vmatprep.subr.mxu0 %v239
        %260 = vmatpush1.msra.mxu0 %v237
        %261 = vmatprep.subr.mxu0 0.0
        %262 = vmatpush1.msra.mxu0 0.0
        %263 = vmatprep.subr.mxu0 0.0
        %264 = vmatpush1.msra.mxu0 0.0
        %265 = vmatprep.subr.mxu0 0.0
        %266 = vmatpush1.msra.mxu0 0.0
        %267 = vmatprep.subr.mxu0 0.0
        %268 = vmatpush1.msra.mxu0 0.0
        %269 = vmatprep.subr.mxu0 0.0
        %270 = vmatpush1.msra.mxu0 0.0
        %271 = vmatprep.subr.mxu0 0.0
        %272 = vmatpush1.msra.mxu0 0.0
        %273 = vmatprep.subr.mxu0 0.0
        %274 = vmatpush1.msra.mxu0 0.0
        %275 = vmatprep.subr.mxu0 0.0
        %276 = vmatpush1.msra.mxu0 0.0
        %277 = vmatprep.subr.mxu0 0.0
        %278 = vmatpush1.msra.mxu0 0.0
        %279 = vmatprep.subr.mxu0 0.0
        %280 = vmatpush1.msra.mxu0 0.0
        %281 = vmatprep.subr.mxu0 0.0
        %282 = vmatpush1.msra.mxu0 0.0
        %283 = vmatprep.subr.mxu0 0.0
        %284 = vmatpush1.msra.mxu0 0.0
        %285 = vmatprep.subr.mxu0 0.0
        %286 = vmatpush1.msra.mxu0 0.0
        %287 = vmatprep.subr.mxu0 0.0
        %288 = vmatpush1.msra.mxu0 0.0
        %289 = vmatprep.subr.mxu0 0.0
        %290 = vmatpush1.msra.mxu0 0.0
        %291 = vmatprep.subr.mxu0 0.0
        %292 = vmatpush1.msra.mxu0 0.0
        %293 = vmatprep.subr.mxu0 0.0
        %294 = vmatpush1.msra.mxu0 0.0
        %295 = vmatprep.subr.mxu0 0.0
        %296 = vmatpush1.msra.mxu0 0.0
        %297 = vmatprep.subr.mxu0 0.0
        %298 = vmatpush1.msra.mxu0 0.0
        %299 = vmatprep.subr.mxu0 0.0
        %300 = vmatpush1.msra.mxu0 0.0
        %301 = vmatprep.subr.mxu0 0.0
        %302 = vmatpush1.msra.mxu0 0.0
        %303 = vmatprep.subr.mxu0 0.0
        %304 = vmatpush1.msra.mxu0 0.0
        %305 = vmatprep.subr.mxu0 0.0
        %306 = vmatpush1.msra.mxu0 0.0
        %307 = vmatprep.subr.mxu0 0.0
        %308 = vmatpush1.msra.mxu0 0.0
        %309 = vmatprep.subr.mxu0 0.0
        %310 = vmatpush1.msra.mxu0 0.0
        %311 = vmatprep.subr.mxu0 0.0
        %312 = vmatpush1.msra.mxu0 0.0
        %313 = vmatprep.subr.mxu0 0.0
        %314 = vmatpush1.msra.mxu0 0.0
        %315 = vmatprep.subr.mxu0 0.0
        %316 = vmatpush1.msra.mxu0 0.0
        %317 = vmatprep.subr.mxu0 0.0
        %318 = vmatpush1.msra.mxu0 0.0
        %319 = vmatprep.subr.mxu0 0.0
        %320 = vmatpush1.msra.mxu0 0.0
        %321 = vmatprep.subr.mxu0 0.0
        %322 = vmatpush1.msra.mxu0 0.0
        %323 = vmatprep.mubr.f32.mxu0 0.0
        %324 = vmatmul.mubr.f32.gmra.mrb[0].mxu0 %v254
        %v325 = vpop.f32.mrb[0].mxu0
        %v326 = vadd.f32 %v245, %v325
        %v327 = vpop.f32.mrb[0].mxu0
        %v328 = vadd.f32 %v245, %v327
        %329 = vmatprep.mubr.f32.mxu0 0.0
        %330 = vmatmul.mubr.f32.gmra.mrb[0].mxu0 %v257
        %v331 = vpop.f32.mrb[0].mxu0
        %v332 = vadd.f32 %v250, %v331
        %v333 = vpop.f32.mrb[0].mxu0
        %v334 = vadd.f32 %v250, %v333
        %335 = vdwg.mxu0
        %v336 = vmax.f32 %v326, -30.0
        %v337 = vmax.f32 %v328, -30.0
        %v338 = vmax.f32 %v332, -30.0
        %v339 = vmax.f32 %v334, -30.0
        %v340 = vmin.f32 %v336, 30.0
        %v341 = vmin.f32 %v337, 30.0
        %v342 = vmin.f32 %v338, 30.0
        %v343 = vmin.f32 %v339, 30.0
        %v344 = vmul.f32 %v340, 1.442695
        %v345 = vpow.pop %v344
        %v346 = vmul.f32 %v341, 1.442695
        %v347 = vpow.pop %v346
        %v348 = vmul.f32 %v342, 1.442695
        %v349 = vpow.pop %v348
        %v350 = vmul.f32 %v343, 1.442695
        %v351 = vpow.pop %v350
        %vm352 = vcmask 130048
        %v354 = vsel %vm352, %v229, 0
        %356 = vmatprep.subr.mxu0 %v347
        %357 = vmatpush1.msra.mxu0 %v345
        %358 = vmatprep.subr.mxu0 %v351
        %359 = vmatpush1.msra.mxu0 %v349
        %360 = vmatprep.subr.mxu0 0.0
        %361 = vmatpush1.msra.mxu0 0.0
        %362 = vmatprep.subr.mxu0 0.0
        %363 = vmatpush1.msra.mxu0 0.0
        %364 = vmatprep.subr.mxu0 0.0
        %365 = vmatpush1.msra.mxu0 0.0
        %366 = vmatprep.subr.mxu0 0.0
        %367 = vmatpush1.msra.mxu0 0.0
        %368 = vmatprep.subr.mxu0 0.0
        %369 = vmatpush1.msra.mxu0 0.0
        %370 = vmatprep.subr.mxu0 0.0
        %371 = vmatpush1.msra.mxu0 0.0
        %372 = vmatprep.subr.mxu0 0.0
        %373 = vmatpush1.msra.mxu0 0.0
        %374 = vmatprep.subr.mxu0 0.0
        %375 = vmatpush1.msra.mxu0 0.0
        %376 = vmatprep.subr.mxu0 0.0
        %377 = vmatpush1.msra.mxu0 0.0
        %378 = vmatprep.subr.mxu0 0.0
        %379 = vmatpush1.msra.mxu0 0.0
        %380 = vmatprep.subr.mxu0 0.0
        %381 = vmatpush1.msra.mxu0 0.0
        %382 = vmatprep.subr.mxu0 0.0
        %383 = vmatpush1.msra.mxu0 0.0
        %384 = vmatprep.subr.mxu0 0.0
        %385 = vmatpush1.msra.mxu0 0.0
        %386 = vmatprep.subr.mxu0 0.0
        %387 = vmatpush1.msra.mxu0 0.0
        %388 = vmatprep.subr.mxu0 0.0
        %389 = vmatpush1.msra.mxu0 0.0
        %390 = vmatprep.subr.mxu0 0.0
        %391 = vmatpush1.msra.mxu0 0.0
        %392 = vmatprep.subr.mxu0 0.0
        %393 = vmatpush1.msra.mxu0 0.0
        %394 = vmatprep.subr.mxu0 0.0
        %395 = vmatpush1.msra.mxu0 0.0
        %396 = vmatprep.subr.mxu0 0.0
        %397 = vmatpush1.msra.mxu0 0.0
        %398 = vmatprep.subr.mxu0 0.0
        %399 = vmatpush1.msra.mxu0 0.0
        %400 = vmatprep.subr.mxu0 0.0
        %401 = vmatpush1.msra.mxu0 0.0
        %402 = vmatprep.subr.mxu0 0.0
        %403 = vmatpush1.msra.mxu0 0.0
        %404 = vmatprep.subr.mxu0 0.0
        %405 = vmatpush1.msra.mxu0 0.0
        %406 = vmatprep.subr.mxu0 0.0
        %407 = vmatpush1.msra.mxu0 0.0
        %408 = vmatprep.subr.mxu0 0.0
        %409 = vmatpush1.msra.mxu0 0.0
        %410 = vmatprep.subr.mxu0 0.0
        %411 = vmatpush1.msra.mxu0 0.0
        %412 = vmatprep.subr.mxu0 0.0
        %413 = vmatpush1.msra.mxu0 0.0
        %414 = vmatprep.subr.mxu0 0.0
        %415 = vmatpush1.msra.mxu0 0.0
        %416 = vmatprep.subr.mxu0 0.0
        %417 = vmatpush1.msra.mxu0 0.0
        %418 = vmatprep.subr.mxu0 0.0
        %419 = vmatpush1.msra.mxu0 0.0
        %420 = vmatprep.mubr.f32.mxu0 0.0
        %421 = vmatmul.mubr.f32.gmra.mrb[0].mxu0 %v354
        %v422 = vpop.f32.mrb[0].mxu0
        %v423 = vadd.f32 0.0, %v422
        %v424 = vpop.f32.mrb[0].mxu0
        %v425 = vadd.f32 0.0, %v424
        %426 = vdwg.mxu0
        %v427 = vmax.f32 %v423, -100000.0
        %v428 = vmax.f32 %v425, -100000.0
        %v429 = vmin.f32 %v427, 100000.0
        %v430 = vmin.f32 %v428, 100000.0
        %431 = vst [vmem:[%s211] sm:$0xff] %v429
        %432 = vst [vmem:[%s211 + $0x8] sm:$0xff] %v430
        %s433 = scalar_lea.vmem %s217, 16
        %v434 = vld [vmem:[%s433] sm:$0xff]
        %v435 = vld [vmem:[%s433 + $0x8] sm:$0xff]
        %v436 = vmax.f32 %v434, 1e-06
        %v437 = vmax.f32 %v435, 1e-06
        %v438 = vmin.f32 %v436, 60.0
        %v439 = vmin.f32 %v437, 60.0
        %v440 = vlog2.pop %v438
        %v441 = vmul.f32 %v440, 0.6931472
        %v442 = vlog2.pop %v439
        %v443 = vmul.f32 %v442, 0.6931472
        %s444 = scalar_lea.vmem %s224, 16
        %v445 = vld [vmem:[%s444] sm:$0xff]
        %v446 = vld [vmem:[%s444 + $0x8] sm:$0xff]
        %448 = vset.pattern.permute.xlu0 0
        %449 = vperm.xlu0 %448, %v445
        %v450 = vpop.permute.xlu0 %449
        %453 = vset.pattern.permute.xlu0 0
        %454 = vperm.xlu0 %453, %v446
        %v455 = vpop.permute.xlu0 %454
        %457 = vmatprep.subr.mxu0 %v443
        %458 = vmatpush1.msra.mxu0 %v441
        %459 = vmatprep.subr.mxu0 0.0
        %460 = vmatpush1.msra.mxu0 0.0
        %461 = vmatprep.subr.mxu0 0.0
        %462 = vmatpush1.msra.mxu0 0.0
        %463 = vmatprep.subr.mxu0 0.0
        %464 = vmatpush1.msra.mxu0 0.0
        %465 = vmatprep.subr.mxu0 0.0
        %466 = vmatpush1.msra.mxu0 0.0
        %467 = vmatprep.subr.mxu0 0.0
        %468 = vmatpush1.msra.mxu0 0.0
        %469 = vmatprep.subr.mxu0 0.0
        %470 = vmatpush1.msra.mxu0 0.0
        %471 = vmatprep.subr.mxu0 0.0
        %472 = vmatpush1.msra.mxu0 0.0
        %473 = vmatprep.subr.mxu0 0.0
        %474 = vmatpush1.msra.mxu0 0.0
        %475 = vmatprep.subr.mxu0 0.0
        %476 = vmatpush1.msra.mxu0 0.0
        %477 = vmatprep.subr.mxu0 0.0
        %478 = vmatpush1.msra.mxu0 0.0
        %479 = vmatprep.subr.mxu0 0.0
        %480 = vmatpush1.msra.mxu0 0.0
        %481 = vmatprep.subr.mxu0 0.0
        %482 = vmatpush1.msra.mxu0 0.0
        %483 = vmatprep.subr.mxu0 0.0
        %484 = vmatpush1.msra.mxu0 0.0
        %485 = vmatprep.subr.mxu0 0.0
        %486 = vmatpush1.msra.mxu0 0.0
        %487 = vmatprep.subr.mxu0 0.0
        %488 = vmatpush1.msra.mxu0 0.0
        %489 = vmatprep.subr.mxu0 0.0
        %490 = vmatpush1.msra.mxu0 0.0
        %491 = vmatprep.subr.mxu0 0.0
        %492 = vmatpush1.msra.mxu0 0.0
        %493 = vmatprep.subr.mxu0 0.0
        %494 = vmatpush1.msra.mxu0 0.0
        %495 = vmatprep.subr.mxu0 0.0
        %496 = vmatpush1.msra.mxu0 0.0
        %497 = vmatprep.subr.mxu0 0.0
        %498 = vmatpush1.msra.mxu0 0.0
        %499 = vmatprep.subr.mxu0 0.0
        %500 = vmatpush1.msra.mxu0 0.0
        %501 = vmatprep.subr.mxu0 0.0
        %502 = vmatpush1.msra.mxu0 0.0
        %503 = vmatprep.subr.mxu0 0.0
        %504 = vmatpush1.msra.mxu0 0.0
        %505 = vmatprep.subr.mxu0 0.0
        %506 = vmatpush1.msra.mxu0 0.0
        %507 = vmatprep.subr.mxu0 0.0
        %508 = vmatpush1.msra.mxu0 0.0
        %509 = vmatprep.subr.mxu0 0.0
        %510 = vmatpush1.msra.mxu0 0.0
        %511 = vmatprep.subr.mxu0 0.0
        %512 = vmatpush1.msra.mxu0 0.0
        %513 = vmatprep.subr.mxu0 0.0
        %514 = vmatpush1.msra.mxu0 0.0
        %515 = vmatprep.subr.mxu0 0.0
        %516 = vmatpush1.msra.mxu0 0.0
        %517 = vmatprep.subr.mxu0 0.0
        %518 = vmatpush1.msra.mxu0 0.0
        %519 = vmatprep.subr.mxu0 0.0
        %520 = vmatpush1.msra.mxu0 0.0
        %521 = vmatprep.mubr.f32.mxu0 0.0
        %522 = vmatmul.mubr.f32.gmra.mrb[0].mxu0 %v254
        %v523 = vpop.f32.mrb[0].mxu0
        %v524 = vadd.f32 %v450, %v523
        %v525 = vpop.f32.mrb[0].mxu0
        %v526 = vadd.f32 %v450, %v525
        %527 = vmatprep.mubr.f32.mxu0 0.0
        %528 = vmatmul.mubr.f32.gmra.mrb[0].mxu0 %v257
        %v529 = vpop.f32.mrb[0].mxu0
        %v530 = vadd.f32 %v455, %v529
        %v531 = vpop.f32.mrb[0].mxu0
        %v532 = vadd.f32 %v455, %v531
        %533 = vdwg.mxu0
        %v534 = vmax.f32 %v524, -30.0
        %v535 = vmax.f32 %v526, -30.0
        %v536 = vmax.f32 %v530, -30.0
        %v537 = vmax.f32 %v532, -30.0
        %v538 = vmin.f32 %v534, 30.0
        %v539 = vmin.f32 %v535, 30.0
        %v540 = vmin.f32 %v536, 30.0
        %v541 = vmin.f32 %v537, 30.0
        %v542 = vmul.f32 %v538, 1.442695
        %v543 = vpow.pop %v542
        %v544 = vmul.f32 %v539, 1.442695
        %v545 = vpow.pop %v544
        %v546 = vmul.f32 %v540, 1.442695
        %v547 = vpow.pop %v546
        %v548 = vmul.f32 %v541, 1.442695
        %v549 = vpow.pop %v548
        %550 = vmatprep.subr.mxu0 %v545
        %551 = vmatpush1.msra.mxu0 %v543
        %552 = vmatprep.subr.mxu0 %v549
        %553 = vmatpush1.msra.mxu0 %v547
        %554 = vmatprep.subr.mxu0 0.0
        %555 = vmatpush1.msra.mxu0 0.0
        %556 = vmatprep.subr.mxu0 0.0
        %557 = vmatpush1.msra.mxu0 0.0
        %558 = vmatprep.subr.mxu0 0.0
        %559 = vmatpush1.msra.mxu0 0.0
        %560 = vmatprep.subr.mxu0 0.0
        %561 = vmatpush1.msra.mxu0 0.0
        %562 = vmatprep.subr.mxu0 0.0
        %563 = vmatpush1.msra.mxu0 0.0
        %564 = vmatprep.subr.mxu0 0.0
        %565 = vmatpush1.msra.mxu0 0.0
        %566 = vmatprep.subr.mxu0 0.0
        %567 = vmatpush1.msra.mxu0 0.0
        %568 = vmatprep.subr.mxu0 0.0
        %569 = vmatpush1.msra.mxu0 0.0
        %570 = vmatprep.subr.mxu0 0.0
        %571 = vmatpush1.msra.mxu0 0.0
        %572 = vmatprep.subr.mxu0 0.0
        %573 = vmatpush1.msra.mxu0 0.0
        %574 = vmatprep.subr.mxu0 0.0
        %575 = vmatpush1.msra.mxu0 0.0
        %576 = vmatprep.subr.mxu0 0.0
        %577 = vmatpush1.msra.mxu0 0.0
        %578 = vmatprep.subr.mxu0 0.0
        %579 = vmatpush1.msra.mxu0 0.0
        %580 = vmatprep.subr.mxu0 0.0
        %581 = vmatpush1.msra.mxu0 0.0
        %582 = vmatprep.subr.mxu0 0.0
        %583 = vmatpush1.msra.mxu0 0.0
        %584 = vmatprep.subr.mxu0 0.0
        %585 = vmatpush1.msra.mxu0 0.0
        %586 = vmatprep.subr.mxu0 0.0
        %587 = vmatpush1.msra.mxu0 0.0
        %588 = vmatprep.subr.mxu0 0.0
        %589 = vmatpush1.msra.mxu0 0.0
        %590 = vmatprep.subr.mxu0 0.0
        %591 = vmatpush1.msra.mxu0 0.0
        %592 = vmatprep.subr.mxu0 0.0
        %593 = vmatpush1.msra.mxu0 0.0
        %594 = vmatprep.subr.mxu0 0.0
        %595 = vmatpush1.msra.mxu0 0.0
        %596 = vmatprep.subr.mxu0 0.0
        %597 = vmatpush1.msra.mxu0 0.0
        %598 = vmatprep.subr.mxu0 0.0
        %599 = vmatpush1.msra.mxu0 0.0
        %600 = vmatprep.subr.mxu0 0.0
        %601 = vmatpush1.msra.mxu0 0.0
        %602 = vmatprep.subr.mxu0 0.0
        %603 = vmatpush1.msra.mxu0 0.0
        %604 = vmatprep.subr.mxu0 0.0
        %605 = vmatpush1.msra.mxu0 0.0
        %606 = vmatprep.subr.mxu0 0.0
        %607 = vmatpush1.msra.mxu0 0.0
        %608 = vmatprep.subr.mxu0 0.0
        %609 = vmatpush1.msra.mxu0 0.0
        %610 = vmatprep.subr.mxu0 0.0
        %611 = vmatpush1.msra.mxu0 0.0
        %612 = vmatprep.subr.mxu0 0.0
        %613 = vmatpush1.msra.mxu0 0.0
        %614 = vmatprep.mubr.f32.mxu0 0.0
        %615 = vmatmul.mubr.f32.gmra.mrb[0].mxu0 %v354
        %v616 = vpop.f32.mrb[0].mxu0
        %v617 = vadd.f32 0.0, %v616
        %v618 = vpop.f32.mrb[0].mxu0
        %v619 = vadd.f32 0.0, %v618
        %620 = vdwg.mxu0
        %v621 = vmax.f32 %v617, -100000.0
        %v622 = vmax.f32 %v619, -100000.0
        %v623 = vmin.f32 %v621, 100000.0
        %v624 = vmin.f32 %v622, 100000.0
        %s625 = scalar_lea.vmem %s211, 16 [#allocation2]
        %626 = vst [vmem:[%s625] sm:$0xff] %v623
        %627 = vst [vmem:[%s625 + $0x8] sm:$0xff] %v624
        %s628 = scalar_lea.vmem %s217, 32
        %v629 = vld [vmem:[%s628] sm:$0xff]
        %v630 = vld [vmem:[%s628 + $0x8] sm:$0xff]
        %v631 = vmax.f32 %v629, 1e-06
        %v632 = vmax.f32 %v630, 1e-06
        %v633 = vmin.f32 %v631, 60.0
        %v634 = vmin.f32 %v632, 60.0
        %v635 = vlog2.pop %v633
        %v636 = vmul.f32 %v635, 0.6931472
        %v637 = vlog2.pop %v634
        %v638 = vmul.f32 %v637, 0.6931472
        %s639 = scalar_lea.vmem %s224, 32
        %v640 = vld [vmem:[%s639] sm:$0xff]
        %v641 = vld [vmem:[%s639 + $0x8] sm:$0xff]
        %643 = vset.pattern.permute.xlu0 0
        %644 = vperm.xlu0 %643, %v640
        %v645 = vpop.permute.xlu0 %644
        %648 = vset.pattern.permute.xlu0 0
        %649 = vperm.xlu0 %648, %v641
        %v650 = vpop.permute.xlu0 %649
        %652 = vmatprep.subr.mxu0 %v638
        %653 = vmatpush1.msra.mxu0 %v636
        %654 = vmatprep.subr.mxu0 0.0
        %655 = vmatpush1.msra.mxu0 0.0
        %656 = vmatprep.subr.mxu0 0.0
        %657 = vmatpush1.msra.mxu0 0.0
        %658 = vmatprep.subr.mxu0 0.0
        %659 = vmatpush1.msra.mxu0 0.0
        %660 = vmatprep.subr.mxu0 0.0
        %661 = vmatpush1.msra.mxu0 0.0
        %662 = vmatprep.subr.mxu0 0.0
        %663 = vmatpush1.msra.mxu0 0.0
        %664 = vmatprep.subr.mxu0 0.0
        %665 = vmatpush1.msra.mxu0 0.0
        %666 = vmatprep.subr.mxu0 0.0
        %667 = vmatpush1.msra.mxu0 0.0
        %668 = vmatprep.subr.mxu0 0.0
        %669 = vmatpush1.msra.mxu0 0.0
        %670 = vmatprep.subr.mxu0 0.0
        %671 = vmatpush1.msra.mxu0 0.0
        %672 = vmatprep.subr.mxu0 0.0
        %673 = vmatpush1.msra.mxu0 0.0
        %674 = vmatprep.subr.mxu0 0.0
        %675 = vmatpush1.msra.mxu0 0.0
        %676 = vmatprep.subr.mxu0 0.0
        %677 = vmatpush1.msra.mxu0 0.0
        %678 = vmatprep.subr.mxu0 0.0
        %679 = vmatpush1.msra.mxu0 0.0
        %680 = vmatprep.subr.mxu0 0.0
        %681 = vmatpush1.msra.mxu0 0.0
        %682 = vmatprep.subr.mxu0 0.0
        %683 = vmatpush1.msra.mxu0 0.0
        %684 = vmatprep.subr.mxu0 0.0
        %685 = vmatpush1.msra.mxu0 0.0
        %686 = vmatprep.subr.mxu0 0.0
        %687 = vmatpush1.msra.mxu0 0.0
        %688 = vmatprep.subr.mxu0 0.0
        %689 = vmatpush1.msra.mxu0 0.0
        %690 = vmatprep.subr.mxu0 0.0
        %691 = vmatpush1.msra.mxu0 0.0
        %692 = vmatprep.subr.mxu0 0.0
        %693 = vmatpush1.msra.mxu0 0.0
        %694 = vmatprep.subr.mxu0 0.0
        %695 = vmatpush1.msra.mxu0 0.0
        %696 = vmatprep.subr.mxu0 0.0
        %697 = vmatpush1.msra.mxu0 0.0
        %698 = vmatprep.subr.mxu0 0.0
        %699 = vmatpush1.msra.mxu0 0.0
        %700 = vmatprep.subr.mxu0 0.0
        %701 = vmatpush1.msra.mxu0 0.0
        %702 = vmatprep.subr.mxu0 0.0
        %703 = vmatpush1.msra.mxu0 0.0
        %704 = vmatprep.subr.mxu0 0.0
        %705 = vmatpush1.msra.mxu0 0.0
        %706 = vmatprep.subr.mxu0 0.0
        %707 = vmatpush1.msra.mxu0 0.0
        %708 = vmatprep.subr.mxu0 0.0
        %709 = vmatpush1.msra.mxu0 0.0
        %710 = vmatprep.subr.mxu0 0.0
        %711 = vmatpush1.msra.mxu0 0.0
        %712 = vmatprep.subr.mxu0 0.0
        %713 = vmatpush1.msra.mxu0 0.0
        %714 = vmatprep.subr.mxu0 0.0
        %715 = vmatpush1.msra.mxu0 0.0
        %716 = vmatprep.mubr.f32.mxu0 0.0
        %717 = vmatmul.mubr.f32.gmra.mrb[0].mxu0 %v254
        %v718 = vpop.f32.mrb[0].mxu0
        %v719 = vadd.f32 %v645, %v718
        %v720 = vpop.f32.mrb[0].mxu0
        %v721 = vadd.f32 %v645, %v720
        %722 = vmatprep.mubr.f32.mxu0 0.0
        %723 = vmatmul.mubr.f32.gmra.mrb[0].mxu0 %v257
        %v724 = vpop.f32.mrb[0].mxu0
        %v725 = vadd.f32 %v650, %v724
        %v726 = vpop.f32.mrb[0].mxu0
        %v727 = vadd.f32 %v650, %v726
        %728 = vdwg.mxu0
        %v729 = vmax.f32 %v719, -30.0
        %v730 = vmax.f32 %v721, -30.0
        %v731 = vmax.f32 %v725, -30.0
        %v732 = vmax.f32 %v727, -30.0
        %v733 = vmin.f32 %v729, 30.0
        %v734 = vmin.f32 %v730, 30.0
        %v735 = vmin.f32 %v731, 30.0
        %v736 = vmin.f32 %v732, 30.0
        %v737 = vmul.f32 %v733, 1.442695
        %v738 = vpow.pop %v737
        %v739 = vmul.f32 %v734, 1.442695
        %v740 = vpow.pop %v739
        %v741 = vmul.f32 %v735, 1.442695
        %v742 = vpow.pop %v741
        %v743 = vmul.f32 %v736, 1.442695
        %v744 = vpow.pop %v743
        %745 = vmatprep.subr.mxu0 %v740
        %746 = vmatpush1.msra.mxu0 %v738
        %747 = vmatprep.subr.mxu0 %v744
        %748 = vmatpush1.msra.mxu0 %v742
        %749 = vmatprep.subr.mxu0 0.0
        %750 = vmatpush1.msra.mxu0 0.0
        %751 = vmatprep.subr.mxu0 0.0
        %752 = vmatpush1.msra.mxu0 0.0
        %753 = vmatprep.subr.mxu0 0.0
        %754 = vmatpush1.msra.mxu0 0.0
        %755 = vmatprep.subr.mxu0 0.0
        %756 = vmatpush1.msra.mxu0 0.0
        %757 = vmatprep.subr.mxu0 0.0
        %758 = vmatpush1.msra.mxu0 0.0
        %759 = vmatprep.subr.mxu0 0.0
        %760 = vmatpush1.msra.mxu0 0.0
        %761 = vmatprep.subr.mxu0 0.0
        %762 = vmatpush1.msra.mxu0 0.0
        %763 = vmatprep.subr.mxu0 0.0
        %764 = vmatpush1.msra.mxu0 0.0
        %765 = vmatprep.subr.mxu0 0.0
        %766 = vmatpush1.msra.mxu0 0.0
        %767 = vmatprep.subr.mxu0 0.0
        %768 = vmatpush1.msra.mxu0 0.0
        %769 = vmatprep.subr.mxu0 0.0
        %770 = vmatpush1.msra.mxu0 0.0
        %771 = vmatprep.subr.mxu0 0.0
        %772 = vmatpush1.msra.mxu0 0.0
        %773 = vmatprep.subr.mxu0 0.0
        %774 = vmatpush1.msra.mxu0 0.0
        %775 = vmatprep.subr.mxu0 0.0
        %776 = vmatpush1.msra.mxu0 0.0
        %777 = vmatprep.subr.mxu0 0.0
        %778 = vmatpush1.msra.mxu0 0.0
        %779 = vmatprep.subr.mxu0 0.0
        %780 = vmatpush1.msra.mxu0 0.0
        %781 = vmatprep.subr.mxu0 0.0
        %782 = vmatpush1.msra.mxu0 0.0
        %783 = vmatprep.subr.mxu0 0.0
        %784 = vmatpush1.msra.mxu0 0.0
        %785 = vmatprep.subr.mxu0 0.0
        %786 = vmatpush1.msra.mxu0 0.0
        %787 = vmatprep.subr.mxu0 0.0
        %788 = vmatpush1.msra.mxu0 0.0
        %789 = vmatprep.subr.mxu0 0.0
        %790 = vmatpush1.msra.mxu0 0.0
        %791 = vmatprep.subr.mxu0 0.0
        %792 = vmatpush1.msra.mxu0 0.0
        %793 = vmatprep.subr.mxu0 0.0
        %794 = vmatpush1.msra.mxu0 0.0
        %795 = vmatprep.subr.mxu0 0.0
        %796 = vmatpush1.msra.mxu0 0.0
        %797 = vmatprep.subr.mxu0 0.0
        %798 = vmatpush1.msra.mxu0 0.0
        %799 = vmatprep.subr.mxu0 0.0
        %800 = vmatpush1.msra.mxu0 0.0
        %801 = vmatprep.subr.mxu0 0.0
        %802 = vmatpush1.msra.mxu0 0.0
        %803 = vmatprep.subr.mxu0 0.0
        %804 = vmatpush1.msra.mxu0 0.0
        %805 = vmatprep.subr.mxu0 0.0
        %806 = vmatpush1.msra.mxu0 0.0
        %807 = vmatprep.subr.mxu0 0.0
        %808 = vmatpush1.msra.mxu0 0.0
        %809 = vmatprep.mubr.f32.mxu0 0.0
        %810 = vmatmul.mubr.f32.gmra.mrb[0].mxu0 %v354
        %v811 = vpop.f32.mrb[0].mxu0
        %v812 = vadd.f32 0.0, %v811
        %v813 = vpop.f32.mrb[0].mxu0
        %v814 = vadd.f32 0.0, %v813
        %815 = vdwg.mxu0
        %v816 = vmax.f32 %v812, -100000.0
        %v817 = vmax.f32 %v814, -100000.0
        %v818 = vmin.f32 %v816, 100000.0
        %v819 = vmin.f32 %v817, 100000.0
        %s820 = scalar_lea.vmem %s211, 32 [#allocation2]
        %821 = vst [vmem:[%s820] sm:$0xff] %v818
        %822 = vst [vmem:[%s820 + $0x8] sm:$0xff] %v819
        %s823 = scalar_lea.vmem %s217, 48
        %v824 = vld [vmem:[%s823] sm:$0xff]
        %v825 = vld [vmem:[%s823 + $0x8] sm:$0xff]
        %v826 = vmax.f32 %v824, 1e-06
        %v827 = vmax.f32 %v825, 1e-06
        %v828 = vmin.f32 %v826, 60.0
        %v829 = vmin.f32 %v827, 60.0
        %v830 = vlog2.pop %v828
        %v831 = vmul.f32 %v830, 0.6931472
        %v832 = vlog2.pop %v829
        %v833 = vmul.f32 %v832, 0.6931472
        %s834 = scalar_lea.vmem %s224, 48
        %v835 = vld [vmem:[%s834] sm:$0xff]
        %v836 = vld [vmem:[%s834 + $0x8] sm:$0xff]
        %838 = vset.pattern.permute.xlu0 0
        %839 = vperm.xlu0 %838, %v835
        %v840 = vpop.permute.xlu0 %839
        %843 = vset.pattern.permute.xlu0 0
        %844 = vperm.xlu0 %843, %v836
        %v845 = vpop.permute.xlu0 %844
        %847 = vmatprep.subr.mxu0 %v833
        %848 = vmatpush1.msra.mxu0 %v831
        %849 = vmatprep.subr.mxu0 0.0
        %850 = vmatpush1.msra.mxu0 0.0
        %851 = vmatprep.subr.mxu0 0.0
        %852 = vmatpush1.msra.mxu0 0.0
        %853 = vmatprep.subr.mxu0 0.0
        %854 = vmatpush1.msra.mxu0 0.0
        %855 = vmatprep.subr.mxu0 0.0
        %856 = vmatpush1.msra.mxu0 0.0
        %857 = vmatprep.subr.mxu0 0.0
        %858 = vmatpush1.msra.mxu0 0.0
        %859 = vmatprep.subr.mxu0 0.0
        %860 = vmatpush1.msra.mxu0 0.0
        %861 = vmatprep.subr.mxu0 0.0
        %862 = vmatpush1.msra.mxu0 0.0
        %863 = vmatprep.subr.mxu0 0.0
        %864 = vmatpush1.msra.mxu0 0.0
        %865 = vmatprep.subr.mxu0 0.0
        %866 = vmatpush1.msra.mxu0 0.0
        %867 = vmatprep.subr.mxu0 0.0
        %868 = vmatpush1.msra.mxu0 0.0
        %869 = vmatprep.subr.mxu0 0.0
        %870 = vmatpush1.msra.mxu0 0.0
        %871 = vmatprep.subr.mxu0 0.0
        %872 = vmatpush1.msra.mxu0 0.0
        %873 = vmatprep.subr.mxu0 0.0
        %874 = vmatpush1.msra.mxu0 0.0
        %875 = vmatprep.subr.mxu0 0.0
        %876 = vmatpush1.msra.mxu0 0.0
        %877 = vmatprep.subr.mxu0 0.0
        %878 = vmatpush1.msra.mxu0 0.0
        %879 = vmatprep.subr.mxu0 0.0
        %880 = vmatpush1.msra.mxu0 0.0
        %881 = vmatprep.subr.mxu0 0.0
        %882 = vmatpush1.msra.mxu0 0.0
        %883 = vmatprep.subr.mxu0 0.0
        %884 = vmatpush1.msra.mxu0 0.0
        %885 = vmatprep.subr.mxu0 0.0
        %886 = vmatpush1.msra.mxu0 0.0
        %887 = vmatprep.subr.mxu0 0.0
        %888 = vmatpush1.msra.mxu0 0.0
        %889 = vmatprep.subr.mxu0 0.0
        %890 = vmatpush1.msra.mxu0 0.0
        %891 = vmatprep.subr.mxu0 0.0
        %892 = vmatpush1.msra.mxu0 0.0
        %893 = vmatprep.subr.mxu0 0.0
        %894 = vmatpush1.msra.mxu0 0.0
        %895 = vmatprep.subr.mxu0 0.0
        %896 = vmatpush1.msra.mxu0 0.0
        %897 = vmatprep.subr.mxu0 0.0
        %898 = vmatpush1.msra.mxu0 0.0
        %899 = vmatprep.subr.mxu0 0.0
        %900 = vmatpush1.msra.mxu0 0.0
        %901 = vmatprep.subr.mxu0 0.0
        %902 = vmatpush1.msra.mxu0 0.0
        %903 = vmatprep.subr.mxu0 0.0
        %904 = vmatpush1.msra.mxu0 0.0
        %905 = vmatprep.subr.mxu0 0.0
        %906 = vmatpush1.msra.mxu0 0.0
        %907 = vmatprep.subr.mxu0 0.0
        %908 = vmatpush1.msra.mxu0 0.0
        %909 = vmatprep.subr.mxu0 0.0
        %910 = vmatpush1.msra.mxu0 0.0
        %911 = vmatprep.mubr.f32.mxu0 0.0
        %912 = vmatmul.mubr.f32.gmra.mrb[0].mxu0 %v254
        %v913 = vpop.f32.mrb[0].mxu0
        %v914 = vadd.f32 %v840, %v913
        %v915 = vpop.f32.mrb[0].mxu0
        %v916 = vadd.f32 %v840, %v915
        %917 = vmatprep.mubr.f32.mxu0 0.0
        %918 = vmatmul.mubr.f32.gmra.mrb[0].mxu0 %v257
        %v919 = vpop.f32.mrb[0].mxu0
        %v920 = vadd.f32 %v845, %v919
        %v921 = vpop.f32.mrb[0].mxu0
        %v922 = vadd.f32 %v845, %v921
        %923 = vdwg.mxu0
        %v924 = vmax.f32 %v914, -30.0
        %v925 = vmax.f32 %v916, -30.0
        %v926 = vmax.f32 %v920, -30.0
        %v927 = vmax.f32 %v922, -30.0
        %v928 = vmin.f32 %v924, 30.0
        %v929 = vmin.f32 %v925, 30.0
        %v930 = vmin.f32 %v926, 30.0
        %v931 = vmin.f32 %v927, 30.0
        %v932 = vmul.f32 %v928, 1.442695
        %v933 = vpow.pop %v932
        %v934 = vmul.f32 %v929, 1.442695
        %v935 = vpow.pop %v934
        %v936 = vmul.f32 %v930, 1.442695
        %v937 = vpow.pop %v936
        %v938 = vmul.f32 %v931, 1.442695
        %v939 = vpow.pop %v938
        %940 = vmatprep.subr.mxu0 %v935
        %941 = vmatpush1.msra.mxu0 %v933
        %942 = vmatprep.subr.mxu0 %v939
        %943 = vmatpush1.msra.mxu0 %v937
        %944 = vmatprep.subr.mxu0 0.0
        %945 = vmatpush1.msra.mxu0 0.0
        %946 = vmatprep.subr.mxu0 0.0
        %947 = vmatpush1.msra.mxu0 0.0
        %948 = vmatprep.subr.mxu0 0.0
        %949 = vmatpush1.msra.mxu0 0.0
        %950 = vmatprep.subr.mxu0 0.0
        %951 = vmatpush1.msra.mxu0 0.0
        %952 = vmatprep.subr.mxu0 0.0
        %953 = vmatpush1.msra.mxu0 0.0
        %954 = vmatprep.subr.mxu0 0.0
        %955 = vmatpush1.msra.mxu0 0.0
        %956 = vmatprep.subr.mxu0 0.0
        %957 = vmatpush1.msra.mxu0 0.0
        %958 = vmatprep.subr.mxu0 0.0
        %959 = vmatpush1.msra.mxu0 0.0
        %960 = vmatprep.subr.mxu0 0.0
        %961 = vmatpush1.msra.mxu0 0.0
        %962 = vmatprep.subr.mxu0 0.0
        %963 = vmatpush1.msra.mxu0 0.0
        %964 = vmatprep.subr.mxu0 0.0
        %965 = vmatpush1.msra.mxu0 0.0
        %966 = vmatprep.subr.mxu0 0.0
        %967 = vmatpush1.msra.mxu0 0.0
        %968 = vmatprep.subr.mxu0 0.0
        %969 = vmatpush1.msra.mxu0 0.0
        %970 = vmatprep.subr.mxu0 0.0
        %971 = vmatpush1.msra.mxu0 0.0
        %972 = vmatprep.subr.mxu0 0.0
        %973 = vmatpush1.msra.mxu0 0.0
        %974 = vmatprep.subr.mxu0 0.0
        %975 = vmatpush1.msra.mxu0 0.0
        %976 = vmatprep.subr.mxu0 0.0
        %977 = vmatpush1.msra.mxu0 0.0
        %978 = vmatprep.subr.mxu0 0.0
        %979 = vmatpush1.msra.mxu0 0.0
        %980 = vmatprep.subr.mxu0 0.0
        %981 = vmatpush1.msra.mxu0 0.0
        %982 = vmatprep.subr.mxu0 0.0
        %983 = vmatpush1.msra.mxu0 0.0
        %984 = vmatprep.subr.mxu0 0.0
        %985 = vmatpush1.msra.mxu0 0.0
        %986 = vmatprep.subr.mxu0 0.0
        %987 = vmatpush1.msra.mxu0 0.0
        %988 = vmatprep.subr.mxu0 0.0
        %989 = vmatpush1.msra.mxu0 0.0
        %990 = vmatprep.subr.mxu0 0.0
        %991 = vmatpush1.msra.mxu0 0.0
        %992 = vmatprep.subr.mxu0 0.0
        %993 = vmatpush1.msra.mxu0 0.0
        %994 = vmatprep.subr.mxu0 0.0
        %995 = vmatpush1.msra.mxu0 0.0
        %996 = vmatprep.subr.mxu0 0.0
        %997 = vmatpush1.msra.mxu0 0.0
        %998 = vmatprep.subr.mxu0 0.0
        %999 = vmatpush1.msra.mxu0 0.0
        %1000 = vmatprep.subr.mxu0 0.0
        %1001 = vmatpush1.msra.mxu0 0.0
        %1002 = vmatprep.subr.mxu0 0.0
        %1003 = vmatpush1.msra.mxu0 0.0
        %1004 = vmatprep.mubr.f32.mxu0 0.0
        %1005 = vmatmul.mubr.f32.gmra.mrb[0].mxu0 %v354
        %v1006 = vpop.f32.mrb[0].mxu0
        %v1007 = vadd.f32 0.0, %v1006
        %v1008 = vpop.f32.mrb[0].mxu0
        %v1009 = vadd.f32 0.0, %v1008
        %1010 = vdwg.mxu0
        %v1011 = vmax.f32 %v1007, -100000.0
        %v1012 = vmax.f32 %v1009, -100000.0
        %v1013 = vmin.f32 %v1011, 100000.0
        %v1014 = vmin.f32 %v1012, 100000.0
        %s1015 = scalar_lea.vmem %s211, 48 [#allocation2]
        %1016 = vst [vmem:[%s1015] sm:$0xff] %v1013
        %1017 = vst [vmem:[%s1015 + $0x8] sm:$0xff] %v1014
        %s1018 = scalar_lea.vmem %s217, 64
        %v1019 = vld [vmem:[%s1018] sm:$0xff]
        %v1020 = vld [vmem:[%s1018 + $0x8] sm:$0xff]
        %v1021 = vmax.f32 %v1019, 1e-06
        %v1022 = vmax.f32 %v1020, 1e-06
        %v1023 = vmin.f32 %v1021, 60.0
        %v1024 = vmin.f32 %v1022, 60.0
        %v1025 = vlog2.pop %v1023
        %v1026 = vmul.f32 %v1025, 0.6931472
        %v1027 = vlog2.pop %v1024
        %v1028 = vmul.f32 %v1027, 0.6931472
        %s1029 = scalar_lea.vmem %s224, 64
        %v1030 = vld [vmem:[%s1029] sm:$0xff]
        %v1031 = vld [vmem:[%s1029 + $0x8] sm:$0xff]
        %1033 = vset.pattern.permute.xlu0 0
        %1034 = vperm.xlu0 %1033, %v1030
        %v1035 = vpop.permute.xlu0 %1034
        %1038 = vset.pattern.permute.xlu0 0
        %1039 = vperm.xlu0 %1038, %v1031
        %v1040 = vpop.permute.xlu0 %1039
        %1042 = vmatprep.subr.mxu0 %v1028
        %1043 = vmatpush1.msra.mxu0 %v1026
        %1044 = vmatprep.subr.mxu0 0.0
        %1045 = vmatpush1.msra.mxu0 0.0
        %1046 = vmatprep.subr.mxu0 0.0
        %1047 = vmatpush1.msra.mxu0 0.0
        %1048 = vmatprep.subr.mxu0 0.0
        %1049 = vmatpush1.msra.mxu0 0.0
        %1050 = vmatprep.subr.mxu0 0.0
        %1051 = vmatpush1.msra.mxu0 0.0
        %1052 = vmatprep.subr.mxu0 0.0
        %1053 = vmatpush1.msra.mxu0 0.0
        %1054 = vmatprep.subr.mxu0 0.0
        %1055 = vmatpush1.msra.mxu0 0.0
        %1056 = vmatprep.subr.mxu0 0.0
        %1057 = vmatpush1.msra.mxu0 0.0
        %1058 = vmatprep.subr.mxu0 0.0
        %1059 = vmatpush1.msra.mxu0 0.0
        %1060 = vmatprep.subr.mxu0 0.0
        %1061 = vmatpush1.msra.mxu0 0.0
        %1062 = vmatprep.subr.mxu0 0.0
        %1063 = vmatpush1.msra.mxu0 0.0
        %1064 = vmatprep.subr.mxu0 0.0
        %1065 = vmatpush1.msra.mxu0 0.0
        %1066 = vmatprep.subr.mxu0 0.0
        %1067 = vmatpush1.msra.mxu0 0.0
        %1068 = vmatprep.subr.mxu0 0.0
        %1069 = vmatpush1.msra.mxu0 0.0
        %1070 = vmatprep.subr.mxu0 0.0
        %1071 = vmatpush1.msra.mxu0 0.0
        %1072 = vmatprep.subr.mxu0 0.0
        %1073 = vmatpush1.msra.mxu0 0.0
        %1074 = vmatprep.subr.mxu0 0.0
        %1075 = vmatpush1.msra.mxu0 0.0
        %1076 = vmatprep.subr.mxu0 0.0
        %1077 = vmatpush1.msra.mxu0 0.0
        %1078 = vmatprep.subr.mxu0 0.0
        %1079 = vmatpush1.msra.mxu0 0.0
        %1080 = vmatprep.subr.mxu0 0.0
        %1081 = vmatpush1.msra.mxu0 0.0
        %1082 = vmatprep.subr.mxu0 0.0
        %1083 = vmatpush1.msra.mxu0 0.0
        %1084 = vmatprep.subr.mxu0 0.0
        %1085 = vmatpush1.msra.mxu0 0.0
        %1086 = vmatprep.subr.mxu0 0.0
        %1087 = vmatpush1.msra.mxu0 0.0
        %1088 = vmatprep.subr.mxu0 0.0
        %1089 = vmatpush1.msra.mxu0 0.0
        %1090 = vmatprep.subr.mxu0 0.0
        %1091 = vmatpush1.msra.mxu0 0.0
        %1092 = vmatprep.subr.mxu0 0.0
        %1093 = vmatpush1.msra.mxu0 0.0
        %1094 = vmatprep.subr.mxu0 0.0
        %1095 = vmatpush1.msra.mxu0 0.0
        %1096 = vmatprep.subr.mxu0 0.0
        %1097 = vmatpush1.msra.mxu0 0.0
        %1098 = vmatprep.subr.mxu0 0.0
        %1099 = vmatpush1.msra.mxu0 0.0
        %1100 = vmatprep.subr.mxu0 0.0
        %1101 = vmatpush1.msra.mxu0 0.0
        %1102 = vmatprep.subr.mxu0 0.0
        %1103 = vmatpush1.msra.mxu0 0.0
        %1104 = vmatprep.subr.mxu0 0.0
        %1105 = vmatpush1.msra.mxu0 0.0
        %1106 = vmatprep.mubr.f32.mxu0 0.0
        %1107 = vmatmul.mubr.f32.gmra.mrb[0].mxu0 %v254
        %v1108 = vpop.f32.mrb[0].mxu0
        %v1109 = vadd.f32 %v1035, %v1108
        %v1110 = vpop.f32.mrb[0].mxu0
        %v1111 = vadd.f32 %v1035, %v1110
        %1112 = vmatprep.mubr.f32.mxu0 0.0
        %1113 = vmatmul.mubr.f32.gmra.mrb[0].mxu0 %v257
        %v1114 = vpop.f32.mrb[0].mxu0
        %v1115 = vadd.f32 %v1040, %v1114
        %v1116 = vpop.f32.mrb[0].mxu0
        %v1117 = vadd.f32 %v1040, %v1116
        %1118 = vdwg.mxu0
        %v1119 = vmax.f32 %v1109, -30.0
        %v1120 = vmax.f32 %v1111, -30.0
        %v1121 = vmax.f32 %v1115, -30.0
        %v1122 = vmax.f32 %v1117, -30.0
        %v1123 = vmin.f32 %v1119, 30.0
        %v1124 = vmin.f32 %v1120, 30.0
        %v1125 = vmin.f32 %v1121, 30.0
        %v1126 = vmin.f32 %v1122, 30.0
        %v1127 = vmul.f32 %v1123, 1.442695
        %v1128 = vpow.pop %v1127
        %v1129 = vmul.f32 %v1124, 1.442695
        %v1130 = vpow.pop %v1129
        %v1131 = vmul.f32 %v1125, 1.442695
        %v1132 = vpow.pop %v1131
        %v1133 = vmul.f32 %v1126, 1.442695
        %v1134 = vpow.pop %v1133
        %1135 = vmatprep.subr.mxu0 %v1130
        %1136 = vmatpush1.msra.mxu0 %v1128
        %1137 = vmatprep.subr.mxu0 %v1134
        %1138 = vmatpush1.msra.mxu0 %v1132
        %1139 = vmatprep.subr.mxu0 0.0
        %1140 = vmatpush1.msra.mxu0 0.0
        %1141 = vmatprep.subr.mxu0 0.0
        %1142 = vmatpush1.msra.mxu0 0.0
        %1143 = vmatprep.subr.mxu0 0.0
        %1144 = vmatpush1.msra.mxu0 0.0
        %1145 = vmatprep.subr.mxu0 0.0
        %1146 = vmatpush1.msra.mxu0 0.0
        %1147 = vmatprep.subr.mxu0 0.0
        %1148 = vmatpush1.msra.mxu0 0.0
        %1149 = vmatprep.subr.mxu0 0.0
        %1150 = vmatpush1.msra.mxu0 0.0
        %1151 = vmatprep.subr.mxu0 0.0
        %1152 = vmatpush1.msra.mxu0 0.0
        %1153 = vmatprep.subr.mxu0 0.0
        %1154 = vmatpush1.msra.mxu0 0.0
        %1155 = vmatprep.subr.mxu0 0.0
        %1156 = vmatpush1.msra.mxu0 0.0
        %1157 = vmatprep.subr.mxu0 0.0
        %1158 = vmatpush1.msra.mxu0 0.0
        %1159 = vmatprep.subr.mxu0 0.0
        %1160 = vmatpush1.msra.mxu0 0.0
        %1161 = vmatprep.subr.mxu0 0.0
        %1162 = vmatpush1.msra.mxu0 0.0
        %1163 = vmatprep.subr.mxu0 0.0
        %1164 = vmatpush1.msra.mxu0 0.0
        %1165 = vmatprep.subr.mxu0 0.0
        %1166 = vmatpush1.msra.mxu0 0.0
        %1167 = vmatprep.subr.mxu0 0.0
        %1168 = vmatpush1.msra.mxu0 0.0
        %1169 = vmatprep.subr.mxu0 0.0
        %1170 = vmatpush1.msra.mxu0 0.0
        %1171 = vmatprep.subr.mxu0 0.0
        %1172 = vmatpush1.msra.mxu0 0.0
        %1173 = vmatprep.subr.mxu0 0.0
        %1174 = vmatpush1.msra.mxu0 0.0
        %1175 = vmatprep.subr.mxu0 0.0
        %1176 = vmatpush1.msra.mxu0 0.0
        %1177 = vmatprep.subr.mxu0 0.0
        %1178 = vmatpush1.msra.mxu0 0.0
        %1179 = vmatprep.subr.mxu0 0.0
        %1180 = vmatpush1.msra.mxu0 0.0
        %1181 = vmatprep.subr.mxu0 0.0
        %1182 = vmatpush1.msra.mxu0 0.0
        %1183 = vmatprep.subr.mxu0 0.0
        %1184 = vmatpush1.msra.mxu0 0.0
        %1185 = vmatprep.subr.mxu0 0.0
        %1186 = vmatpush1.msra.mxu0 0.0
        %1187 = vmatprep.subr.mxu0 0.0
        %1188 = vmatpush1.msra.mxu0 0.0
        %1189 = vmatprep.subr.mxu0 0.0
        %1190 = vmatpush1.msra.mxu0 0.0
        %1191 = vmatprep.subr.mxu0 0.0
        %1192 = vmatpush1.msra.mxu0 0.0
        %1193 = vmatprep.subr.mxu0 0.0
        %1194 = vmatpush1.msra.mxu0 0.0
        %1195 = vmatprep.subr.mxu0 0.0
        %1196 = vmatpush1.msra.mxu0 0.0
        %1197 = vmatprep.subr.mxu0 0.0
        %1198 = vmatpush1.msra.mxu0 0.0
        %1199 = vmatprep.mubr.f32.mxu0 0.0
        %1200 = vmatmul.mubr.f32.gmra.mrb[0].mxu0 %v354
        %v1201 = vpop.f32.mrb[0].mxu0
        %v1202 = vadd.f32 0.0, %v1201
        %v1203 = vpop.f32.mrb[0].mxu0
        %v1204 = vadd.f32 0.0, %v1203
        %1205 = vdwg.mxu0
        %v1206 = vmax.f32 %v1202, -100000.0
        %v1207 = vmax.f32 %v1204, -100000.0
        %v1208 = vmin.f32 %v1206, 100000.0
        %v1209 = vmin.f32 %v1207, 100000.0
        %s1210 = scalar_lea.vmem %s211, 64 [#allocation2]
        %1211 = vst [vmem:[%s1210] sm:$0xff] %v1208
        %1212 = vst [vmem:[%s1210 + $0x8] sm:$0xff] %v1209
        %s1213 = scalar_lea.vmem %s217, 80
        %v1214 = vld [vmem:[%s1213] sm:$0xff]
        %v1215 = vld [vmem:[%s1213 + $0x8] sm:$0xff]
        %v1216 = vmax.f32 %v1214, 1e-06
        %v1217 = vmax.f32 %v1215, 1e-06
        %v1218 = vmin.f32 %v1216, 60.0
        %v1219 = vmin.f32 %v1217, 60.0
        %v1220 = vlog2.pop %v1218
        %v1221 = vmul.f32 %v1220, 0.6931472
        %v1222 = vlog2.pop %v1219
        %v1223 = vmul.f32 %v1222, 0.6931472
        %s1224 = scalar_lea.vmem %s224, 80
        %v1225 = vld [vmem:[%s1224] sm:$0xff]
        %v1226 = vld [vmem:[%s1224 + $0x8] sm:$0xff]
        %1228 = vset.pattern.permute.xlu0 0
        %1229 = vperm.xlu0 %1228, %v1225
        %v1230 = vpop.permute.xlu0 %1229
        %1233 = vset.pattern.permute.xlu0 0
        %1234 = vperm.xlu0 %1233, %v1226
        %v1235 = vpop.permute.xlu0 %1234
        %1237 = vmatprep.subr.mxu0 %v1223
        %1238 = vmatpush1.msra.mxu0 %v1221
        %1239 = vmatprep.subr.mxu0 0.0
        %1240 = vmatpush1.msra.mxu0 0.0
        %1241 = vmatprep.subr.mxu0 0.0
        %1242 = vmatpush1.msra.mxu0 0.0
        %1243 = vmatprep.subr.mxu0 0.0
        %1244 = vmatpush1.msra.mxu0 0.0
        %1245 = vmatprep.subr.mxu0 0.0
        %1246 = vmatpush1.msra.mxu0 0.0
        %1247 = vmatprep.subr.mxu0 0.0
        %1248 = vmatpush1.msra.mxu0 0.0
        %1249 = vmatprep.subr.mxu0 0.0
        %1250 = vmatpush1.msra.mxu0 0.0
        %1251 = vmatprep.subr.mxu0 0.0
        %1252 = vmatpush1.msra.mxu0 0.0
        %1253 = vmatprep.subr.mxu0 0.0
        %1254 = vmatpush1.msra.mxu0 0.0
        %1255 = vmatprep.subr.mxu0 0.0
        %1256 = vmatpush1.msra.mxu0 0.0
        %1257 = vmatprep.subr.mxu0 0.0
        %1258 = vmatpush1.msra.mxu0 0.0
        %1259 = vmatprep.subr.mxu0 0.0
        %1260 = vmatpush1.msra.mxu0 0.0
        %1261 = vmatprep.subr.mxu0 0.0
        %1262 = vmatpush1.msra.mxu0 0.0
        %1263 = vmatprep.subr.mxu0 0.0
        %1264 = vmatpush1.msra.mxu0 0.0
        %1265 = vmatprep.subr.mxu0 0.0
        %1266 = vmatpush1.msra.mxu0 0.0
        %1267 = vmatprep.subr.mxu0 0.0
        %1268 = vmatpush1.msra.mxu0 0.0
        %1269 = vmatprep.subr.mxu0 0.0
        %1270 = vmatpush1.msra.mxu0 0.0
        %1271 = vmatprep.subr.mxu0 0.0
        %1272 = vmatpush1.msra.mxu0 0.0
        %1273 = vmatprep.subr.mxu0 0.0
        %1274 = vmatpush1.msra.mxu0 0.0
        %1275 = vmatprep.subr.mxu0 0.0
        %1276 = vmatpush1.msra.mxu0 0.0
        %1277 = vmatprep.subr.mxu0 0.0
        %1278 = vmatpush1.msra.mxu0 0.0
        %1279 = vmatprep.subr.mxu0 0.0
        %1280 = vmatpush1.msra.mxu0 0.0
        %1281 = vmatprep.subr.mxu0 0.0
        %1282 = vmatpush1.msra.mxu0 0.0
        %1283 = vmatprep.subr.mxu0 0.0
        %1284 = vmatpush1.msra.mxu0 0.0
        %1285 = vmatprep.subr.mxu0 0.0
        %1286 = vmatpush1.msra.mxu0 0.0
        %1287 = vmatprep.subr.mxu0 0.0
        %1288 = vmatpush1.msra.mxu0 0.0
        %1289 = vmatprep.subr.mxu0 0.0
        %1290 = vmatpush1.msra.mxu0 0.0
        %1291 = vmatprep.subr.mxu0 0.0
        %1292 = vmatpush1.msra.mxu0 0.0
        %1293 = vmatprep.subr.mxu0 0.0
        %1294 = vmatpush1.msra.mxu0 0.0
        %1295 = vmatprep.subr.mxu0 0.0
        %1296 = vmatpush1.msra.mxu0 0.0
        %1297 = vmatprep.subr.mxu0 0.0
        %1298 = vmatpush1.msra.mxu0 0.0
        %1299 = vmatprep.subr.mxu0 0.0
        %1300 = vmatpush1.msra.mxu0 0.0
        %1301 = vmatprep.mubr.f32.mxu0 0.0
        %1302 = vmatmul.mubr.f32.gmra.mrb[0].mxu0 %v254
        %v1303 = vpop.f32.mrb[0].mxu0
        %v1304 = vadd.f32 %v1230, %v1303
        %v1305 = vpop.f32.mrb[0].mxu0
        %v1306 = vadd.f32 %v1230, %v1305
        %1307 = vmatprep.mubr.f32.mxu0 0.0
        %1308 = vmatmul.mubr.f32.gmra.mrb[0].mxu0 %v257
        %v1309 = vpop.f32.mrb[0].mxu0
        %v1310 = vadd.f32 %v1235, %v1309
        %v1311 = vpop.f32.mrb[0].mxu0
        %v1312 = vadd.f32 %v1235, %v1311
        %1313 = vdwg.mxu0
        %v1314 = vmax.f32 %v1304, -30.0
        %v1315 = vmax.f32 %v1306, -30.0
        %v1316 = vmax.f32 %v1310, -30.0
        %v1317 = vmax.f32 %v1312, -30.0
        %v1318 = vmin.f32 %v1314, 30.0
        %v1319 = vmin.f32 %v1315, 30.0
        %v1320 = vmin.f32 %v1316, 30.0
        %v1321 = vmin.f32 %v1317, 30.0
        %v1322 = vmul.f32 %v1318, 1.442695
        %v1323 = vpow.pop %v1322
        %v1324 = vmul.f32 %v1319, 1.442695
        %v1325 = vpow.pop %v1324
        %v1326 = vmul.f32 %v1320, 1.442695
        %v1327 = vpow.pop %v1326
        %v1328 = vmul.f32 %v1321, 1.442695
        %v1329 = vpow.pop %v1328
        %1330 = vmatprep.subr.mxu0 %v1325
        %1331 = vmatpush1.msra.mxu0 %v1323
        %1332 = vmatprep.subr.mxu0 %v1329
        %1333 = vmatpush1.msra.mxu0 %v1327
        %1334 = vmatprep.subr.mxu0 0.0
        %1335 = vmatpush1.msra.mxu0 0.0
        %1336 = vmatprep.subr.mxu0 0.0
        %1337 = vmatpush1.msra.mxu0 0.0
        %1338 = vmatprep.subr.mxu0 0.0
        %1339 = vmatpush1.msra.mxu0 0.0
        %1340 = vmatprep.subr.mxu0 0.0
        %1341 = vmatpush1.msra.mxu0 0.0
        %1342 = vmatprep.subr.mxu0 0.0
        %1343 = vmatpush1.msra.mxu0 0.0
        %1344 = vmatprep.subr.mxu0 0.0
        %1345 = vmatpush1.msra.mxu0 0.0
        %1346 = vmatprep.subr.mxu0 0.0
        %1347 = vmatpush1.msra.mxu0 0.0
        %1348 = vmatprep.subr.mxu0 0.0
        %1349 = vmatpush1.msra.mxu0 0.0
        %1350 = vmatprep.subr.mxu0 0.0
        %1351 = vmatpush1.msra.mxu0 0.0
        %1352 = vmatprep.subr.mxu0 0.0
        %1353 = vmatpush1.msra.mxu0 0.0
        %1354 = vmatprep.subr.mxu0 0.0
        %1355 = vmatpush1.msra.mxu0 0.0
        %1356 = vmatprep.subr.mxu0 0.0
        %1357 = vmatpush1.msra.mxu0 0.0
        %1358 = vmatprep.subr.mxu0 0.0
        %1359 = vmatpush1.msra.mxu0 0.0
        %1360 = vmatprep.subr.mxu0 0.0
        %1361 = vmatpush1.msra.mxu0 0.0
        %1362 = vmatprep.subr.mxu0 0.0
        %1363 = vmatpush1.msra.mxu0 0.0
        %1364 = vmatprep.subr.mxu0 0.0
        %1365 = vmatpush1.msra.mxu0 0.0
        %1366 = vmatprep.subr.mxu0 0.0
        %1367 = vmatpush1.msra.mxu0 0.0
        %1368 = vmatprep.subr.mxu0 0.0
        %1369 = vmatpush1.msra.mxu0 0.0
        %1370 = vmatprep.subr.mxu0 0.0
        %1371 = vmatpush1.msra.mxu0 0.0
        %1372 = vmatprep.subr.mxu0 0.0
        %1373 = vmatpush1.msra.mxu0 0.0
        %1374 = vmatprep.subr.mxu0 0.0
        %1375 = vmatpush1.msra.mxu0 0.0
        %1376 = vmatprep.subr.mxu0 0.0
        %1377 = vmatpush1.msra.mxu0 0.0
        %1378 = vmatprep.subr.mxu0 0.0
        %1379 = vmatpush1.msra.mxu0 0.0
        %1380 = vmatprep.subr.mxu0 0.0
        %1381 = vmatpush1.msra.mxu0 0.0
        %1382 = vmatprep.subr.mxu0 0.0
        %1383 = vmatpush1.msra.mxu0 0.0
        %1384 = vmatprep.subr.mxu0 0.0
        %1385 = vmatpush1.msra.mxu0 0.0
        %1386 = vmatprep.subr.mxu0 0.0
        %1387 = vmatpush1.msra.mxu0 0.0
        %1388 = vmatprep.subr.mxu0 0.0
        %1389 = vmatpush1.msra.mxu0 0.0
        %1390 = vmatprep.subr.mxu0 0.0
        %1391 = vmatpush1.msra.mxu0 0.0
        %1392 = vmatprep.subr.mxu0 0.0
        %1393 = vmatpush1.msra.mxu0 0.0
        %1394 = vmatprep.mubr.f32.mxu0 0.0
        %1395 = vmatmul.mubr.f32.gmra.mrb[0].mxu0 %v354
        %v1396 = vpop.f32.mrb[0].mxu0
        %v1397 = vadd.f32 0.0, %v1396
        %v1398 = vpop.f32.mrb[0].mxu0
        %v1399 = vadd.f32 0.0, %v1398
        %1400 = vdwg.mxu0
        %v1401 = vmax.f32 %v1397, -100000.0
        %v1402 = vmax.f32 %v1399, -100000.0
        %v1403 = vmin.f32 %v1401, 100000.0
        %v1404 = vmin.f32 %v1402, 100000.0
        %s1405 = scalar_lea.vmem %s211, 80 [#allocation2]
        %1406 = vst [vmem:[%s1405] sm:$0xff] %v1403
        %1407 = vst [vmem:[%s1405 + $0x8] sm:$0xff] %v1404
        %s1408 = scalar_lea.vmem %s217, 96
        %v1409 = vld [vmem:[%s1408] sm:$0xff]
        %v1410 = vld [vmem:[%s1408 + $0x8] sm:$0xff]
        %v1411 = vmax.f32 %v1409, 1e-06
        %v1412 = vmax.f32 %v1410, 1e-06
        %v1413 = vmin.f32 %v1411, 60.0
        %v1414 = vmin.f32 %v1412, 60.0
        %v1415 = vlog2.pop %v1413
        %v1416 = vmul.f32 %v1415, 0.6931472
        %v1417 = vlog2.pop %v1414
        %v1418 = vmul.f32 %v1417, 0.6931472
        %s1419 = scalar_lea.vmem %s224, 96
        %v1420 = vld [vmem:[%s1419] sm:$0xff]
        %v1421 = vld [vmem:[%s1419 + $0x8] sm:$0xff]
        %1423 = vset.pattern.permute.xlu0 0
        %1424 = vperm.xlu0 %1423, %v1420
        %v1425 = vpop.permute.xlu0 %1424
        %1428 = vset.pattern.permute.xlu0 0
        %1429 = vperm.xlu0 %1428, %v1421
        %v1430 = vpop.permute.xlu0 %1429
        %1432 = vmatprep.subr.mxu0 %v1418
        %1433 = vmatpush1.msra.mxu0 %v1416
        %1434 = vmatprep.subr.mxu0 0.0
        %1435 = vmatpush1.msra.mxu0 0.0
        %1436 = vmatprep.subr.mxu0 0.0
        %1437 = vmatpush1.msra.mxu0 0.0
        %1438 = vmatprep.subr.mxu0 0.0
        %1439 = vmatpush1.msra.mxu0 0.0
        %1440 = vmatprep.subr.mxu0 0.0
        %1441 = vmatpush1.msra.mxu0 0.0
        %1442 = vmatprep.subr.mxu0 0.0
        %1443 = vmatpush1.msra.mxu0 0.0
        %1444 = vmatprep.subr.mxu0 0.0
        %1445 = vmatpush1.msra.mxu0 0.0
        %1446 = vmatprep.subr.mxu0 0.0
        %1447 = vmatpush1.msra.mxu0 0.0
        %1448 = vmatprep.subr.mxu0 0.0
        %1449 = vmatpush1.msra.mxu0 0.0
        %1450 = vmatprep.subr.mxu0 0.0
        %1451 = vmatpush1.msra.mxu0 0.0
        %1452 = vmatprep.subr.mxu0 0.0
        %1453 = vmatpush1.msra.mxu0 0.0
        %1454 = vmatprep.subr.mxu0 0.0
        %1455 = vmatpush1.msra.mxu0 0.0
        %1456 = vmatprep.subr.mxu0 0.0
        %1457 = vmatpush1.msra.mxu0 0.0
        %1458 = vmatprep.subr.mxu0 0.0
        %1459 = vmatpush1.msra.mxu0 0.0
        %1460 = vmatprep.subr.mxu0 0.0
        %1461 = vmatpush1.msra.mxu0 0.0
        %1462 = vmatprep.subr.mxu0 0.0
        %1463 = vmatpush1.msra.mxu0 0.0
        %1464 = vmatprep.subr.mxu0 0.0
        %1465 = vmatpush1.msra.mxu0 0.0
        %1466 = vmatprep.subr.mxu0 0.0
        %1467 = vmatpush1.msra.mxu0 0.0
        %1468 = vmatprep.subr.mxu0 0.0
        %1469 = vmatpush1.msra.mxu0 0.0
        %1470 = vmatprep.subr.mxu0 0.0
        %1471 = vmatpush1.msra.mxu0 0.0
        %1472 = vmatprep.subr.mxu0 0.0
        %1473 = vmatpush1.msra.mxu0 0.0
        %1474 = vmatprep.subr.mxu0 0.0
        %1475 = vmatpush1.msra.mxu0 0.0
        %1476 = vmatprep.subr.mxu0 0.0
        %1477 = vmatpush1.msra.mxu0 0.0
        %1478 = vmatprep.subr.mxu0 0.0
        %1479 = vmatpush1.msra.mxu0 0.0
        %1480 = vmatprep.subr.mxu0 0.0
        %1481 = vmatpush1.msra.mxu0 0.0
        %1482 = vmatprep.subr.mxu0 0.0
        %1483 = vmatpush1.msra.mxu0 0.0
        %1484 = vmatprep.subr.mxu0 0.0
        %1485 = vmatpush1.msra.mxu0 0.0
        %1486 = vmatprep.subr.mxu0 0.0
        %1487 = vmatpush1.msra.mxu0 0.0
        %1488 = vmatprep.subr.mxu0 0.0
        %1489 = vmatpush1.msra.mxu0 0.0
        %1490 = vmatprep.subr.mxu0 0.0
        %1491 = vmatpush1.msra.mxu0 0.0
        %1492 = vmatprep.subr.mxu0 0.0
        %1493 = vmatpush1.msra.mxu0 0.0
        %1494 = vmatprep.subr.mxu0 0.0
        %1495 = vmatpush1.msra.mxu0 0.0
        %1496 = vmatprep.mubr.f32.mxu0 0.0
        %1497 = vmatmul.mubr.f32.gmra.mrb[0].mxu0 %v254
        %v1498 = vpop.f32.mrb[0].mxu0
        %v1499 = vadd.f32 %v1425, %v1498
        %v1500 = vpop.f32.mrb[0].mxu0
        %v1501 = vadd.f32 %v1425, %v1500
        %1502 = vmatprep.mubr.f32.mxu0 0.0
        %1503 = vmatmul.mubr.f32.gmra.mrb[0].mxu0 %v257
        %v1504 = vpop.f32.mrb[0].mxu0
        %v1505 = vadd.f32 %v1430, %v1504
        %v1506 = vpop.f32.mrb[0].mxu0
        %v1507 = vadd.f32 %v1430, %v1506
        %1508 = vdwg.mxu0
        %v1509 = vmax.f32 %v1499, -30.0
        %v1510 = vmax.f32 %v1501, -30.0
        %v1511 = vmax.f32 %v1505, -30.0
        %v1512 = vmax.f32 %v1507, -30.0
        %v1513 = vmin.f32 %v1509, 30.0
        %v1514 = vmin.f32 %v1510, 30.0
        %v1515 = vmin.f32 %v1511, 30.0
        %v1516 = vmin.f32 %v1512, 30.0
        %v1517 = vmul.f32 %v1513, 1.442695
        %v1518 = vpow.pop %v1517
        %v1519 = vmul.f32 %v1514, 1.442695
        %v1520 = vpow.pop %v1519
        %v1521 = vmul.f32 %v1515, 1.442695
        %v1522 = vpow.pop %v1521
        %v1523 = vmul.f32 %v1516, 1.442695
        %v1524 = vpow.pop %v1523
        %1525 = vmatprep.subr.mxu0 %v1520
        %1526 = vmatpush1.msra.mxu0 %v1518
        %1527 = vmatprep.subr.mxu0 %v1524
        %1528 = vmatpush1.msra.mxu0 %v1522
        %1529 = vmatprep.subr.mxu0 0.0
        %1530 = vmatpush1.msra.mxu0 0.0
        %1531 = vmatprep.subr.mxu0 0.0
        %1532 = vmatpush1.msra.mxu0 0.0
        %1533 = vmatprep.subr.mxu0 0.0
        %1534 = vmatpush1.msra.mxu0 0.0
        %1535 = vmatprep.subr.mxu0 0.0
        %1536 = vmatpush1.msra.mxu0 0.0
        %1537 = vmatprep.subr.mxu0 0.0
        %1538 = vmatpush1.msra.mxu0 0.0
        %1539 = vmatprep.subr.mxu0 0.0
        %1540 = vmatpush1.msra.mxu0 0.0
        %1541 = vmatprep.subr.mxu0 0.0
        %1542 = vmatpush1.msra.mxu0 0.0
        %1543 = vmatprep.subr.mxu0 0.0
        %1544 = vmatpush1.msra.mxu0 0.0
        %1545 = vmatprep.subr.mxu0 0.0
        %1546 = vmatpush1.msra.mxu0 0.0
        %1547 = vmatprep.subr.mxu0 0.0
        %1548 = vmatpush1.msra.mxu0 0.0
        %1549 = vmatprep.subr.mxu0 0.0
        %1550 = vmatpush1.msra.mxu0 0.0
        %1551 = vmatprep.subr.mxu0 0.0
        %1552 = vmatpush1.msra.mxu0 0.0
        %1553 = vmatprep.subr.mxu0 0.0
        %1554 = vmatpush1.msra.mxu0 0.0
        %1555 = vmatprep.subr.mxu0 0.0
        %1556 = vmatpush1.msra.mxu0 0.0
        %1557 = vmatprep.subr.mxu0 0.0
        %1558 = vmatpush1.msra.mxu0 0.0
        %1559 = vmatprep.subr.mxu0 0.0
        %1560 = vmatpush1.msra.mxu0 0.0
        %1561 = vmatprep.subr.mxu0 0.0
        %1562 = vmatpush1.msra.mxu0 0.0
        %1563 = vmatprep.subr.mxu0 0.0
        %1564 = vmatpush1.msra.mxu0 0.0
        %1565 = vmatprep.subr.mxu0 0.0
        %1566 = vmatpush1.msra.mxu0 0.0
        %1567 = vmatprep.subr.mxu0 0.0
        %1568 = vmatpush1.msra.mxu0 0.0
        %1569 = vmatprep.subr.mxu0 0.0
        %1570 = vmatpush1.msra.mxu0 0.0
        %1571 = vmatprep.subr.mxu0 0.0
        %1572 = vmatpush1.msra.mxu0 0.0
        %1573 = vmatprep.subr.mxu0 0.0
        %1574 = vmatpush1.msra.mxu0 0.0
        %1575 = vmatprep.subr.mxu0 0.0
        %1576 = vmatpush1.msra.mxu0 0.0
        %1577 = vmatprep.subr.mxu0 0.0
        %1578 = vmatpush1.msra.mxu0 0.0
        %1579 = vmatprep.subr.mxu0 0.0
        %1580 = vmatpush1.msra.mxu0 0.0
        %1581 = vmatprep.subr.mxu0 0.0
        %1582 = vmatpush1.msra.mxu0 0.0
        %1583 = vmatprep.subr.mxu0 0.0
        %1584 = vmatpush1.msra.mxu0 0.0
        %1585 = vmatprep.subr.mxu0 0.0
        %1586 = vmatpush1.msra.mxu0 0.0
        %1587 = vmatprep.subr.mxu0 0.0
        %1588 = vmatpush1.msra.mxu0 0.0
        %1589 = vmatprep.mubr.f32.mxu0 0.0
        %1590 = vmatmul.mubr.f32.gmra.mrb[0].mxu0 %v354
        %v1591 = vpop.f32.mrb[0].mxu0
        %v1592 = vadd.f32 0.0, %v1591
        %v1593 = vpop.f32.mrb[0].mxu0
        %v1594 = vadd.f32 0.0, %v1593
        %1595 = vdwg.mxu0
        %v1596 = vmax.f32 %v1592, -100000.0
        %v1597 = vmax.f32 %v1594, -100000.0
        %v1598 = vmin.f32 %v1596, 100000.0
        %v1599 = vmin.f32 %v1597, 100000.0
        %s1600 = scalar_lea.vmem %s211, 96 [#allocation2]
        %1601 = vst [vmem:[%s1600] sm:$0xff] %v1598
        %1602 = vst [vmem:[%s1600 + $0x8] sm:$0xff] %v1599
        %s1603 = scalar_lea.vmem %s217, 112
        %v1604 = vld [vmem:[%s1603] sm:$0xff]
        %v1605 = vld [vmem:[%s1603 + $0x8] sm:$0xff]
        %v1606 = vmax.f32 %v1604, 1e-06
        %v1607 = vmax.f32 %v1605, 1e-06
        %v1608 = vmin.f32 %v1606, 60.0
        %v1609 = vmin.f32 %v1607, 60.0
        %v1610 = vlog2.pop %v1608
        %v1611 = vmul.f32 %v1610, 0.6931472
        %v1612 = vlog2.pop %v1609
        %v1613 = vmul.f32 %v1612, 0.6931472
        %s1614 = scalar_lea.vmem %s224, 112
        %v1615 = vld [vmem:[%s1614] sm:$0xff]
        %v1616 = vld [vmem:[%s1614 + $0x8] sm:$0xff]
        %1618 = vset.pattern.permute.xlu0 0
        %1619 = vperm.xlu0 %1618, %v1615
        %v1620 = vpop.permute.xlu0 %1619
        %1623 = vset.pattern.permute.xlu0 0
        %1624 = vperm.xlu0 %1623, %v1616
        %v1625 = vpop.permute.xlu0 %1624
        %1627 = vmatprep.subr.mxu0 %v1613
        %1628 = vmatpush1.msra.mxu0 %v1611
        %1629 = vmatprep.subr.mxu0 0.0
        %1630 = vmatpush1.msra.mxu0 0.0
        %1631 = vmatprep.subr.mxu0 0.0
        %1632 = vmatpush1.msra.mxu0 0.0
        %1633 = vmatprep.subr.mxu0 0.0
        %1634 = vmatpush1.msra.mxu0 0.0
        %1635 = vmatprep.subr.mxu0 0.0
        %1636 = vmatpush1.msra.mxu0 0.0
        %1637 = vmatprep.subr.mxu0 0.0
        %1638 = vmatpush1.msra.mxu0 0.0
        %1639 = vmatprep.subr.mxu0 0.0
        %1640 = vmatpush1.msra.mxu0 0.0
        %1641 = vmatprep.subr.mxu0 0.0
        %1642 = vmatpush1.msra.mxu0 0.0
        %1643 = vmatprep.subr.mxu0 0.0
        %1644 = vmatpush1.msra.mxu0 0.0
        %1645 = vmatprep.subr.mxu0 0.0
        %1646 = vmatpush1.msra.mxu0 0.0
        %1647 = vmatprep.subr.mxu0 0.0
        %1648 = vmatpush1.msra.mxu0 0.0
        %1649 = vmatprep.subr.mxu0 0.0
        %1650 = vmatpush1.msra.mxu0 0.0
        %1651 = vmatprep.subr.mxu0 0.0
        %1652 = vmatpush1.msra.mxu0 0.0
        %1653 = vmatprep.subr.mxu0 0.0
        %1654 = vmatpush1.msra.mxu0 0.0
        %1655 = vmatprep.subr.mxu0 0.0
        %1656 = vmatpush1.msra.mxu0 0.0
        %1657 = vmatprep.subr.mxu0 0.0
        %1658 = vmatpush1.msra.mxu0 0.0
        %1659 = vmatprep.subr.mxu0 0.0
        %1660 = vmatpush1.msra.mxu0 0.0
        %1661 = vmatprep.subr.mxu0 0.0
        %1662 = vmatpush1.msra.mxu0 0.0
        %1663 = vmatprep.subr.mxu0 0.0
        %1664 = vmatpush1.msra.mxu0 0.0
        %1665 = vmatprep.subr.mxu0 0.0
        %1666 = vmatpush1.msra.mxu0 0.0
        %1667 = vmatprep.subr.mxu0 0.0
        %1668 = vmatpush1.msra.mxu0 0.0
        %1669 = vmatprep.subr.mxu0 0.0
        %1670 = vmatpush1.msra.mxu0 0.0
        %1671 = vmatprep.subr.mxu0 0.0
        %1672 = vmatpush1.msra.mxu0 0.0
        %1673 = vmatprep.subr.mxu0 0.0
        %1674 = vmatpush1.msra.mxu0 0.0
        %1675 = vmatprep.subr.mxu0 0.0
        %1676 = vmatpush1.msra.mxu0 0.0
        %1677 = vmatprep.subr.mxu0 0.0
        %1678 = vmatpush1.msra.mxu0 0.0
        %1679 = vmatprep.subr.mxu0 0.0
        %1680 = vmatpush1.msra.mxu0 0.0
        %1681 = vmatprep.subr.mxu0 0.0
        %1682 = vmatpush1.msra.mxu0 0.0
        %1683 = vmatprep.subr.mxu0 0.0
        %1684 = vmatpush1.msra.mxu0 0.0
        %1685 = vmatprep.subr.mxu0 0.0
        %1686 = vmatpush1.msra.mxu0 0.0
        %1687 = vmatprep.subr.mxu0 0.0
        %1688 = vmatpush1.msra.mxu0 0.0
        %1689 = vmatprep.subr.mxu0 0.0
        %1690 = vmatpush1.msra.mxu0 0.0
        %1691 = vmatprep.mubr.f32.mxu0 0.0
        %1692 = vmatmul.mubr.f32.gmra.mrb[0].mxu0 %v254
        %v1693 = vpop.f32.mrb[0].mxu0
        %v1694 = vadd.f32 %v1620, %v1693
        %v1695 = vpop.f32.mrb[0].mxu0
        %v1696 = vadd.f32 %v1620, %v1695
        %1697 = vmatprep.mubr.f32.mxu0 0.0
        %1698 = vmatmul.mubr.f32.gmra.mrb[0].mxu0 %v257
        %v1699 = vpop.f32.mrb[0].mxu0
        %v1700 = vadd.f32 %v1625, %v1699
        %v1701 = vpop.f32.mrb[0].mxu0
        %v1702 = vadd.f32 %v1625, %v1701
        %1703 = vdwg.mxu0
        %v1704 = vmax.f32 %v1694, -30.0
        %v1705 = vmax.f32 %v1696, -30.0
        %v1706 = vmax.f32 %v1700, -30.0
        %v1707 = vmax.f32 %v1702, -30.0
        %v1708 = vmin.f32 %v1704, 30.0
        %v1709 = vmin.f32 %v1705, 30.0
        %v1710 = vmin.f32 %v1706, 30.0
        %v1711 = vmin.f32 %v1707, 30.0
        %v1712 = vmul.f32 %v1708, 1.442695
        %v1713 = vpow.pop %v1712
        %v1714 = vmul.f32 %v1709, 1.442695
        %v1715 = vpow.pop %v1714
        %v1716 = vmul.f32 %v1710, 1.442695
        %v1717 = vpow.pop %v1716
        %v1718 = vmul.f32 %v1711, 1.442695
        %v1719 = vpow.pop %v1718
        %1720 = vmatprep.subr.mxu0 %v1715
        %1721 = vmatpush1.msra.mxu0 %v1713
        %1722 = vmatprep.subr.mxu0 %v1719
        %1723 = vmatpush1.msra.mxu0 %v1717
        %1724 = vmatprep.subr.mxu0 0.0
        %1725 = vmatpush1.msra.mxu0 0.0
        %1726 = vmatprep.subr.mxu0 0.0
        %1727 = vmatpush1.msra.mxu0 0.0
        %1728 = vmatprep.subr.mxu0 0.0
        %1729 = vmatpush1.msra.mxu0 0.0
        %1730 = vmatprep.subr.mxu0 0.0
        %1731 = vmatpush1.msra.mxu0 0.0
        %1732 = vmatprep.subr.mxu0 0.0
        %1733 = vmatpush1.msra.mxu0 0.0
        %1734 = vmatprep.subr.mxu0 0.0
        %1735 = vmatpush1.msra.mxu0 0.0
        %1736 = vmatprep.subr.mxu0 0.0
        %1737 = vmatpush1.msra.mxu0 0.0
        %1738 = vmatprep.subr.mxu0 0.0
        %1739 = vmatpush1.msra.mxu0 0.0
        %1740 = vmatprep.subr.mxu0 0.0
        %1741 = vmatpush1.msra.mxu0 0.0
        %1742 = vmatprep.subr.mxu0 0.0
        %1743 = vmatpush1.msra.mxu0 0.0
        %1744 = vmatprep.subr.mxu0 0.0
        %1745 = vmatpush1.msra.mxu0 0.0
        %1746 = vmatprep.subr.mxu0 0.0
        %1747 = vmatpush1.msra.mxu0 0.0
        %1748 = vmatprep.subr.mxu0 0.0
        %1749 = vmatpush1.msra.mxu0 0.0
        %1750 = vmatprep.subr.mxu0 0.0
        %1751 = vmatpush1.msra.mxu0 0.0
        %1752 = vmatprep.subr.mxu0 0.0
        %1753 = vmatpush1.msra.mxu0 0.0
        %1754 = vmatprep.subr.mxu0 0.0
        %1755 = vmatpush1.msra.mxu0 0.0
        %1756 = vmatprep.subr.mxu0 0.0
        %1757 = vmatpush1.msra.mxu0 0.0
        %1758 = vmatprep.subr.mxu0 0.0
        %1759 = vmatpush1.msra.mxu0 0.0
        %1760 = vmatprep.subr.mxu0 0.0
        %1761 = vmatpush1.msra.mxu0 0.0
        %1762 = vmatprep.subr.mxu0 0.0
        %1763 = vmatpush1.msra.mxu0 0.0
        %1764 = vmatprep.subr.mxu0 0.0
        %1765 = vmatpush1.msra.mxu0 0.0
        %1766 = vmatprep.subr.mxu0 0.0
        %1767 = vmatpush1.msra.mxu0 0.0
        %1768 = vmatprep.subr.mxu0 0.0
        %1769 = vmatpush1.msra.mxu0 0.0
        %1770 = vmatprep.subr.mxu0 0.0
        %1771 = vmatpush1.msra.mxu0 0.0
        %1772 = vmatprep.subr.mxu0 0.0
        %1773 = vmatpush1.msra.mxu0 0.0
        %1774 = vmatprep.subr.mxu0 0.0
        %1775 = vmatpush1.msra.mxu0 0.0
        %1776 = vmatprep.subr.mxu0 0.0
        %1777 = vmatpush1.msra.mxu0 0.0
        %1778 = vmatprep.subr.mxu0 0.0
        %1779 = vmatpush1.msra.mxu0 0.0
        %1780 = vmatprep.subr.mxu0 0.0
        %1781 = vmatpush1.msra.mxu0 0.0
        %1782 = vmatprep.subr.mxu0 0.0
        %1783 = vmatpush1.msra.mxu0 0.0
        %1784 = vmatprep.mubr.f32.mxu0 0.0
        %1785 = vmatmul.mubr.f32.gmra.mrb[0].mxu0 %v354
        %v1786 = vpop.f32.mrb[0].mxu0
        %v1787 = vadd.f32 0.0, %v1786
        %v1788 = vpop.f32.mrb[0].mxu0
        %v1789 = vadd.f32 0.0, %v1788
        %1790 = vdwg.mxu0
        %v1791 = vmax.f32 %v1787, -100000.0
        %v1792 = vmax.f32 %v1789, -100000.0
        %v1793 = vmin.f32 %v1791, 100000.0
        %v1794 = vmin.f32 %v1792, 100000.0
        %s1795 = scalar_lea.vmem %s211, 112 [#allocation2]
        %1796 = vst [vmem:[%s1795] sm:$0xff] %v1793
        %1797 = vst [vmem:[%s1795 + $0x8] sm:$0xff] %v1794
        %s1798 = scalar_lea.vmem %s217, 128
        %v1799 = vld [vmem:[%s1798] sm:$0xff]
        %v1800 = vld [vmem:[%s1798 + $0x8] sm:$0xff]
        %v1801 = vmax.f32 %v1799, 1e-06
        %v1802 = vmax.f32 %v1800, 1e-06
        %v1803 = vmin.f32 %v1801, 60.0
        %v1804 = vmin.f32 %v1802, 60.0
        %v1805 = vlog2.pop %v1803
        %v1806 = vmul.f32 %v1805, 0.6931472
        %v1807 = vlog2.pop %v1804
        %v1808 = vmul.f32 %v1807, 0.6931472
        %s1809 = scalar_lea.vmem %s224, 128
        %v1810 = vld [vmem:[%s1809] sm:$0xff]
        %v1811 = vld [vmem:[%s1809 + $0x8] sm:$0xff]
        %1813 = vset.pattern.permute.xlu0 0
        %1814 = vperm.xlu0 %1813, %v1810
        %v1815 = vpop.permute.xlu0 %1814
        %1818 = vset.pattern.permute.xlu0 0
        %1819 = vperm.xlu0 %1818, %v1811
        %v1820 = vpop.permute.xlu0 %1819
        %1822 = vmatprep.subr.mxu0 %v1808
        %1823 = vmatpush1.msra.mxu0 %v1806
        %1824 = vmatprep.subr.mxu0 0.0
        %1825 = vmatpush1.msra.mxu0 0.0
        %1826 = vmatprep.subr.mxu0 0.0
        %1827 = vmatpush1.msra.mxu0 0.0
        %1828 = vmatprep.subr.mxu0 0.0
        %1829 = vmatpush1.msra.mxu0 0.0
        %1830 = vmatprep.subr.mxu0 0.0
        %1831 = vmatpush1.msra.mxu0 0.0
        %1832 = vmatprep.subr.mxu0 0.0
        %1833 = vmatpush1.msra.mxu0 0.0
        %1834 = vmatprep.subr.mxu0 0.0
        %1835 = vmatpush1.msra.mxu0 0.0
        %1836 = vmatprep.subr.mxu0 0.0
        %1837 = vmatpush1.msra.mxu0 0.0
        %1838 = vmatprep.subr.mxu0 0.0
        %1839 = vmatpush1.msra.mxu0 0.0
        %1840 = vmatprep.subr.mxu0 0.0
        %1841 = vmatpush1.msra.mxu0 0.0
        %1842 = vmatprep.subr.mxu0 0.0
        %1843 = vmatpush1.msra.mxu0 0.0
        %1844 = vmatprep.subr.mxu0 0.0
        %1845 = vmatpush1.msra.mxu0 0.0
        %1846 = vmatprep.subr.mxu0 0.0
        %1847 = vmatpush1.msra.mxu0 0.0
        %1848 = vmatprep.subr.mxu0 0.0
        %1849 = vmatpush1.msra.mxu0 0.0
        %1850 = vmatprep.subr.mxu0 0.0
        %1851 = vmatpush1.msra.mxu0 0.0
        %1852 = vmatprep.subr.mxu0 0.0
        %1853 = vmatpush1.msra.mxu0 0.0
        %1854 = vmatprep.subr.mxu0 0.0
        %1855 = vmatpush1.msra.mxu0 0.0
        %1856 = vmatprep.subr.mxu0 0.0
        %1857 = vmatpush1.msra.mxu0 0.0
        %1858 = vmatprep.subr.mxu0 0.0
        %1859 = vmatpush1.msra.mxu0 0.0
        %1860 = vmatprep.subr.mxu0 0.0
        %1861 = vmatpush1.msra.mxu0 0.0
        %1862 = vmatprep.subr.mxu0 0.0
        %1863 = vmatpush1.msra.mxu0 0.0
        %1864 = vmatprep.subr.mxu0 0.0
        %1865 = vmatpush1.msra.mxu0 0.0
        %1866 = vmatprep.subr.mxu0 0.0
        %1867 = vmatpush1.msra.mxu0 0.0
        %1868 = vmatprep.subr.mxu0 0.0
        %1869 = vmatpush1.msra.mxu0 0.0
        %1870 = vmatprep.subr.mxu0 0.0
        %1871 = vmatpush1.msra.mxu0 0.0
        %1872 = vmatprep.subr.mxu0 0.0
        %1873 = vmatpush1.msra.mxu0 0.0
        %1874 = vmatprep.subr.mxu0 0.0
        %1875 = vmatpush1.msra.mxu0 0.0
        %1876 = vmatprep.subr.mxu0 0.0
        %1877 = vmatpush1.msra.mxu0 0.0
        %1878 = vmatprep.subr.mxu0 0.0
        %1879 = vmatpush1.msra.mxu0 0.0
        %1880 = vmatprep.subr.mxu0 0.0
        %1881 = vmatpush1.msra.mxu0 0.0
        %1882 = vmatprep.subr.mxu0 0.0
        %1883 = vmatpush1.msra.mxu0 0.0
        %1884 = vmatprep.subr.mxu0 0.0
        %1885 = vmatpush1.msra.mxu0 0.0
        %1886 = vmatprep.mubr.f32.mxu0 0.0
        %1887 = vmatmul.mubr.f32.gmra.mrb[0].mxu0 %v254
        %v1888 = vpop.f32.mrb[0].mxu0
        %v1889 = vadd.f32 %v1815, %v1888
        %v1890 = vpop.f32.mrb[0].mxu0
        %v1891 = vadd.f32 %v1815, %v1890
        %1892 = vmatprep.mubr.f32.mxu0 0.0
        %1893 = vmatmul.mubr.f32.gmra.mrb[0].mxu0 %v257
        %v1894 = vpop.f32.mrb[0].mxu0
        %v1895 = vadd.f32 %v1820, %v1894
        %v1896 = vpop.f32.mrb[0].mxu0
        %v1897 = vadd.f32 %v1820, %v1896
        %1898 = vdwg.mxu0
        %v1899 = vmax.f32 %v1889, -30.0
        %v1900 = vmax.f32 %v1891, -30.0
        %v1901 = vmax.f32 %v1895, -30.0
        %v1902 = vmax.f32 %v1897, -30.0
        %v1903 = vmin.f32 %v1899, 30.0
        %v1904 = vmin.f32 %v1900, 30.0
        %v1905 = vmin.f32 %v1901, 30.0
        %v1906 = vmin.f32 %v1902, 30.0
        %v1907 = vmul.f32 %v1903, 1.442695
        %v1908 = vpow.pop %v1907
        %v1909 = vmul.f32 %v1904, 1.442695
        %v1910 = vpow.pop %v1909
        %v1911 = vmul.f32 %v1905, 1.442695
        %v1912 = vpow.pop %v1911
        %v1913 = vmul.f32 %v1906, 1.442695
        %v1914 = vpow.pop %v1913
        %1915 = vmatprep.subr.mxu0 %v1910
        %1916 = vmatpush1.msra.mxu0 %v1908
        %1917 = vmatprep.subr.mxu0 %v1914
        %1918 = vmatpush1.msra.mxu0 %v1912
        %1919 = vmatprep.subr.mxu0 0.0
        %1920 = vmatpush1.msra.mxu0 0.0
        %1921 = vmatprep.subr.mxu0 0.0
        %1922 = vmatpush1.msra.mxu0 0.0
        %1923 = vmatprep.subr.mxu0 0.0
        %1924 = vmatpush1.msra.mxu0 0.0
        %1925 = vmatprep.subr.mxu0 0.0
        %1926 = vmatpush1.msra.mxu0 0.0
        %1927 = vmatprep.subr.mxu0 0.0
        %1928 = vmatpush1.msra.mxu0 0.0
        %1929 = vmatprep.subr.mxu0 0.0
        %1930 = vmatpush1.msra.mxu0 0.0
        %1931 = vmatprep.subr.mxu0 0.0
        %1932 = vmatpush1.msra.mxu0 0.0
        %1933 = vmatprep.subr.mxu0 0.0
        %1934 = vmatpush1.msra.mxu0 0.0
        %1935 = vmatprep.subr.mxu0 0.0
        %1936 = vmatpush1.msra.mxu0 0.0
        %1937 = vmatprep.subr.mxu0 0.0
        %1938 = vmatpush1.msra.mxu0 0.0
        %1939 = vmatprep.subr.mxu0 0.0
        %1940 = vmatpush1.msra.mxu0 0.0
        %1941 = vmatprep.subr.mxu0 0.0
        %1942 = vmatpush1.msra.mxu0 0.0
        %1943 = vmatprep.subr.mxu0 0.0
        %1944 = vmatpush1.msra.mxu0 0.0
        %1945 = vmatprep.subr.mxu0 0.0
        %1946 = vmatpush1.msra.mxu0 0.0
        %1947 = vmatprep.subr.mxu0 0.0
        %1948 = vmatpush1.msra.mxu0 0.0
        %1949 = vmatprep.subr.mxu0 0.0
        %1950 = vmatpush1.msra.mxu0 0.0
        %1951 = vmatprep.subr.mxu0 0.0
        %1952 = vmatpush1.msra.mxu0 0.0
        %1953 = vmatprep.subr.mxu0 0.0
        %1954 = vmatpush1.msra.mxu0 0.0
        %1955 = vmatprep.subr.mxu0 0.0
        %1956 = vmatpush1.msra.mxu0 0.0
        %1957 = vmatprep.subr.mxu0 0.0
        %1958 = vmatpush1.msra.mxu0 0.0
        %1959 = vmatprep.subr.mxu0 0.0
        %1960 = vmatpush1.msra.mxu0 0.0
        %1961 = vmatprep.subr.mxu0 0.0
        %1962 = vmatpush1.msra.mxu0 0.0
        %1963 = vmatprep.subr.mxu0 0.0
        %1964 = vmatpush1.msra.mxu0 0.0
        %1965 = vmatprep.subr.mxu0 0.0
        %1966 = vmatpush1.msra.mxu0 0.0
        %1967 = vmatprep.subr.mxu0 0.0
        %1968 = vmatpush1.msra.mxu0 0.0
        %1969 = vmatprep.subr.mxu0 0.0
        %1970 = vmatpush1.msra.mxu0 0.0
        %1971 = vmatprep.subr.mxu0 0.0
        %1972 = vmatpush1.msra.mxu0 0.0
        %1973 = vmatprep.subr.mxu0 0.0
        %1974 = vmatpush1.msra.mxu0 0.0
        %1975 = vmatprep.subr.mxu0 0.0
        %1976 = vmatpush1.msra.mxu0 0.0
        %1977 = vmatprep.subr.mxu0 0.0
        %1978 = vmatpush1.msra.mxu0 0.0
        %1979 = vmatprep.mubr.f32.mxu0 0.0
        %1980 = vmatmul.mubr.f32.gmra.mrb[0].mxu0 %v354
        %v1981 = vpop.f32.mrb[0].mxu0
        %v1982 = vadd.f32 0.0, %v1981
        %v1983 = vpop.f32.mrb[0].mxu0
        %v1984 = vadd.f32 0.0, %v1983
        %1985 = vdwg.mxu0
        %v1986 = vmax.f32 %v1982, -100000.0
        %v1987 = vmax.f32 %v1984, -100000.0
        %v1988 = vmin.f32 %v1986, 100000.0
        %v1989 = vmin.f32 %v1987, 100000.0
        %s1990 = scalar_lea.vmem %s211, 128 [#allocation2]
        %1991 = vst [vmem:[%s1990] sm:$0xff] %v1988
        %1992 = vst [vmem:[%s1990 + $0x8] sm:$0xff] %v1989
        %s1993 = scalar_lea.vmem %s217, 144
        %v1994 = vld [vmem:[%s1993] sm:$0xff]
        %v1995 = vld [vmem:[%s1993 + $0x8] sm:$0xff]
        %v1996 = vmax.f32 %v1994, 1e-06
        %v1997 = vmax.f32 %v1995, 1e-06
        %v1998 = vmin.f32 %v1996, 60.0
        %v1999 = vmin.f32 %v1997, 60.0
        %v2000 = vlog2.pop %v1998
        %v2001 = vmul.f32 %v2000, 0.6931472
        %v2002 = vlog2.pop %v1999
        %v2003 = vmul.f32 %v2002, 0.6931472
        %s2004 = scalar_lea.vmem %s224, 144
        %v2005 = vld [vmem:[%s2004] sm:$0xff]
        %v2006 = vld [vmem:[%s2004 + $0x8] sm:$0xff]
        %2008 = vset.pattern.permute.xlu0 0
        %2009 = vperm.xlu0 %2008, %v2005
        %v2010 = vpop.permute.xlu0 %2009
        %2013 = vset.pattern.permute.xlu0 0
        %2014 = vperm.xlu0 %2013, %v2006
        %v2015 = vpop.permute.xlu0 %2014
        %2017 = vmatprep.subr.mxu0 %v2003
        %2018 = vmatpush1.msra.mxu0 %v2001
        %2019 = vmatprep.subr.mxu0 0.0
        %2020 = vmatpush1.msra.mxu0 0.0
        %2021 = vmatprep.subr.mxu0 0.0
        %2022 = vmatpush1.msra.mxu0 0.0
        %2023 = vmatprep.subr.mxu0 0.0
        %2024 = vmatpush1.msra.mxu0 0.0
        %2025 = vmatprep.subr.mxu0 0.0
        %2026 = vmatpush1.msra.mxu0 0.0
        %2027 = vmatprep.subr.mxu0 0.0
        %2028 = vmatpush1.msra.mxu0 0.0
        %2029 = vmatprep.subr.mxu0 0.0
        %2030 = vmatpush1.msra.mxu0 0.0
        %2031 = vmatprep.subr.mxu0 0.0
        %2032 = vmatpush1.msra.mxu0 0.0
        %2033 = vmatprep.subr.mxu0 0.0
        %2034 = vmatpush1.msra.mxu0 0.0
        %2035 = vmatprep.subr.mxu0 0.0
        %2036 = vmatpush1.msra.mxu0 0.0
        %2037 = vmatprep.subr.mxu0 0.0
        %2038 = vmatpush1.msra.mxu0 0.0
        %2039 = vmatprep.subr.mxu0 0.0
        %2040 = vmatpush1.msra.mxu0 0.0
        %2041 = vmatprep.subr.mxu0 0.0
        %2042 = vmatpush1.msra.mxu0 0.0
        %2043 = vmatprep.subr.mxu0 0.0
        %2044 = vmatpush1.msra.mxu0 0.0
        %2045 = vmatprep.subr.mxu0 0.0
        %2046 = vmatpush1.msra.mxu0 0.0
        %2047 = vmatprep.subr.mxu0 0.0
        %2048 = vmatpush1.msra.mxu0 0.0
        %2049 = vmatprep.subr.mxu0 0.0
        %2050 = vmatpush1.msra.mxu0 0.0
        %2051 = vmatprep.subr.mxu0 0.0
        %2052 = vmatpush1.msra.mxu0 0.0
        %2053 = vmatprep.subr.mxu0 0.0
        %2054 = vmatpush1.msra.mxu0 0.0
        %2055 = vmatprep.subr.mxu0 0.0
        %2056 = vmatpush1.msra.mxu0 0.0
        %2057 = vmatprep.subr.mxu0 0.0
        %2058 = vmatpush1.msra.mxu0 0.0
        %2059 = vmatprep.subr.mxu0 0.0
        %2060 = vmatpush1.msra.mxu0 0.0
        %2061 = vmatprep.subr.mxu0 0.0
        %2062 = vmatpush1.msra.mxu0 0.0
        %2063 = vmatprep.subr.mxu0 0.0
        %2064 = vmatpush1.msra.mxu0 0.0
        %2065 = vmatprep.subr.mxu0 0.0
        %2066 = vmatpush1.msra.mxu0 0.0
        %2067 = vmatprep.subr.mxu0 0.0
        %2068 = vmatpush1.msra.mxu0 0.0
        %2069 = vmatprep.subr.mxu0 0.0
        %2070 = vmatpush1.msra.mxu0 0.0
        %2071 = vmatprep.subr.mxu0 0.0
        %2072 = vmatpush1.msra.mxu0 0.0
        %2073 = vmatprep.subr.mxu0 0.0
        %2074 = vmatpush1.msra.mxu0 0.0
        %2075 = vmatprep.subr.mxu0 0.0
        %2076 = vmatpush1.msra.mxu0 0.0
        %2077 = vmatprep.subr.mxu0 0.0
        %2078 = vmatpush1.msra.mxu0 0.0
        %2079 = vmatprep.subr.mxu0 0.0
        %2080 = vmatpush1.msra.mxu0 0.0
        %2081 = vmatprep.mubr.f32.mxu0 0.0
        %2082 = vmatmul.mubr.f32.gmra.mrb[0].mxu0 %v254
        %v2083 = vpop.f32.mrb[0].mxu0
        %v2084 = vadd.f32 %v2010, %v2083
        %v2085 = vpop.f32.mrb[0].mxu0
        %v2086 = vadd.f32 %v2010, %v2085
        %2087 = vmatprep.mubr.f32.mxu0 0.0
        %2088 = vmatmul.mubr.f32.gmra.mrb[0].mxu0 %v257
        %v2089 = vpop.f32.mrb[0].mxu0
        %v2090 = vadd.f32 %v2015, %v2089
        %v2091 = vpop.f32.mrb[0].mxu0
        %v2092 = vadd.f32 %v2015, %v2091
        %2093 = vdwg.mxu0
        %v2094 = vmax.f32 %v2084, -30.0
        %v2095 = vmax.f32 %v2086, -30.0
        %v2096 = vmax.f32 %v2090, -30.0
        %v2097 = vmax.f32 %v2092, -30.0
        %v2098 = vmin.f32 %v2094, 30.0
        %v2099 = vmin.f32 %v2095, 30.0
        %v2100 = vmin.f32 %v2096, 30.0
        %v2101 = vmin.f32 %v2097, 30.0
        %v2102 = vmul.f32 %v2098, 1.442695
        %v2103 = vpow.pop %v2102
        %v2104 = vmul.f32 %v2099, 1.442695
        %v2105 = vpow.pop %v2104
        %v2106 = vmul.f32 %v2100, 1.442695
        %v2107 = vpow.pop %v2106
        %v2108 = vmul.f32 %v2101, 1.442695
        %v2109 = vpow.pop %v2108
        %2110 = vmatprep.subr.mxu0 %v2105
        %2111 = vmatpush1.msra.mxu0 %v2103
        %2112 = vmatprep.subr.mxu0 %v2109
        %2113 = vmatpush1.msra.mxu0 %v2107
        %2114 = vmatprep.subr.mxu0 0.0
        %2115 = vmatpush1.msra.mxu0 0.0
        %2116 = vmatprep.subr.mxu0 0.0
        %2117 = vmatpush1.msra.mxu0 0.0
        %2118 = vmatprep.subr.mxu0 0.0
        %2119 = vmatpush1.msra.mxu0 0.0
        %2120 = vmatprep.subr.mxu0 0.0
        %2121 = vmatpush1.msra.mxu0 0.0
        %2122 = vmatprep.subr.mxu0 0.0
        %2123 = vmatpush1.msra.mxu0 0.0
        %2124 = vmatprep.subr.mxu0 0.0
        %2125 = vmatpush1.msra.mxu0 0.0
        %2126 = vmatprep.subr.mxu0 0.0
        %2127 = vmatpush1.msra.mxu0 0.0
        %2128 = vmatprep.subr.mxu0 0.0
        %2129 = vmatpush1.msra.mxu0 0.0
        %2130 = vmatprep.subr.mxu0 0.0
        %2131 = vmatpush1.msra.mxu0 0.0
        %2132 = vmatprep.subr.mxu0 0.0
        %2133 = vmatpush1.msra.mxu0 0.0
        %2134 = vmatprep.subr.mxu0 0.0
        %2135 = vmatpush1.msra.mxu0 0.0
        %2136 = vmatprep.subr.mxu0 0.0
        %2137 = vmatpush1.msra.mxu0 0.0
        %2138 = vmatprep.subr.mxu0 0.0
        %2139 = vmatpush1.msra.mxu0 0.0
        %2140 = vmatprep.subr.mxu0 0.0
        %2141 = vmatpush1.msra.mxu0 0.0
        %2142 = vmatprep.subr.mxu0 0.0
        %2143 = vmatpush1.msra.mxu0 0.0
        %2144 = vmatprep.subr.mxu0 0.0
        %2145 = vmatpush1.msra.mxu0 0.0
        %2146 = vmatprep.subr.mxu0 0.0
        %2147 = vmatpush1.msra.mxu0 0.0
        %2148 = vmatprep.subr.mxu0 0.0
        %2149 = vmatpush1.msra.mxu0 0.0
        %2150 = vmatprep.subr.mxu0 0.0
        %2151 = vmatpush1.msra.mxu0 0.0
        %2152 = vmatprep.subr.mxu0 0.0
        %2153 = vmatpush1.msra.mxu0 0.0
        %2154 = vmatprep.subr.mxu0 0.0
        %2155 = vmatpush1.msra.mxu0 0.0
        %2156 = vmatprep.subr.mxu0 0.0
        %2157 = vmatpush1.msra.mxu0 0.0
        %2158 = vmatprep.subr.mxu0 0.0
        %2159 = vmatpush1.msra.mxu0 0.0
        %2160 = vmatprep.subr.mxu0 0.0
        %2161 = vmatpush1.msra.mxu0 0.0
        %2162 = vmatprep.subr.mxu0 0.0
        %2163 = vmatpush1.msra.mxu0 0.0
        %2164 = vmatprep.subr.mxu0 0.0
        %2165 = vmatpush1.msra.mxu0 0.0
        %2166 = vmatprep.subr.mxu0 0.0
        %2167 = vmatpush1.msra.mxu0 0.0
        %2168 = vmatprep.subr.mxu0 0.0
        %2169 = vmatpush1.msra.mxu0 0.0
        %2170 = vmatprep.subr.mxu0 0.0
        %2171 = vmatpush1.msra.mxu0 0.0
        %2172 = vmatprep.subr.mxu0 0.0
        %2173 = vmatpush1.msra.mxu0 0.0
        %2174 = vmatprep.mubr.f32.mxu0 0.0
        %2175 = vmatmul.mubr.f32.gmra.mrb[0].mxu0 %v354
        %v2176 = vpop.f32.mrb[0].mxu0
        %v2177 = vadd.f32 0.0, %v2176
        %v2178 = vpop.f32.mrb[0].mxu0
        %v2179 = vadd.f32 0.0, %v2178
        %2180 = vdwg.mxu0
        %v2181 = vmax.f32 %v2177, -100000.0
        %v2182 = vmax.f32 %v2179, -100000.0
        %v2183 = vmin.f32 %v2181, 100000.0
        %v2184 = vmin.f32 %v2182, 100000.0
        %s2185 = scalar_lea.vmem %s211, 144 [#allocation2]
        %2186 = vst [vmem:[%s2185] sm:$0xff] %v2183
        %2187 = vst [vmem:[%s2185 + $0x8] sm:$0xff] %v2184
        %s2188 = scalar_lea.vmem %s217, 160
        %v2189 = vld [vmem:[%s2188] sm:$0xff]
        %v2190 = vld [vmem:[%s2188 + $0x8] sm:$0xff]
        %v2191 = vmax.f32 %v2189, 1e-06
        %v2192 = vmax.f32 %v2190, 1e-06
        %v2193 = vmin.f32 %v2191, 60.0
        %v2194 = vmin.f32 %v2192, 60.0
        %v2195 = vlog2.pop %v2193
        %v2196 = vmul.f32 %v2195, 0.6931472
        %v2197 = vlog2.pop %v2194
        %v2198 = vmul.f32 %v2197, 0.6931472
        %s2199 = scalar_lea.vmem %s224, 160
        %v2200 = vld [vmem:[%s2199] sm:$0xff]
        %v2201 = vld [vmem:[%s2199 + $0x8] sm:$0xff]
        %2203 = vset.pattern.permute.xlu0 0
        %2204 = vperm.xlu0 %2203, %v2200
        %v2205 = vpop.permute.xlu0 %2204
        %2208 = vset.pattern.permute.xlu0 0
        %2209 = vperm.xlu0 %2208, %v2201
        %v2210 = vpop.permute.xlu0 %2209
        %2212 = vmatprep.subr.mxu0 %v2198
        %2213 = vmatpush1.msra.mxu0 %v2196
        %2214 = vmatprep.subr.mxu0 0.0
        %2215 = vmatpush1.msra.mxu0 0.0
        %2216 = vmatprep.subr.mxu0 0.0
        %2217 = vmatpush1.msra.mxu0 0.0
        %2218 = vmatprep.subr.mxu0 0.0
        %2219 = vmatpush1.msra.mxu0 0.0
        %2220 = vmatprep.subr.mxu0 0.0
        %2221 = vmatpush1.msra.mxu0 0.0
        %2222 = vmatprep.subr.mxu0 0.0
        %2223 = vmatpush1.msra.mxu0 0.0
        %2224 = vmatprep.subr.mxu0 0.0
        %2225 = vmatpush1.msra.mxu0 0.0
        %2226 = vmatprep.subr.mxu0 0.0
        %2227 = vmatpush1.msra.mxu0 0.0
        %2228 = vmatprep.subr.mxu0 0.0
        %2229 = vmatpush1.msra.mxu0 0.0
        %2230 = vmatprep.subr.mxu0 0.0
        %2231 = vmatpush1.msra.mxu0 0.0
        %2232 = vmatprep.subr.mxu0 0.0
        %2233 = vmatpush1.msra.mxu0 0.0
        %2234 = vmatprep.subr.mxu0 0.0
        %2235 = vmatpush1.msra.mxu0 0.0
        %2236 = vmatprep.subr.mxu0 0.0
        %2237 = vmatpush1.msra.mxu0 0.0
        %2238 = vmatprep.subr.mxu0 0.0
        %2239 = vmatpush1.msra.mxu0 0.0
        %2240 = vmatprep.subr.mxu0 0.0
        %2241 = vmatpush1.msra.mxu0 0.0
        %2242 = vmatprep.subr.mxu0 0.0
        %2243 = vmatpush1.msra.mxu0 0.0
        %2244 = vmatprep.subr.mxu0 0.0
        %2245 = vmatpush1.msra.mxu0 0.0
        %2246 = vmatprep.subr.mxu0 0.0
        %2247 = vmatpush1.msra.mxu0 0.0
        %2248 = vmatprep.subr.mxu0 0.0
        %2249 = vmatpush1.msra.mxu0 0.0
        %2250 = vmatprep.subr.mxu0 0.0
        %2251 = vmatpush1.msra.mxu0 0.0
        %2252 = vmatprep.subr.mxu0 0.0
        %2253 = vmatpush1.msra.mxu0 0.0
        %2254 = vmatprep.subr.mxu0 0.0
        %2255 = vmatpush1.msra.mxu0 0.0
        %2256 = vmatprep.subr.mxu0 0.0
        %2257 = vmatpush1.msra.mxu0 0.0
        %2258 = vmatprep.subr.mxu0 0.0
        %2259 = vmatpush1.msra.mxu0 0.0
        %2260 = vmatprep.subr.mxu0 0.0
        %2261 = vmatpush1.msra.mxu0 0.0
        %2262 = vmatprep.subr.mxu0 0.0
        %2263 = vmatpush1.msra.mxu0 0.0
        %2264 = vmatprep.subr.mxu0 0.0
        %2265 = vmatpush1.msra.mxu0 0.0
        %2266 = vmatprep.subr.mxu0 0.0
        %2267 = vmatpush1.msra.mxu0 0.0
        %2268 = vmatprep.subr.mxu0 0.0
        %2269 = vmatpush1.msra.mxu0 0.0
        %2270 = vmatprep.subr.mxu0 0.0
        %2271 = vmatpush1.msra.mxu0 0.0
        %2272 = vmatprep.subr.mxu0 0.0
        %2273 = vmatpush1.msra.mxu0 0.0
        %2274 = vmatprep.subr.mxu0 0.0
        %2275 = vmatpush1.msra.mxu0 0.0
        %2276 = vmatprep.mubr.f32.mxu0 0.0
        %2277 = vmatmul.mubr.f32.gmra.mrb[0].mxu0 %v254
        %v2278 = vpop.f32.mrb[0].mxu0
        %v2279 = vadd.f32 %v2205, %v2278
        %v2280 = vpop.f32.mrb[0].mxu0
        %v2281 = vadd.f32 %v2205, %v2280
        %2282 = vmatprep.mubr.f32.mxu0 0.0
        %2283 = vmatmul.mubr.f32.gmra.mrb[0].mxu0 %v257
        %v2284 = vpop.f32.mrb[0].mxu0
        %v2285 = vadd.f32 %v2210, %v2284
        %v2286 = vpop.f32.mrb[0].mxu0
        %v2287 = vadd.f32 %v2210, %v2286
        %2288 = vdwg.mxu0
        %v2289 = vmax.f32 %v2279, -30.0
        %v2290 = vmax.f32 %v2281, -30.0
        %v2291 = vmax.f32 %v2285, -30.0
        %v2292 = vmax.f32 %v2287, -30.0
        %v2293 = vmin.f32 %v2289, 30.0
        %v2294 = vmin.f32 %v2290, 30.0
        %v2295 = vmin.f32 %v2291, 30.0
        %v2296 = vmin.f32 %v2292, 30.0
        %v2297 = vmul.f32 %v2293, 1.442695
        %v2298 = vpow.pop %v2297
        %v2299 = vmul.f32 %v2294, 1.442695
        %v2300 = vpow.pop %v2299
        %v2301 = vmul.f32 %v2295, 1.442695
        %v2302 = vpow.pop %v2301
        %v2303 = vmul.f32 %v2296, 1.442695
        %v2304 = vpow.pop %v2303
        %2305 = vmatprep.subr.mxu0 %v2300
        %2306 = vmatpush1.msra.mxu0 %v2298
        %2307 = vmatprep.subr.mxu0 %v2304
        %2308 = vmatpush1.msra.mxu0 %v2302
        %2309 = vmatprep.subr.mxu0 0.0
        %2310 = vmatpush1.msra.mxu0 0.0
        %2311 = vmatprep.subr.mxu0 0.0
        %2312 = vmatpush1.msra.mxu0 0.0
        %2313 = vmatprep.subr.mxu0 0.0
        %2314 = vmatpush1.msra.mxu0 0.0
        %2315 = vmatprep.subr.mxu0 0.0
        %2316 = vmatpush1.msra.mxu0 0.0
        %2317 = vmatprep.subr.mxu0 0.0
        %2318 = vmatpush1.msra.mxu0 0.0
        %2319 = vmatprep.subr.mxu0 0.0
        %2320 = vmatpush1.msra.mxu0 0.0
        %2321 = vmatprep.subr.mxu0 0.0
        %2322 = vmatpush1.msra.mxu0 0.0
        %2323 = vmatprep.subr.mxu0 0.0
        %2324 = vmatpush1.msra.mxu0 0.0
        %2325 = vmatprep.subr.mxu0 0.0
        %2326 = vmatpush1.msra.mxu0 0.0
        %2327 = vmatprep.subr.mxu0 0.0
        %2328 = vmatpush1.msra.mxu0 0.0
        %2329 = vmatprep.subr.mxu0 0.0
        %2330 = vmatpush1.msra.mxu0 0.0
        %2331 = vmatprep.subr.mxu0 0.0
        %2332 = vmatpush1.msra.mxu0 0.0
        %2333 = vmatprep.subr.mxu0 0.0
        %2334 = vmatpush1.msra.mxu0 0.0
        %2335 = vmatprep.subr.mxu0 0.0
        %2336 = vmatpush1.msra.mxu0 0.0
        %2337 = vmatprep.subr.mxu0 0.0
        %2338 = vmatpush1.msra.mxu0 0.0
        %2339 = vmatprep.subr.mxu0 0.0
        %2340 = vmatpush1.msra.mxu0 0.0
        %2341 = vmatprep.subr.mxu0 0.0
        %2342 = vmatpush1.msra.mxu0 0.0
        %2343 = vmatprep.subr.mxu0 0.0
        %2344 = vmatpush1.msra.mxu0 0.0
        %2345 = vmatprep.subr.mxu0 0.0
        %2346 = vmatpush1.msra.mxu0 0.0
        %2347 = vmatprep.subr.mxu0 0.0
        %2348 = vmatpush1.msra.mxu0 0.0
        %2349 = vmatprep.subr.mxu0 0.0
        %2350 = vmatpush1.msra.mxu0 0.0
        %2351 = vmatprep.subr.mxu0 0.0
        %2352 = vmatpush1.msra.mxu0 0.0
        %2353 = vmatprep.subr.mxu0 0.0
        %2354 = vmatpush1.msra.mxu0 0.0
        %2355 = vmatprep.subr.mxu0 0.0
        %2356 = vmatpush1.msra.mxu0 0.0
        %2357 = vmatprep.subr.mxu0 0.0
        %2358 = vmatpush1.msra.mxu0 0.0
        %2359 = vmatprep.subr.mxu0 0.0
        %2360 = vmatpush1.msra.mxu0 0.0
        %2361 = vmatprep.subr.mxu0 0.0
        %2362 = vmatpush1.msra.mxu0 0.0
        %2363 = vmatprep.subr.mxu0 0.0
        %2364 = vmatpush1.msra.mxu0 0.0
        %2365 = vmatprep.subr.mxu0 0.0
        %2366 = vmatpush1.msra.mxu0 0.0
        %2367 = vmatprep.subr.mxu0 0.0
        %2368 = vmatpush1.msra.mxu0 0.0
        %2369 = vmatprep.mubr.f32.mxu0 0.0
        %2370 = vmatmul.mubr.f32.gmra.mrb[0].mxu0 %v354
        %v2371 = vpop.f32.mrb[0].mxu0
        %v2372 = vadd.f32 0.0, %v2371
        %v2373 = vpop.f32.mrb[0].mxu0
        %v2374 = vadd.f32 0.0, %v2373
        %2375 = vdwg.mxu0
        %v2376 = vmax.f32 %v2372, -100000.0
        %v2377 = vmax.f32 %v2374, -100000.0
        %v2378 = vmin.f32 %v2376, 100000.0
        %v2379 = vmin.f32 %v2377, 100000.0
        %s2380 = scalar_lea.vmem %s211, 160 [#allocation2]
        %2381 = vst [vmem:[%s2380] sm:$0xff] %v2378
        %2382 = vst [vmem:[%s2380 + $0x8] sm:$0xff] %v2379
        %s2383 = scalar_lea.vmem %s217, 176
        %v2384 = vld [vmem:[%s2383] sm:$0xff]
        %v2385 = vld [vmem:[%s2383 + $0x8] sm:$0xff]
        %v2386 = vmax.f32 %v2384, 1e-06
        %v2387 = vmax.f32 %v2385, 1e-06
        %v2388 = vmin.f32 %v2386, 60.0
        %v2389 = vmin.f32 %v2387, 60.0
        %v2390 = vlog2.pop %v2388
        %v2391 = vmul.f32 %v2390, 0.6931472
        %v2392 = vlog2.pop %v2389
        %v2393 = vmul.f32 %v2392, 0.6931472
        %s2394 = scalar_lea.vmem %s224, 176
        %v2395 = vld [vmem:[%s2394] sm:$0xff]
        %v2396 = vld [vmem:[%s2394 + $0x8] sm:$0xff]
        %2398 = vset.pattern.permute.xlu0 0
        %2399 = vperm.xlu0 %2398, %v2395
        %v2400 = vpop.permute.xlu0 %2399
        %2403 = vset.pattern.permute.xlu0 0
        %2404 = vperm.xlu0 %2403, %v2396
        %v2405 = vpop.permute.xlu0 %2404
        %2407 = vmatprep.subr.mxu0 %v2393
        %2408 = vmatpush1.msra.mxu0 %v2391
        %2409 = vmatprep.subr.mxu0 0.0
        %2410 = vmatpush1.msra.mxu0 0.0
        %2411 = vmatprep.subr.mxu0 0.0
        %2412 = vmatpush1.msra.mxu0 0.0
        %2413 = vmatprep.subr.mxu0 0.0
        %2414 = vmatpush1.msra.mxu0 0.0
        %2415 = vmatprep.subr.mxu0 0.0
        %2416 = vmatpush1.msra.mxu0 0.0
        %2417 = vmatprep.subr.mxu0 0.0
        %2418 = vmatpush1.msra.mxu0 0.0
        %2419 = vmatprep.subr.mxu0 0.0
        %2420 = vmatpush1.msra.mxu0 0.0
        %2421 = vmatprep.subr.mxu0 0.0
        %2422 = vmatpush1.msra.mxu0 0.0
        %2423 = vmatprep.subr.mxu0 0.0
        %2424 = vmatpush1.msra.mxu0 0.0
        %2425 = vmatprep.subr.mxu0 0.0
        %2426 = vmatpush1.msra.mxu0 0.0
        %2427 = vmatprep.subr.mxu0 0.0
        %2428 = vmatpush1.msra.mxu0 0.0
        %2429 = vmatprep.subr.mxu0 0.0
        %2430 = vmatpush1.msra.mxu0 0.0
        %2431 = vmatprep.subr.mxu0 0.0
        %2432 = vmatpush1.msra.mxu0 0.0
        %2433 = vmatprep.subr.mxu0 0.0
        %2434 = vmatpush1.msra.mxu0 0.0
        %2435 = vmatprep.subr.mxu0 0.0
        %2436 = vmatpush1.msra.mxu0 0.0
        %2437 = vmatprep.subr.mxu0 0.0
        %2438 = vmatpush1.msra.mxu0 0.0
        %2439 = vmatprep.subr.mxu0 0.0
        %2440 = vmatpush1.msra.mxu0 0.0
        %2441 = vmatprep.subr.mxu0 0.0
        %2442 = vmatpush1.msra.mxu0 0.0
        %2443 = vmatprep.subr.mxu0 0.0
        %2444 = vmatpush1.msra.mxu0 0.0
        %2445 = vmatprep.subr.mxu0 0.0
        %2446 = vmatpush1.msra.mxu0 0.0
        %2447 = vmatprep.subr.mxu0 0.0
        %2448 = vmatpush1.msra.mxu0 0.0
        %2449 = vmatprep.subr.mxu0 0.0
        %2450 = vmatpush1.msra.mxu0 0.0
        %2451 = vmatprep.subr.mxu0 0.0
        %2452 = vmatpush1.msra.mxu0 0.0
        %2453 = vmatprep.subr.mxu0 0.0
        %2454 = vmatpush1.msra.mxu0 0.0
        %2455 = vmatprep.subr.mxu0 0.0
        %2456 = vmatpush1.msra.mxu0 0.0
        %2457 = vmatprep.subr.mxu0 0.0
        %2458 = vmatpush1.msra.mxu0 0.0
        %2459 = vmatprep.subr.mxu0 0.0
        %2460 = vmatpush1.msra.mxu0 0.0
        %2461 = vmatprep.subr.mxu0 0.0
        %2462 = vmatpush1.msra.mxu0 0.0
        %2463 = vmatprep.subr.mxu0 0.0
        %2464 = vmatpush1.msra.mxu0 0.0
        %2465 = vmatprep.subr.mxu0 0.0
        %2466 = vmatpush1.msra.mxu0 0.0
        %2467 = vmatprep.subr.mxu0 0.0
        %2468 = vmatpush1.msra.mxu0 0.0
        %2469 = vmatprep.subr.mxu0 0.0
        %2470 = vmatpush1.msra.mxu0 0.0
        %2471 = vmatprep.mubr.f32.mxu0 0.0
        %2472 = vmatmul.mubr.f32.gmra.mrb[0].mxu0 %v254
        %v2473 = vpop.f32.mrb[0].mxu0
        %v2474 = vadd.f32 %v2400, %v2473
        %v2475 = vpop.f32.mrb[0].mxu0
        %v2476 = vadd.f32 %v2400, %v2475
        %2477 = vmatprep.mubr.f32.mxu0 0.0
        %2478 = vmatmul.mubr.f32.gmra.mrb[0].mxu0 %v257
        %v2479 = vpop.f32.mrb[0].mxu0
        %v2480 = vadd.f32 %v2405, %v2479
        %v2481 = vpop.f32.mrb[0].mxu0
        %v2482 = vadd.f32 %v2405, %v2481
        %2483 = vdwg.mxu0
        %v2484 = vmax.f32 %v2474, -30.0
        %v2485 = vmax.f32 %v2476, -30.0
        %v2486 = vmax.f32 %v2480, -30.0
        %v2487 = vmax.f32 %v2482, -30.0
        %v2488 = vmin.f32 %v2484, 30.0
        %v2489 = vmin.f32 %v2485, 30.0
        %v2490 = vmin.f32 %v2486, 30.0
        %v2491 = vmin.f32 %v2487, 30.0
        %v2492 = vmul.f32 %v2488, 1.442695
        %v2493 = vpow.pop %v2492
        %v2494 = vmul.f32 %v2489, 1.442695
        %v2495 = vpow.pop %v2494
        %v2496 = vmul.f32 %v2490, 1.442695
        %v2497 = vpow.pop %v2496
        %v2498 = vmul.f32 %v2491, 1.442695
        %v2499 = vpow.pop %v2498
        %2500 = vmatprep.subr.mxu0 %v2495
        %2501 = vmatpush1.msra.mxu0 %v2493
        %2502 = vmatprep.subr.mxu0 %v2499
        %2503 = vmatpush1.msra.mxu0 %v2497
        %2504 = vmatprep.subr.mxu0 0.0
        %2505 = vmatpush1.msra.mxu0 0.0
        %2506 = vmatprep.subr.mxu0 0.0
        %2507 = vmatpush1.msra.mxu0 0.0
        %2508 = vmatprep.subr.mxu0 0.0
        %2509 = vmatpush1.msra.mxu0 0.0
        %2510 = vmatprep.subr.mxu0 0.0
        %2511 = vmatpush1.msra.mxu0 0.0
        %2512 = vmatprep.subr.mxu0 0.0
        %2513 = vmatpush1.msra.mxu0 0.0
        %2514 = vmatprep.subr.mxu0 0.0
        %2515 = vmatpush1.msra.mxu0 0.0
        %2516 = vmatprep.subr.mxu0 0.0
        %2517 = vmatpush1.msra.mxu0 0.0
        %2518 = vmatprep.subr.mxu0 0.0
        %2519 = vmatpush1.msra.mxu0 0.0
        %2520 = vmatprep.subr.mxu0 0.0
        %2521 = vmatpush1.msra.mxu0 0.0
        %2522 = vmatprep.subr.mxu0 0.0
        %2523 = vmatpush1.msra.mxu0 0.0
        %2524 = vmatprep.subr.mxu0 0.0
        %2525 = vmatpush1.msra.mxu0 0.0
        %2526 = vmatprep.subr.mxu0 0.0
        %2527 = vmatpush1.msra.mxu0 0.0
        %2528 = vmatprep.subr.mxu0 0.0
        %2529 = vmatpush1.msra.mxu0 0.0
        %2530 = vmatprep.subr.mxu0 0.0
        %2531 = vmatpush1.msra.mxu0 0.0
        %2532 = vmatprep.subr.mxu0 0.0
        %2533 = vmatpush1.msra.mxu0 0.0
        %2534 = vmatprep.subr.mxu0 0.0
        %2535 = vmatpush1.msra.mxu0 0.0
        %2536 = vmatprep.subr.mxu0 0.0
        %2537 = vmatpush1.msra.mxu0 0.0
        %2538 = vmatprep.subr.mxu0 0.0
        %2539 = vmatpush1.msra.mxu0 0.0
        %2540 = vmatprep.subr.mxu0 0.0
        %2541 = vmatpush1.msra.mxu0 0.0
        %2542 = vmatprep.subr.mxu0 0.0
        %2543 = vmatpush1.msra.mxu0 0.0
        %2544 = vmatprep.subr.mxu0 0.0
        %2545 = vmatpush1.msra.mxu0 0.0
        %2546 = vmatprep.subr.mxu0 0.0
        %2547 = vmatpush1.msra.mxu0 0.0
        %2548 = vmatprep.subr.mxu0 0.0
        %2549 = vmatpush1.msra.mxu0 0.0
        %2550 = vmatprep.subr.mxu0 0.0
        %2551 = vmatpush1.msra.mxu0 0.0
        %2552 = vmatprep.subr.mxu0 0.0
        %2553 = vmatpush1.msra.mxu0 0.0
        %2554 = vmatprep.subr.mxu0 0.0
        %2555 = vmatpush1.msra.mxu0 0.0
        %2556 = vmatprep.subr.mxu0 0.0
        %2557 = vmatpush1.msra.mxu0 0.0
        %2558 = vmatprep.subr.mxu0 0.0
        %2559 = vmatpush1.msra.mxu0 0.0
        %2560 = vmatprep.subr.mxu0 0.0
        %2561 = vmatpush1.msra.mxu0 0.0
        %2562 = vmatprep.subr.mxu0 0.0
        %2563 = vmatpush1.msra.mxu0 0.0
        %2564 = vmatprep.mubr.f32.mxu0 0.0
        %2565 = vmatmul.mubr.f32.gmra.mrb[0].mxu0 %v354
        %v2566 = vpop.f32.mrb[0].mxu0
        %v2567 = vadd.f32 0.0, %v2566
        %v2568 = vpop.f32.mrb[0].mxu0
        %v2569 = vadd.f32 0.0, %v2568
        %2570 = vdwg.mxu0
        %v2571 = vmax.f32 %v2567, -100000.0
        %v2572 = vmax.f32 %v2569, -100000.0
        %v2573 = vmin.f32 %v2571, 100000.0
        %v2574 = vmin.f32 %v2572, 100000.0
        %s2575 = scalar_lea.vmem %s211, 176 [#allocation2]
        %2576 = vst [vmem:[%s2575] sm:$0xff] %v2573
        %2577 = vst [vmem:[%s2575 + $0x8] sm:$0xff] %v2574
        %s2578 = scalar_lea.vmem %s217, 192
        %v2579 = vld [vmem:[%s2578] sm:$0xff]
        %v2580 = vld [vmem:[%s2578 + $0x8] sm:$0xff]
        %v2581 = vmax.f32 %v2579, 1e-06
        %v2582 = vmax.f32 %v2580, 1e-06
        %v2583 = vmin.f32 %v2581, 60.0
        %v2584 = vmin.f32 %v2582, 60.0
        %v2585 = vlog2.pop %v2583
        %v2586 = vmul.f32 %v2585, 0.6931472
        %v2587 = vlog2.pop %v2584
        %v2588 = vmul.f32 %v2587, 0.6931472
        %s2589 = scalar_lea.vmem %s224, 192
        %v2590 = vld [vmem:[%s2589] sm:$0xff]
        %v2591 = vld [vmem:[%s2589 + $0x8] sm:$0xff]
        %2593 = vset.pattern.permute.xlu0 0
        %2594 = vperm.xlu0 %2593, %v2590
        %v2595 = vpop.permute.xlu0 %2594
        %2598 = vset.pattern.permute.xlu0 0
        %2599 = vperm.xlu0 %2598, %v2591
        %v2600 = vpop.permute.xlu0 %2599
        %2602 = vmatprep.subr.mxu0 %v2588
        %2603 = vmatpush1.msra.mxu0 %v2586
        %2604 = vmatprep.subr.mxu0 0.0
        %2605 = vmatpush1.msra.mxu0 0.0
        %2606 = vmatprep.subr.mxu0 0.0
        %2607 = vmatpush1.msra.mxu0 0.0
        %2608 = vmatprep.subr.mxu0 0.0
        %2609 = vmatpush1.msra.mxu0 0.0
        %2610 = vmatprep.subr.mxu0 0.0
        %2611 = vmatpush1.msra.mxu0 0.0
        %2612 = vmatprep.subr.mxu0 0.0
        %2613 = vmatpush1.msra.mxu0 0.0
        %2614 = vmatprep.subr.mxu0 0.0
        %2615 = vmatpush1.msra.mxu0 0.0
        %2616 = vmatprep.subr.mxu0 0.0
        %2617 = vmatpush1.msra.mxu0 0.0
        %2618 = vmatprep.subr.mxu0 0.0
        %2619 = vmatpush1.msra.mxu0 0.0
        %2620 = vmatprep.subr.mxu0 0.0
        %2621 = vmatpush1.msra.mxu0 0.0
        %2622 = vmatprep.subr.mxu0 0.0
        %2623 = vmatpush1.msra.mxu0 0.0
        %2624 = vmatprep.subr.mxu0 0.0
        %2625 = vmatpush1.msra.mxu0 0.0
        %2626 = vmatprep.subr.mxu0 0.0
        %2627 = vmatpush1.msra.mxu0 0.0
        %2628 = vmatprep.subr.mxu0 0.0
        %2629 = vmatpush1.msra.mxu0 0.0
        %2630 = vmatprep.subr.mxu0 0.0
        %2631 = vmatpush1.msra.mxu0 0.0
        %2632 = vmatprep.subr.mxu0 0.0
        %2633 = vmatpush1.msra.mxu0 0.0
        %2634 = vmatprep.subr.mxu0 0.0
        %2635 = vmatpush1.msra.mxu0 0.0
        %2636 = vmatprep.subr.mxu0 0.0
        %2637 = vmatpush1.msra.mxu0 0.0
        %2638 = vmatprep.subr.mxu0 0.0
        %2639 = vmatpush1.msra.mxu0 0.0
        %2640 = vmatprep.subr.mxu0 0.0
        %2641 = vmatpush1.msra.mxu0 0.0
        %2642 = vmatprep.subr.mxu0 0.0
        %2643 = vmatpush1.msra.mxu0 0.0
        %2644 = vmatprep.subr.mxu0 0.0
        %2645 = vmatpush1.msra.mxu0 0.0
        %2646 = vmatprep.subr.mxu0 0.0
        %2647 = vmatpush1.msra.mxu0 0.0
        %2648 = vmatprep.subr.mxu0 0.0
        %2649 = vmatpush1.msra.mxu0 0.0
        %2650 = vmatprep.subr.mxu0 0.0
        %2651 = vmatpush1.msra.mxu0 0.0
        %2652 = vmatprep.subr.mxu0 0.0
        %2653 = vmatpush1.msra.mxu0 0.0
        %2654 = vmatprep.subr.mxu0 0.0
        %2655 = vmatpush1.msra.mxu0 0.0
        %2656 = vmatprep.subr.mxu0 0.0
        %2657 = vmatpush1.msra.mxu0 0.0
        %2658 = vmatprep.subr.mxu0 0.0
        %2659 = vmatpush1.msra.mxu0 0.0
        %2660 = vmatprep.subr.mxu0 0.0
        %2661 = vmatpush1.msra.mxu0 0.0
        %2662 = vmatprep.subr.mxu0 0.0
        %2663 = vmatpush1.msra.mxu0 0.0
        %2664 = vmatprep.subr.mxu0 0.0
        %2665 = vmatpush1.msra.mxu0 0.0
        %2666 = vmatprep.mubr.f32.mxu0 0.0
        %2667 = vmatmul.mubr.f32.gmra.mrb[0].mxu0 %v254
        %v2668 = vpop.f32.mrb[0].mxu0
        %v2669 = vadd.f32 %v2595, %v2668
        %v2670 = vpop.f32.mrb[0].mxu0
        %v2671 = vadd.f32 %v2595, %v2670
        %2672 = vmatprep.mubr.f32.mxu0 0.0
        %2673 = vmatmul.mubr.f32.gmra.mrb[0].mxu0 %v257
        %v2674 = vpop.f32.mrb[0].mxu0
        %v2675 = vadd.f32 %v2600, %v2674
        %v2676 = vpop.f32.mrb[0].mxu0
        %v2677 = vadd.f32 %v2600, %v2676
        %2678 = vdwg.mxu0
        %v2679 = vmax.f32 %v2669, -30.0
        %v2680 = vmax.f32 %v2671, -30.0
        %v2681 = vmax.f32 %v2675, -30.0
        %v2682 = vmax.f32 %v2677, -30.0
        %v2683 = vmin.f32 %v2679, 30.0
        %v2684 = vmin.f32 %v2680, 30.0
        %v2685 = vmin.f32 %v2681, 30.0
        %v2686 = vmin.f32 %v2682, 30.0
        %v2687 = vmul.f32 %v2683, 1.442695
        %v2688 = vpow.pop %v2687
        %v2689 = vmul.f32 %v2684, 1.442695
        %v2690 = vpow.pop %v2689
        %v2691 = vmul.f32 %v2685, 1.442695
        %v2692 = vpow.pop %v2691
        %v2693 = vmul.f32 %v2686, 1.442695
        %v2694 = vpow.pop %v2693
        %2695 = vmatprep.subr.mxu0 %v2690
        %2696 = vmatpush1.msra.mxu0 %v2688
        %2697 = vmatprep.subr.mxu0 %v2694
        %2698 = vmatpush1.msra.mxu0 %v2692
        %2699 = vmatprep.subr.mxu0 0.0
        %2700 = vmatpush1.msra.mxu0 0.0
        %2701 = vmatprep.subr.mxu0 0.0
        %2702 = vmatpush1.msra.mxu0 0.0
        %2703 = vmatprep.subr.mxu0 0.0
        %2704 = vmatpush1.msra.mxu0 0.0
        %2705 = vmatprep.subr.mxu0 0.0
        %2706 = vmatpush1.msra.mxu0 0.0
        %2707 = vmatprep.subr.mxu0 0.0
        %2708 = vmatpush1.msra.mxu0 0.0
        %2709 = vmatprep.subr.mxu0 0.0
        %2710 = vmatpush1.msra.mxu0 0.0
        %2711 = vmatprep.subr.mxu0 0.0
        %2712 = vmatpush1.msra.mxu0 0.0
        %2713 = vmatprep.subr.mxu0 0.0
        %2714 = vmatpush1.msra.mxu0 0.0
        %2715 = vmatprep.subr.mxu0 0.0
        %2716 = vmatpush1.msra.mxu0 0.0
        %2717 = vmatprep.subr.mxu0 0.0
        %2718 = vmatpush1.msra.mxu0 0.0
        %2719 = vmatprep.subr.mxu0 0.0
        %2720 = vmatpush1.msra.mxu0 0.0
        %2721 = vmatprep.subr.mxu0 0.0
        %2722 = vmatpush1.msra.mxu0 0.0
        %2723 = vmatprep.subr.mxu0 0.0
        %2724 = vmatpush1.msra.mxu0 0.0
        %2725 = vmatprep.subr.mxu0 0.0
        %2726 = vmatpush1.msra.mxu0 0.0
        %2727 = vmatprep.subr.mxu0 0.0
        %2728 = vmatpush1.msra.mxu0 0.0
        %2729 = vmatprep.subr.mxu0 0.0
        %2730 = vmatpush1.msra.mxu0 0.0
        %2731 = vmatprep.subr.mxu0 0.0
        %2732 = vmatpush1.msra.mxu0 0.0
        %2733 = vmatprep.subr.mxu0 0.0
        %2734 = vmatpush1.msra.mxu0 0.0
        %2735 = vmatprep.subr.mxu0 0.0
        %2736 = vmatpush1.msra.mxu0 0.0
        %2737 = vmatprep.subr.mxu0 0.0
        %2738 = vmatpush1.msra.mxu0 0.0
        %2739 = vmatprep.subr.mxu0 0.0
        %2740 = vmatpush1.msra.mxu0 0.0
        %2741 = vmatprep.subr.mxu0 0.0
        %2742 = vmatpush1.msra.mxu0 0.0
        %2743 = vmatprep.subr.mxu0 0.0
        %2744 = vmatpush1.msra.mxu0 0.0
        %2745 = vmatprep.subr.mxu0 0.0
        %2746 = vmatpush1.msra.mxu0 0.0
        %2747 = vmatprep.subr.mxu0 0.0
        %2748 = vmatpush1.msra.mxu0 0.0
        %2749 = vmatprep.subr.mxu0 0.0
        %2750 = vmatpush1.msra.mxu0 0.0
        %2751 = vmatprep.subr.mxu0 0.0
        %2752 = vmatpush1.msra.mxu0 0.0
        %2753 = vmatprep.subr.mxu0 0.0
        %2754 = vmatpush1.msra.mxu0 0.0
        %2755 = vmatprep.subr.mxu0 0.0
        %2756 = vmatpush1.msra.mxu0 0.0
        %2757 = vmatprep.subr.mxu0 0.0
        %2758 = vmatpush1.msra.mxu0 0.0
        %2759 = vmatprep.mubr.f32.mxu0 0.0
        %2760 = vmatmul.mubr.f32.gmra.mrb[0].mxu0 %v354
        %v2761 = vpop.f32.mrb[0].mxu0
        %v2762 = vadd.f32 0.0, %v2761
        %v2763 = vpop.f32.mrb[0].mxu0
        %v2764 = vadd.f32 0.0, %v2763
        %2765 = vdwg.mxu0
        %v2766 = vmax.f32 %v2762, -100000.0
        %v2767 = vmax.f32 %v2764, -100000.0
        %v2768 = vmin.f32 %v2766, 100000.0
        %v2769 = vmin.f32 %v2767, 100000.0
        %s2770 = scalar_lea.vmem %s211, 192 [#allocation2]
        %2771 = vst [vmem:[%s2770] sm:$0xff] %v2768
        %2772 = vst [vmem:[%s2770 + $0x8] sm:$0xff] %v2769
        %s2773 = scalar_lea.vmem %s217, 208
        %v2774 = vld [vmem:[%s2773] sm:$0xff]
        %v2775 = vld [vmem:[%s2773 + $0x8] sm:$0xff]
        %v2776 = vmax.f32 %v2774, 1e-06
        %v2777 = vmax.f32 %v2775, 1e-06
        %v2778 = vmin.f32 %v2776, 60.0
        %v2779 = vmin.f32 %v2777, 60.0
        %v2780 = vlog2.pop %v2778
        %v2781 = vmul.f32 %v2780, 0.6931472
        %v2782 = vlog2.pop %v2779
        %v2783 = vmul.f32 %v2782, 0.6931472
        %s2784 = scalar_lea.vmem %s224, 208
        %v2785 = vld [vmem:[%s2784] sm:$0xff]
        %v2786 = vld [vmem:[%s2784 + $0x8] sm:$0xff]
        %2788 = vset.pattern.permute.xlu0 0
        %2789 = vperm.xlu0 %2788, %v2785
        %v2790 = vpop.permute.xlu0 %2789
        %2793 = vset.pattern.permute.xlu0 0
        %2794 = vperm.xlu0 %2793, %v2786
        %v2795 = vpop.permute.xlu0 %2794
        %2797 = vmatprep.subr.mxu0 %v2783
        %2798 = vmatpush1.msra.mxu0 %v2781
        %2799 = vmatprep.subr.mxu0 0.0
        %2800 = vmatpush1.msra.mxu0 0.0
        %2801 = vmatprep.subr.mxu0 0.0
        %2802 = vmatpush1.msra.mxu0 0.0
        %2803 = vmatprep.subr.mxu0 0.0
        %2804 = vmatpush1.msra.mxu0 0.0
        %2805 = vmatprep.subr.mxu0 0.0
        %2806 = vmatpush1.msra.mxu0 0.0
        %2807 = vmatprep.subr.mxu0 0.0
        %2808 = vmatpush1.msra.mxu0 0.0
        %2809 = vmatprep.subr.mxu0 0.0
        %2810 = vmatpush1.msra.mxu0 0.0
        %2811 = vmatprep.subr.mxu0 0.0
        %2812 = vmatpush1.msra.mxu0 0.0
        %2813 = vmatprep.subr.mxu0 0.0
        %2814 = vmatpush1.msra.mxu0 0.0
        %2815 = vmatprep.subr.mxu0 0.0
        %2816 = vmatpush1.msra.mxu0 0.0
        %2817 = vmatprep.subr.mxu0 0.0
        %2818 = vmatpush1.msra.mxu0 0.0
        %2819 = vmatprep.subr.mxu0 0.0
        %2820 = vmatpush1.msra.mxu0 0.0
        %2821 = vmatprep.subr.mxu0 0.0
        %2822 = vmatpush1.msra.mxu0 0.0
        %2823 = vmatprep.subr.mxu0 0.0
        %2824 = vmatpush1.msra.mxu0 0.0
        %2825 = vmatprep.subr.mxu0 0.0
        %2826 = vmatpush1.msra.mxu0 0.0
        %2827 = vmatprep.subr.mxu0 0.0
        %2828 = vmatpush1.msra.mxu0 0.0
        %2829 = vmatprep.subr.mxu0 0.0
        %2830 = vmatpush1.msra.mxu0 0.0
        %2831 = vmatprep.subr.mxu0 0.0
        %2832 = vmatpush1.msra.mxu0 0.0
        %2833 = vmatprep.subr.mxu0 0.0
        %2834 = vmatpush1.msra.mxu0 0.0
        %2835 = vmatprep.subr.mxu0 0.0
        %2836 = vmatpush1.msra.mxu0 0.0
        %2837 = vmatprep.subr.mxu0 0.0
        %2838 = vmatpush1.msra.mxu0 0.0
        %2839 = vmatprep.subr.mxu0 0.0
        %2840 = vmatpush1.msra.mxu0 0.0
        %2841 = vmatprep.subr.mxu0 0.0
        %2842 = vmatpush1.msra.mxu0 0.0
        %2843 = vmatprep.subr.mxu0 0.0
        %2844 = vmatpush1.msra.mxu0 0.0
        %2845 = vmatprep.subr.mxu0 0.0
        %2846 = vmatpush1.msra.mxu0 0.0
        %2847 = vmatprep.subr.mxu0 0.0
        %2848 = vmatpush1.msra.mxu0 0.0
        %2849 = vmatprep.subr.mxu0 0.0
        %2850 = vmatpush1.msra.mxu0 0.0
        %2851 = vmatprep.subr.mxu0 0.0
        %2852 = vmatpush1.msra.mxu0 0.0
        %2853 = vmatprep.subr.mxu0 0.0
        %2854 = vmatpush1.msra.mxu0 0.0
        %2855 = vmatprep.subr.mxu0 0.0
        %2856 = vmatpush1.msra.mxu0 0.0
        %2857 = vmatprep.subr.mxu0 0.0
        %2858 = vmatpush1.msra.mxu0 0.0
        %2859 = vmatprep.subr.mxu0 0.0
        %2860 = vmatpush1.msra.mxu0 0.0
        %2861 = vmatprep.mubr.f32.mxu0 0.0
        %2862 = vmatmul.mubr.f32.gmra.mrb[0].mxu0 %v254
        %v2863 = vpop.f32.mrb[0].mxu0
        %v2864 = vadd.f32 %v2790, %v2863
        %v2865 = vpop.f32.mrb[0].mxu0
        %v2866 = vadd.f32 %v2790, %v2865
        %2867 = vmatprep.mubr.f32.mxu0 0.0
        %2868 = vmatmul.mubr.f32.gmra.mrb[0].mxu0 %v257
        %v2869 = vpop.f32.mrb[0].mxu0
        %v2870 = vadd.f32 %v2795, %v2869
        %v2871 = vpop.f32.mrb[0].mxu0
        %v2872 = vadd.f32 %v2795, %v2871
        %2873 = vdwg.mxu0
        %v2874 = vmax.f32 %v2864, -30.0
        %v2875 = vmax.f32 %v2866, -30.0
        %v2876 = vmax.f32 %v2870, -30.0
        %v2877 = vmax.f32 %v2872, -30.0
        %v2878 = vmin.f32 %v2874, 30.0
        %v2879 = vmin.f32 %v2875, 30.0
        %v2880 = vmin.f32 %v2876, 30.0
        %v2881 = vmin.f32 %v2877, 30.0
        %v2882 = vmul.f32 %v2878, 1.442695
        %v2883 = vpow.pop %v2882
        %v2884 = vmul.f32 %v2879, 1.442695
        %v2885 = vpow.pop %v2884
        %v2886 = vmul.f32 %v2880, 1.442695
        %v2887 = vpow.pop %v2886
        %v2888 = vmul.f32 %v2881, 1.442695
        %v2889 = vpow.pop %v2888
        %2890 = vmatprep.subr.mxu0 %v2885
        %2891 = vmatpush1.msra.mxu0 %v2883
        %2892 = vmatprep.subr.mxu0 %v2889
        %2893 = vmatpush1.msra.mxu0 %v2887
        %2894 = vmatprep.subr.mxu0 0.0
        %2895 = vmatpush1.msra.mxu0 0.0
        %2896 = vmatprep.subr.mxu0 0.0
        %2897 = vmatpush1.msra.mxu0 0.0
        %2898 = vmatprep.subr.mxu0 0.0
        %2899 = vmatpush1.msra.mxu0 0.0
        %2900 = vmatprep.subr.mxu0 0.0
        %2901 = vmatpush1.msra.mxu0 0.0
        %2902 = vmatprep.subr.mxu0 0.0
        %2903 = vmatpush1.msra.mxu0 0.0
        %2904 = vmatprep.subr.mxu0 0.0
        %2905 = vmatpush1.msra.mxu0 0.0
        %2906 = vmatprep.subr.mxu0 0.0
        %2907 = vmatpush1.msra.mxu0 0.0
        %2908 = vmatprep.subr.mxu0 0.0
        %2909 = vmatpush1.msra.mxu0 0.0
        %2910 = vmatprep.subr.mxu0 0.0
        %2911 = vmatpush1.msra.mxu0 0.0
        %2912 = vmatprep.subr.mxu0 0.0
        %2913 = vmatpush1.msra.mxu0 0.0
        %2914 = vmatprep.subr.mxu0 0.0
        %2915 = vmatpush1.msra.mxu0 0.0
        %2916 = vmatprep.subr.mxu0 0.0
        %2917 = vmatpush1.msra.mxu0 0.0
        %2918 = vmatprep.subr.mxu0 0.0
        %2919 = vmatpush1.msra.mxu0 0.0
        %2920 = vmatprep.subr.mxu0 0.0
        %2921 = vmatpush1.msra.mxu0 0.0
        %2922 = vmatprep.subr.mxu0 0.0
        %2923 = vmatpush1.msra.mxu0 0.0
        %2924 = vmatprep.subr.mxu0 0.0
        %2925 = vmatpush1.msra.mxu0 0.0
        %2926 = vmatprep.subr.mxu0 0.0
        %2927 = vmatpush1.msra.mxu0 0.0
        %2928 = vmatprep.subr.mxu0 0.0
        %2929 = vmatpush1.msra.mxu0 0.0
        %2930 = vmatprep.subr.mxu0 0.0
        %2931 = vmatpush1.msra.mxu0 0.0
        %2932 = vmatprep.subr.mxu0 0.0
        %2933 = vmatpush1.msra.mxu0 0.0
        %2934 = vmatprep.subr.mxu0 0.0
        %2935 = vmatpush1.msra.mxu0 0.0
        %2936 = vmatprep.subr.mxu0 0.0
        %2937 = vmatpush1.msra.mxu0 0.0
        %2938 = vmatprep.subr.mxu0 0.0
        %2939 = vmatpush1.msra.mxu0 0.0
        %2940 = vmatprep.subr.mxu0 0.0
        %2941 = vmatpush1.msra.mxu0 0.0
        %2942 = vmatprep.subr.mxu0 0.0
        %2943 = vmatpush1.msra.mxu0 0.0
        %2944 = vmatprep.subr.mxu0 0.0
        %2945 = vmatpush1.msra.mxu0 0.0
        %2946 = vmatprep.subr.mxu0 0.0
        %2947 = vmatpush1.msra.mxu0 0.0
        %2948 = vmatprep.subr.mxu0 0.0
        %2949 = vmatpush1.msra.mxu0 0.0
        %2950 = vmatprep.subr.mxu0 0.0
        %2951 = vmatpush1.msra.mxu0 0.0
        %2952 = vmatprep.subr.mxu0 0.0
        %2953 = vmatpush1.msra.mxu0 0.0
        %2954 = vmatprep.mubr.f32.mxu0 0.0
        %2955 = vmatmul.mubr.f32.gmra.mrb[0].mxu0 %v354
        %v2956 = vpop.f32.mrb[0].mxu0
        %v2957 = vadd.f32 0.0, %v2956
        %v2958 = vpop.f32.mrb[0].mxu0
        %v2959 = vadd.f32 0.0, %v2958
        %2960 = vdwg.mxu0
        %v2961 = vmax.f32 %v2957, -100000.0
        %v2962 = vmax.f32 %v2959, -100000.0
        %v2963 = vmin.f32 %v2961, 100000.0
        %v2964 = vmin.f32 %v2962, 100000.0
        %s2965 = scalar_lea.vmem %s211, 208 [#allocation2]
        %2966 = vst [vmem:[%s2965] sm:$0xff] %v2963
        %2967 = vst [vmem:[%s2965 + $0x8] sm:$0xff] %v2964
        %s2968 = scalar_lea.vmem %s217, 224
        %v2969 = vld [vmem:[%s2968] sm:$0xff]
        %v2970 = vld [vmem:[%s2968 + $0x8] sm:$0xff]
        %v2971 = vmax.f32 %v2969, 1e-06
        %v2972 = vmax.f32 %v2970, 1e-06
        %v2973 = vmin.f32 %v2971, 60.0
        %v2974 = vmin.f32 %v2972, 60.0
        %v2975 = vlog2.pop %v2973
        %v2976 = vmul.f32 %v2975, 0.6931472
        %v2977 = vlog2.pop %v2974
        %v2978 = vmul.f32 %v2977, 0.6931472
        %s2979 = scalar_lea.vmem %s224, 224
        %v2980 = vld [vmem:[%s2979] sm:$0xff]
        %v2981 = vld [vmem:[%s2979 + $0x8] sm:$0xff]
        %2983 = vset.pattern.permute.xlu0 0
        %2984 = vperm.xlu0 %2983, %v2980
        %v2985 = vpop.permute.xlu0 %2984
        %2988 = vset.pattern.permute.xlu0 0
        %2989 = vperm.xlu0 %2988, %v2981
        %v2990 = vpop.permute.xlu0 %2989
        %2992 = vmatprep.subr.mxu0 %v2978
        %2993 = vmatpush1.msra.mxu0 %v2976
        %2994 = vmatprep.subr.mxu0 0.0
        %2995 = vmatpush1.msra.mxu0 0.0
        %2996 = vmatprep.subr.mxu0 0.0
        %2997 = vmatpush1.msra.mxu0 0.0
        %2998 = vmatprep.subr.mxu0 0.0
        %2999 = vmatpush1.msra.mxu0 0.0
        %3000 = vmatprep.subr.mxu0 0.0
        %3001 = vmatpush1.msra.mxu0 0.0
        %3002 = vmatprep.subr.mxu0 0.0
        %3003 = vmatpush1.msra.mxu0 0.0
        %3004 = vmatprep.subr.mxu0 0.0
        %3005 = vmatpush1.msra.mxu0 0.0
        %3006 = vmatprep.subr.mxu0 0.0
        %3007 = vmatpush1.msra.mxu0 0.0
        %3008 = vmatprep.subr.mxu0 0.0
        %3009 = vmatpush1.msra.mxu0 0.0
        %3010 = vmatprep.subr.mxu0 0.0
        %3011 = vmatpush1.msra.mxu0 0.0
        %3012 = vmatprep.subr.mxu0 0.0
        %3013 = vmatpush1.msra.mxu0 0.0
        %3014 = vmatprep.subr.mxu0 0.0
        %3015 = vmatpush1.msra.mxu0 0.0
        %3016 = vmatprep.subr.mxu0 0.0
        %3017 = vmatpush1.msra.mxu0 0.0
        %3018 = vmatprep.subr.mxu0 0.0
        %3019 = vmatpush1.msra.mxu0 0.0
        %3020 = vmatprep.subr.mxu0 0.0
        %3021 = vmatpush1.msra.mxu0 0.0
        %3022 = vmatprep.subr.mxu0 0.0
        %3023 = vmatpush1.msra.mxu0 0.0
        %3024 = vmatprep.subr.mxu0 0.0
        %3025 = vmatpush1.msra.mxu0 0.0
        %3026 = vmatprep.subr.mxu0 0.0
        %3027 = vmatpush1.msra.mxu0 0.0
        %3028 = vmatprep.subr.mxu0 0.0
        %3029 = vmatpush1.msra.mxu0 0.0
        %3030 = vmatprep.subr.mxu0 0.0
        %3031 = vmatpush1.msra.mxu0 0.0
        %3032 = vmatprep.subr.mxu0 0.0
        %3033 = vmatpush1.msra.mxu0 0.0
        %3034 = vmatprep.subr.mxu0 0.0
        %3035 = vmatpush1.msra.mxu0 0.0
        %3036 = vmatprep.subr.mxu0 0.0
        %3037 = vmatpush1.msra.mxu0 0.0
        %3038 = vmatprep.subr.mxu0 0.0
        %3039 = vmatpush1.msra.mxu0 0.0
        %3040 = vmatprep.subr.mxu0 0.0
        %3041 = vmatpush1.msra.mxu0 0.0
        %3042 = vmatprep.subr.mxu0 0.0
        %3043 = vmatpush1.msra.mxu0 0.0
        %3044 = vmatprep.subr.mxu0 0.0
        %3045 = vmatpush1.msra.mxu0 0.0
        %3046 = vmatprep.subr.mxu0 0.0
        %3047 = vmatpush1.msra.mxu0 0.0
        %3048 = vmatprep.subr.mxu0 0.0
        %3049 = vmatpush1.msra.mxu0 0.0
        %3050 = vmatprep.subr.mxu0 0.0
        %3051 = vmatpush1.msra.mxu0 0.0
        %3052 = vmatprep.subr.mxu0 0.0
        %3053 = vmatpush1.msra.mxu0 0.0
        %3054 = vmatprep.subr.mxu0 0.0
        %3055 = vmatpush1.msra.mxu0 0.0
        %3056 = vmatprep.mubr.f32.mxu0 0.0
        %3057 = vmatmul.mubr.f32.gmra.mrb[0].mxu0 %v254
        %v3058 = vpop.f32.mrb[0].mxu0
        %v3059 = vadd.f32 %v2985, %v3058
        %v3060 = vpop.f32.mrb[0].mxu0
        %v3061 = vadd.f32 %v2985, %v3060
        %3062 = vmatprep.mubr.f32.mxu0 0.0
        %3063 = vmatmul.mubr.f32.gmra.mrb[0].mxu0 %v257
        %v3064 = vpop.f32.mrb[0].mxu0
        %v3065 = vadd.f32 %v2990, %v3064
        %v3066 = vpop.f32.mrb[0].mxu0
        %v3067 = vadd.f32 %v2990, %v3066
        %3068 = vdwg.mxu0
        %v3069 = vmax.f32 %v3059, -30.0
        %v3070 = vmax.f32 %v3061, -30.0
        %v3071 = vmax.f32 %v3065, -30.0
        %v3072 = vmax.f32 %v3067, -30.0
        %v3073 = vmin.f32 %v3069, 30.0
        %v3074 = vmin.f32 %v3070, 30.0
        %v3075 = vmin.f32 %v3071, 30.0
        %v3076 = vmin.f32 %v3072, 30.0
        %v3077 = vmul.f32 %v3073, 1.442695
        %v3078 = vpow.pop %v3077
        %v3079 = vmul.f32 %v3074, 1.442695
        %v3080 = vpow.pop %v3079
        %v3081 = vmul.f32 %v3075, 1.442695
        %v3082 = vpow.pop %v3081
        %v3083 = vmul.f32 %v3076, 1.442695
        %v3084 = vpow.pop %v3083
        %3085 = vmatprep.subr.mxu0 %v3080
        %3086 = vmatpush1.msra.mxu0 %v3078
        %3087 = vmatprep.subr.mxu0 %v3084
        %3088 = vmatpush1.msra.mxu0 %v3082
        %3089 = vmatprep.subr.mxu0 0.0
        %3090 = vmatpush1.msra.mxu0 0.0
        %3091 = vmatprep.subr.mxu0 0.0
        %3092 = vmatpush1.msra.mxu0 0.0
        %3093 = vmatprep.subr.mxu0 0.0
        %3094 = vmatpush1.msra.mxu0 0.0
        %3095 = vmatprep.subr.mxu0 0.0
        %3096 = vmatpush1.msra.mxu0 0.0
        %3097 = vmatprep.subr.mxu0 0.0
        %3098 = vmatpush1.msra.mxu0 0.0
        %3099 = vmatprep.subr.mxu0 0.0
        %3100 = vmatpush1.msra.mxu0 0.0
        %3101 = vmatprep.subr.mxu0 0.0
        %3102 = vmatpush1.msra.mxu0 0.0
        %3103 = vmatprep.subr.mxu0 0.0
        %3104 = vmatpush1.msra.mxu0 0.0
        %3105 = vmatprep.subr.mxu0 0.0
        %3106 = vmatpush1.msra.mxu0 0.0
        %3107 = vmatprep.subr.mxu0 0.0
        %3108 = vmatpush1.msra.mxu0 0.0
        %3109 = vmatprep.subr.mxu0 0.0
        %3110 = vmatpush1.msra.mxu0 0.0
        %3111 = vmatprep.subr.mxu0 0.0
        %3112 = vmatpush1.msra.mxu0 0.0
        %3113 = vmatprep.subr.mxu0 0.0
        %3114 = vmatpush1.msra.mxu0 0.0
        %3115 = vmatprep.subr.mxu0 0.0
        %3116 = vmatpush1.msra.mxu0 0.0
        %3117 = vmatprep.subr.mxu0 0.0
        %3118 = vmatpush1.msra.mxu0 0.0
        %3119 = vmatprep.subr.mxu0 0.0
        %3120 = vmatpush1.msra.mxu0 0.0
        %3121 = vmatprep.subr.mxu0 0.0
        %3122 = vmatpush1.msra.mxu0 0.0
        %3123 = vmatprep.subr.mxu0 0.0
        %3124 = vmatpush1.msra.mxu0 0.0
        %3125 = vmatprep.subr.mxu0 0.0
        %3126 = vmatpush1.msra.mxu0 0.0
        %3127 = vmatprep.subr.mxu0 0.0
        %3128 = vmatpush1.msra.mxu0 0.0
        %3129 = vmatprep.subr.mxu0 0.0
        %3130 = vmatpush1.msra.mxu0 0.0
        %3131 = vmatprep.subr.mxu0 0.0
        %3132 = vmatpush1.msra.mxu0 0.0
        %3133 = vmatprep.subr.mxu0 0.0
        %3134 = vmatpush1.msra.mxu0 0.0
        %3135 = vmatprep.subr.mxu0 0.0
        %3136 = vmatpush1.msra.mxu0 0.0
        %3137 = vmatprep.subr.mxu0 0.0
        %3138 = vmatpush1.msra.mxu0 0.0
        %3139 = vmatprep.subr.mxu0 0.0
        %3140 = vmatpush1.msra.mxu0 0.0
        %3141 = vmatprep.subr.mxu0 0.0
        %3142 = vmatpush1.msra.mxu0 0.0
        %3143 = vmatprep.subr.mxu0 0.0
        %3144 = vmatpush1.msra.mxu0 0.0
        %3145 = vmatprep.subr.mxu0 0.0
        %3146 = vmatpush1.msra.mxu0 0.0
        %3147 = vmatprep.subr.mxu0 0.0
        %3148 = vmatpush1.msra.mxu0 0.0
        %3149 = vmatprep.mubr.f32.mxu0 0.0
        %3150 = vmatmul.mubr.f32.gmra.mrb[0].mxu0 %v354
        %v3151 = vpop.f32.mrb[0].mxu0
        %v3152 = vadd.f32 0.0, %v3151
        %v3153 = vpop.f32.mrb[0].mxu0
        %v3154 = vadd.f32 0.0, %v3153
        %3155 = vdwg.mxu0
        %v3156 = vmax.f32 %v3152, -100000.0
        %v3157 = vmax.f32 %v3154, -100000.0
        %v3158 = vmin.f32 %v3156, 100000.0
        %v3159 = vmin.f32 %v3157, 100000.0
        %s3160 = scalar_lea.vmem %s211, 224 [#allocation2]
        %3161 = vst [vmem:[%s3160] sm:$0xff] %v3158
        %3162 = vst [vmem:[%s3160 + $0x8] sm:$0xff] %v3159
        %s3163 = scalar_lea.vmem %s217, 240
        %v3164 = vld [vmem:[%s3163] sm:$0xff]
        %v3165 = vld [vmem:[%s3163 + $0x8] sm:$0xff]
        %v3166 = vmax.f32 %v3164, 1e-06
        %v3167 = vmax.f32 %v3165, 1e-06
        %v3168 = vmin.f32 %v3166, 60.0
        %v3169 = vmin.f32 %v3167, 60.0
        %v3170 = vlog2.pop %v3168
        %v3171 = vmul.f32 %v3170, 0.6931472
        %v3172 = vlog2.pop %v3169
        %v3173 = vmul.f32 %v3172, 0.6931472
        %s3174 = scalar_lea.vmem %s224, 240
        %v3175 = vld [vmem:[%s3174] sm:$0xff]
        %v3176 = vld [vmem:[%s3174 + $0x8] sm:$0xff]
        %3178 = vset.pattern.permute.xlu0 0
        %3179 = vperm.xlu0 %3178, %v3175
        %v3180 = vpop.permute.xlu0 %3179
        %3183 = vset.pattern.permute.xlu0 0
        %3184 = vperm.xlu0 %3183, %v3176
        %v3185 = vpop.permute.xlu0 %3184
        %3187 = vmatprep.subr.mxu0 %v3173
        %3188 = vmatpush1.msra.mxu0 %v3171
        %3189 = vmatprep.subr.mxu0 0.0
        %3190 = vmatpush1.msra.mxu0 0.0
        %3191 = vmatprep.subr.mxu0 0.0
        %3192 = vmatpush1.msra.mxu0 0.0
        %3193 = vmatprep.subr.mxu0 0.0
        %3194 = vmatpush1.msra.mxu0 0.0
        %3195 = vmatprep.subr.mxu0 0.0
        %3196 = vmatpush1.msra.mxu0 0.0
        %3197 = vmatprep.subr.mxu0 0.0
        %3198 = vmatpush1.msra.mxu0 0.0
        %3199 = vmatprep.subr.mxu0 0.0
        %3200 = vmatpush1.msra.mxu0 0.0
        %3201 = vmatprep.subr.mxu0 0.0
        %3202 = vmatpush1.msra.mxu0 0.0
        %3203 = vmatprep.subr.mxu0 0.0
        %3204 = vmatpush1.msra.mxu0 0.0
        %3205 = vmatprep.subr.mxu0 0.0
        %3206 = vmatpush1.msra.mxu0 0.0
        %3207 = vmatprep.subr.mxu0 0.0
        %3208 = vmatpush1.msra.mxu0 0.0
        %3209 = vmatprep.subr.mxu0 0.0
        %3210 = vmatpush1.msra.mxu0 0.0
        %3211 = vmatprep.subr.mxu0 0.0
        %3212 = vmatpush1.msra.mxu0 0.0
        %3213 = vmatprep.subr.mxu0 0.0
        %3214 = vmatpush1.msra.mxu0 0.0
        %3215 = vmatprep.subr.mxu0 0.0
        %3216 = vmatpush1.msra.mxu0 0.0
        %3217 = vmatprep.subr.mxu0 0.0
        %3218 = vmatpush1.msra.mxu0 0.0
        %3219 = vmatprep.subr.mxu0 0.0
        %3220 = vmatpush1.msra.mxu0 0.0
        %3221 = vmatprep.subr.mxu0 0.0
        %3222 = vmatpush1.msra.mxu0 0.0
        %3223 = vmatprep.subr.mxu0 0.0
        %3224 = vmatpush1.msra.mxu0 0.0
        %3225 = vmatprep.subr.mxu0 0.0
        %3226 = vmatpush1.msra.mxu0 0.0
        %3227 = vmatprep.subr.mxu0 0.0
        %3228 = vmatpush1.msra.mxu0 0.0
        %3229 = vmatprep.subr.mxu0 0.0
        %3230 = vmatpush1.msra.mxu0 0.0
        %3231 = vmatprep.subr.mxu0 0.0
        %3232 = vmatpush1.msra.mxu0 0.0
        %3233 = vmatprep.subr.mxu0 0.0
        %3234 = vmatpush1.msra.mxu0 0.0
        %3235 = vmatprep.subr.mxu0 0.0
        %3236 = vmatpush1.msra.mxu0 0.0
        %3237 = vmatprep.subr.mxu0 0.0
        %3238 = vmatpush1.msra.mxu0 0.0
        %3239 = vmatprep.subr.mxu0 0.0
        %3240 = vmatpush1.msra.mxu0 0.0
        %3241 = vmatprep.subr.mxu0 0.0
        %3242 = vmatpush1.msra.mxu0 0.0
        %3243 = vmatprep.subr.mxu0 0.0
        %3244 = vmatpush1.msra.mxu0 0.0
        %3245 = vmatprep.subr.mxu0 0.0
        %3246 = vmatpush1.msra.mxu0 0.0
        %3247 = vmatprep.subr.mxu0 0.0
        %3248 = vmatpush1.msra.mxu0 0.0
        %3249 = vmatprep.subr.mxu0 0.0
        %3250 = vmatpush1.msra.mxu0 0.0
        %3251 = vmatprep.mubr.f32.mxu0 0.0
        %3252 = vmatmul.mubr.f32.gmra.mrb[0].mxu0 %v254
        %v3253 = vpop.f32.mrb[0].mxu0
        %v3254 = vadd.f32 %v3180, %v3253
        %v3255 = vpop.f32.mrb[0].mxu0
        %v3256 = vadd.f32 %v3180, %v3255
        %3257 = vmatprep.mubr.f32.mxu0 0.0
        %3258 = vmatmul.mubr.f32.gmra.mrb[0].mxu0 %v257
        %v3259 = vpop.f32.mrb[0].mxu0
        %v3260 = vadd.f32 %v3185, %v3259
        %v3261 = vpop.f32.mrb[0].mxu0
        %v3262 = vadd.f32 %v3185, %v3261
        %3263 = vdwg.mxu0
        %v3264 = vmax.f32 %v3254, -30.0
        %v3265 = vmax.f32 %v3256, -30.0
        %v3266 = vmax.f32 %v3260, -30.0
        %v3267 = vmax.f32 %v3262, -30.0
        %v3268 = vmin.f32 %v3264, 30.0
        %v3269 = vmin.f32 %v3265, 30.0
        %v3270 = vmin.f32 %v3266, 30.0
        %v3271 = vmin.f32 %v3267, 30.0
        %v3272 = vmul.f32 %v3268, 1.442695
        %v3273 = vpow.pop %v3272
        %v3274 = vmul.f32 %v3269, 1.442695
        %v3275 = vpow.pop %v3274
        %v3276 = vmul.f32 %v3270, 1.442695
        %v3277 = vpow.pop %v3276
        %v3278 = vmul.f32 %v3271, 1.442695
        %v3279 = vpow.pop %v3278
        %3280 = vmatprep.subr.mxu0 %v3275
        %3281 = vmatpush1.msra.mxu0 %v3273
        %3282 = vmatprep.subr.mxu0 %v3279
        %3283 = vmatpush1.msra.mxu0 %v3277
        %3284 = vmatprep.subr.mxu0 0.0
        %3285 = vmatpush1.msra.mxu0 0.0
        %3286 = vmatprep.subr.mxu0 0.0
        %3287 = vmatpush1.msra.mxu0 0.0
        %3288 = vmatprep.subr.mxu0 0.0
        %3289 = vmatpush1.msra.mxu0 0.0
        %3290 = vmatprep.subr.mxu0 0.0
        %3291 = vmatpush1.msra.mxu0 0.0
        %3292 = vmatprep.subr.mxu0 0.0
        %3293 = vmatpush1.msra.mxu0 0.0
        %3294 = vmatprep.subr.mxu0 0.0
        %3295 = vmatpush1.msra.mxu0 0.0
        %3296 = vmatprep.subr.mxu0 0.0
        %3297 = vmatpush1.msra.mxu0 0.0
        %3298 = vmatprep.subr.mxu0 0.0
        %3299 = vmatpush1.msra.mxu0 0.0
        %3300 = vmatprep.subr.mxu0 0.0
        %3301 = vmatpush1.msra.mxu0 0.0
        %3302 = vmatprep.subr.mxu0 0.0
        %3303 = vmatpush1.msra.mxu0 0.0
        %3304 = vmatprep.subr.mxu0 0.0
        %3305 = vmatpush1.msra.mxu0 0.0
        %3306 = vmatprep.subr.mxu0 0.0
        %3307 = vmatpush1.msra.mxu0 0.0
        %3308 = vmatprep.subr.mxu0 0.0
        %3309 = vmatpush1.msra.mxu0 0.0
        %3310 = vmatprep.subr.mxu0 0.0
        %3311 = vmatpush1.msra.mxu0 0.0
        %3312 = vmatprep.subr.mxu0 0.0
        %3313 = vmatpush1.msra.mxu0 0.0
        %3314 = vmatprep.subr.mxu0 0.0
        %3315 = vmatpush1.msra.mxu0 0.0
        %3316 = vmatprep.subr.mxu0 0.0
        %3317 = vmatpush1.msra.mxu0 0.0
        %3318 = vmatprep.subr.mxu0 0.0
        %3319 = vmatpush1.msra.mxu0 0.0
        %3320 = vmatprep.subr.mxu0 0.0
        %3321 = vmatpush1.msra.mxu0 0.0
        %3322 = vmatprep.subr.mxu0 0.0
        %3323 = vmatpush1.msra.mxu0 0.0
        %3324 = vmatprep.subr.mxu0 0.0
        %3325 = vmatpush1.msra.mxu0 0.0
        %3326 = vmatprep.subr.mxu0 0.0
        %3327 = vmatpush1.msra.mxu0 0.0
        %3328 = vmatprep.subr.mxu0 0.0
        %3329 = vmatpush1.msra.mxu0 0.0
        %3330 = vmatprep.subr.mxu0 0.0
        %3331 = vmatpush1.msra.mxu0 0.0
        %3332 = vmatprep.subr.mxu0 0.0
        %3333 = vmatpush1.msra.mxu0 0.0
        %3334 = vmatprep.subr.mxu0 0.0
        %3335 = vmatpush1.msra.mxu0 0.0
        %3336 = vmatprep.subr.mxu0 0.0
        %3337 = vmatpush1.msra.mxu0 0.0
        %3338 = vmatprep.subr.mxu0 0.0
        %3339 = vmatpush1.msra.mxu0 0.0
        %3340 = vmatprep.subr.mxu0 0.0
        %3341 = vmatpush1.msra.mxu0 0.0
        %3342 = vmatprep.subr.mxu0 0.0
        %3343 = vmatpush1.msra.mxu0 0.0
        %3344 = vmatprep.mubr.f32.mxu0 0.0
        %3345 = vmatmul.mubr.f32.gmra.mrb[0].mxu0 %v354
        %v3346 = vpop.f32.mrb[0].mxu0
        %v3347 = vadd.f32 0.0, %v3346
        %v3348 = vpop.f32.mrb[0].mxu0
        %v3349 = vadd.f32 0.0, %v3348
        %3350 = vdwg.mxu0
        %v3351 = vmax.f32 %v3347, -100000.0
        %v3352 = vmax.f32 %v3349, -100000.0
        %v3353 = vmin.f32 %v3351, 100000.0
        %v3354 = vmin.f32 %v3352, 100000.0
        %s3355 = scalar_lea.vmem %s211, 240 [#allocation2]
        %3356 = vst [vmem:[%s3355] sm:$0xff] %v3353
        %3357 = vst [vmem:[%s3355 + $0x8] sm:$0xff] %v3354
        %s3358 = sand.u32 %s120, 1
        %s3359 = scalar_lea.sflag [#allocation3], %s3358
        %s3360 = sand.u32 %s120, 1
        %s3361 = smul.addr %s3360, 256
        %s3362 = scalar_lea.vmem [#allocation2], %s3361
        // Predicated region
        $region37: #{crnn_rhs_batch.1} parent=35 // pred_check
          %p3363 = pneg %p130
        $region38: #{crnn_rhs_batch.1} parent=35 // pred_check_branch
          %3365 = sbr.rel (%p3363) target = $region40
        $region39: #{crnn_rhs_batch.1} parent=35 // pred_region
          %s3366 = smul.u32 16, %s18
          %s3368 = ssub.s32 4096, 4096
          %3369 = vsyncadd %s3359, %s3368
          %s3370 = smul.addr %s3366, 2
          %s3371 = smul.addr %s3370, 128
          %s3372 = scalar_lea.hbm %s4, %s3371
          %s3373 = sshll.u32 %s3362, 4
          %s3374 = int_to_ptr.vmem [resolvable:$true] %s3373
          %3379 = dma.vmem_to_hbm [thread:$0]  %s3374, 4096, %s3372, %s3359, 256, 256, 16
        $region40: #{crnn_rhs_batch.1} parent=35 // pred_fallthru
          _
      $region36: #{crnn_rhs_batch.1} parent=5 // pred_fallthru
        _
      %p3380 = scmp.le.s32.totalorder 2, %s13
      // Predicated region
      $region41: #{crnn_rhs_batch.1} parent=5 // pred_check
        %p3381 = pneg %p3380
      $region42: #{crnn_rhs_batch.1} parent=5 // pred_check_branch
        %3383 = sbr.rel (%p3381) target = $region44
      $region43: #{crnn_rhs_batch.1} parent=5 // pred_region
        %s3384 = ssub.s32 %s13, 2
        // Predicated region
        $region45: #{crnn_rhs_batch.1} parent=43 // pred_check
          %p3385 = pneg %p136
        $region46: #{crnn_rhs_batch.1} parent=43 // pred_check_branch
          %3387 = sbr.rel (%p3385) target = $region48
        $region47: #{crnn_rhs_batch.1} parent=43 // pred_region
          %s3388 = sand.u32 %s121, 1
          %s3389 = scalar_lea.sflag [#allocation3], %s3388
          %s3390 = sand.u32 %s121, 1
          %s3391 = smul.addr %s3390, 256
          %s3392 = scalar_lea.vmem [#allocation2], %s3391
          %3393 = dma.done %s3389, 4096
        $region48: #{crnn_rhs_batch.1} parent=43 // pred_fallthru
          _
      $region44: #{crnn_rhs_batch.1} parent=5 // pred_fallthru
        _
    $region6: #{crnn_rhs_batch.1} parent=1 // loop_footer
      %s17 = sadd.s32 1, %s13
    $region7: #{crnn_rhs_batch.1} parent=1 // loop_footer_branch
      %12 = sbr.rel target = $region3
    $region8: #{crnn_rhs_batch.1} parent=1 // loop_exit
      _
    %3394 = vsyncpa [#allocation3], 1
    %s3395 = scalar_lea.sflag [#allocation3], 1
    %3396 = vsyncpa %s3395, 1

</llo_original>
